<compile_context>
chip_gen: v7x
topology: tpu7x:2x2x1
jax: 0.10.0
libtpu: 0.0.40
codegen_flags: <defaults>
</compile_context>

<pallas_src>
import functools

import jax
import jax.numpy as jnp
from jax import lax
from jax.experimental import pallas as pl
from jax.experimental.pallas import tpu as pltpu

NEG_SLOPE = 0.01  # nn.LeakyReLU() default negative_slope


# --------------------------------------------------------------------------------------
# Kernel
# --------------------------------------------------------------------------------------
def _deconv_kernel(x_lo_ref, x_hi_ref, w_ref, b_ref, o_ref,
                   col_ref, acc_ref,
                   *, Td, H, W, Cin, Cout, ph_split):
    # x_lo_ref : (Td, H+2, W+2, Cin)  padded planes [di*Td, di*Td+Td)      (bf16)
    # x_hi_ref : (2,  H+2, W+2, Cin)  padded planes [di*Td+Td, di*Td+Td+2) (bf16)
    # w_ref    : (G, K, N) phase-grouped dense weight slabs                (bf16)
    # b_ref    : (1, 8*Cout) bias replicated per phase                     (f32)
    # o_ref    : (Td*H*W, 8*Cout) output tile; columns = (pd, ph, pw, co)
    # col_ref  : ((Td+2)*H*W, 9*Cin) im2col scratch, rows = (plane, mh, mw),
    #            cols = (eh, ew, ci)
    # acc_ref  : (Td*H*W, 8*Cout) f32 accumulator scratch
    M = Td * H * W

    # ---- bias folded into the accumulator init (saves a full-tile VPU add) ----
    acc_ref[...] = jnp.broadcast_to(b_ref[...], (M, 8 * Cout))

    # ---- im2col: for every needed padded depth plane, gather the 9 (eh, ew) windows ----
    for p in range(Td + 2):
        src, sp = (x_lo_ref, p) if p < Td else (x_hi_ref, p - Td)
        r0 = p * H * W
        for eh in range(3):
            for ew in range(3):
                ks = (eh * 3 + ew) * Cin
                win = src[sp, eh:eh + H, ew:ew + W, :]          # direct Ref slice
                col_ref[r0:r0 + H * W, ks:ks + Cin] = win.reshape(H * W, Cin)

    # ---- dense, phase-grouped MXU matmuls (4 when pd-split only, 8 when pd+ph split) ----
    for q in range(3):                      # q = pd + jd  (depth tap offset)
        row0 = q * H * W
        if not ph_split:
            lhs = col_ref[row0:row0 + M, :]                     # (M, 9*Cin)
            for pd in range(2):
                jd = q - pd
                if jd < 0 or jd > 1:
                    continue
                g = pd * 2 + jd
                c0 = pd * 4 * Cout
                acc_ref[:, c0:c0 + 4 * Cout] += jnp.dot(
                    lhs, w_ref[g], preferred_element_type=jnp.float32)
        else:
            for ph in range(2):
                lhs = col_ref[row0:row0 + M,
                              ph * 3 * Cin:(ph + 2) * 3 * Cin]  # (M, 6*Cin)
                for pd in range(2):
                    jd = q - pd
                    if jd < 0 or jd > 1:
                        continue
                    g = (pd * 2 + ph) * 2 + jd
                    c0 = (pd * 2 + ph) * 2 * Cout
                    acc_ref[:, c0:c0 + 2 * Cout] += jnp.dot(
                        lhs, w_ref[g], preferred_element_type=jnp.float32)

    # ---- LeakyReLU + single lane-dense whole-tile store ----
    v = acc_ref[...]
    v = jnp.maximum(v, NEG_SLOPE * v)
    o_ref[...] = v.astype(o_ref.dtype)


# --------------------------------------------------------------------------------------
# Weight preparation (tiny, pure-JAX glue): drop structural zeros, regroup per phase
# --------------------------------------------------------------------------------------
def _build_group_weights(w, ph_split, compute_dtype):
    """(Cin, Cout, 4, 4, 4) ConvTranspose3d weight -> dense phase-grouped slabs.

    ph_split=False: (4, 9*Cin, 4*Cout), group g = pd*2 + jd,  K=(eh,ew,ci), N=(ph,pw,co)
    ph_split=True : (8, 6*Cin, 2*Cout), group g = (pd*2+ph)*2 + jd, K=(jh,ew,ci), N=(pw,co)
    """
    Cin, Cout = w.shape[0], w.shape[1]
    p = jnp.arange(2)
    j = jnp.arange(2)
    kidx = (3 - p[:, None] - 2 * j[None, :]).reshape(-1)          # [3, 1, 2, 0] — all valid
    wd = jnp.take(w, kidx, axis=2).reshape(Cin, Cout, 2, 2, 4, 4)
    wh = jnp.take(wd, kidx, axis=4).reshape(Cin, Cout, 2, 2, 2, 2, 4)
    ww = jnp.take(wh, kidx, axis=6).reshape(Cin, Cout, 2, 2, 2, 2, 2, 2)
    # ww axes: (ci, co, pd, jd, ph, jh, pw, jw)
    wt = jnp.transpose(ww, (2, 3, 4, 5, 6, 7, 0, 1))              # (pd,jd,ph,jh,pw,jw,ci,co)
    # one-hot embedding  e == p + j  (maps the 2-tap phase conv into 3 window offsets)
    oh = (jnp.arange(3)[None, None, :] ==
          (jnp.arange(2)[:, None, None] + jnp.arange(2)[None, :, None])).astype(w.dtype)
    if ph_split:
        slabs = jnp.einsum('wzf,dqhywzio->dhqyfiwo', oh, wt)      # (pd,ph,jd,jh,ew,ci,pw,co)
        slabs = slabs.reshape(8, 2 * 3 * Cin, 2 * Cout)
    else:
        slabs = jnp.einsum('hye,wzf,dqhywzio->dqefihwo', oh, oh, wt)  # (pd,jd,eh,ew,ci,ph,pw,co)
        slabs = slabs.reshape(4, 3 * 3 * Cin, 4 * Cout)
    return slabs.astype(compute_dtype)


# --------------------------------------------------------------------------------------
# Wrapper (NCDHW in / NCDHW out, like the PyTorch module)
# --------------------------------------------------------------------------------------
@functools.partial(jax.jit,
                   static_argnames=("depth_tile", "compute_dtype",
                                    "channels_last_out", "ph_split"))
def deconv3d_block(x, w, b, *, depth_tile=2, compute_dtype=jnp.bfloat16,
                   channels_last_out=False, ph_split=None):
    """Deconv3D_Block forward: ConvTranspose3d(k=4, s=2, p=1) + bias + LeakyReLU."""
    B, Cin, D, H, W = x.shape
    assert w.shape == (Cin, w.shape[1], 4, 4, 4), w.shape
    Cout = w.shape[1]

    Td = max(2, int(depth_tile))
    Td += Td % 2                              # even Td keeps the halo block index integral
    Dblk = -(-D // Td) * Td                   # ceil(D / Td) * Td (extra rows discarded)
    assert (Td * H * W) % 8 == 0, "Td*H*W must be a multiple of 8 (output BlockSpec tiling)"

    if ph_split is None:
        ph_split = (2 * Cout) >= 128          # split ph only when N stays lane-dense

    # NCDHW -> channels-last, bf16, zero pad 1 voxel per spatial side
    # (+ extra trailing depth planes up to Dblk) — one fused XLA pass.
    x_cl = jnp.transpose(x, (0, 2, 3, 4, 1)).astype(compute_dtype)
    xp = jnp.pad(x_cl, ((0, 0), (1, 1 + Dblk - D), (1, 1), (1, 1), (0, 0)))

    w_slabs = _build_group_weights(w, ph_split, compute_dtype)
    b_row = jnp.broadcast_to(b.astype(jnp.float32)[None, :], (8, Cout)).reshape(1, 8 * Cout)

    ncols = 8 * Cout
    grid = (B, Dblk // Td)
    kernel = functools.partial(_deconv_kernel, Td=Td, H=H, W=W, Cin=Cin, Cout=Cout,
                               ph_split=ph_split)

    y = pl.pallas_call(
        kernel,
        out_shape=jax.ShapeDtypeStruct((B, Dblk * H * W, ncols), x.dtype),
        grid_spec=pltpu.PrefetchScalarGridSpec(
            num_scalar_prefetch=0,
            grid=grid,
            in_specs=[
                # main Td-plane depth block + 2-plane halo block (overlap handled by the
                # two specs; ~ (Td+2)/Td input traffic instead of the previous 3x).
                pl.BlockSpec((None, Td, H + 2, W + 2, Cin),
                             lambda bi, di: (bi, di, 0, 0, 0)),
                pl.BlockSpec((None, 2, H + 2, W + 2, Cin),
                             lambda bi, di: (bi, di * (Td // 2) + (Td // 2), 0, 0, 0)),
                pl.BlockSpec(w_slabs.shape, lambda bi, di: (0, 0, 0)),
                pl.BlockSpec((1, ncols), lambda bi, di: (0, 0)),
            ],
            out_specs=pl.BlockSpec((None, Td * H * W, ncols),
                                   lambda bi, di: (bi, di, 0)),
            scratch_shapes=[
                pltpu.VMEM(((Td + 2) * H * W, 9 * Cin), compute_dtype),  # im2col
                pltpu.VMEM((Td * H * W, ncols), jnp.float32),            # f32 accumulator
            ],
        ),
        compiler_params=pltpu.CompilerParams(
            dimension_semantics=("parallel", "parallel"),
            vmem_limit_bytes=64 * 1024 * 1024,   # safe on v5e/v6e (128 MiB) and v7x (64 MiB)
        ),
    )(xp, xp, w_slabs, b_row)

    # (B, Dblk*H*W, 8*Cout) -> sub-pixel interleave; columns are ordered (pd, ph, pw, co).
    y = y.reshape(B, Dblk, H, W, 2, 2, 2, Cout)[:, :D]
    if channels_last_out:
        # Channels-last consumer path: skips the NCDHW relayout entirely.
        y = jnp.transpose(y, (0, 1, 4, 2, 5, 3, 6, 7))
        return y.reshape(B, 2 * D, 2 * H, 2 * W, Cout)
    y = jnp.transpose(y, (0, 7, 1, 4, 2, 5, 3, 6))                # (B, Cout, D,2, H,2, W,2)
    return y.reshape(B, Cout, 2 * D, 2 * H, 2 * W)


# --------------------------------------------------------------------------------------
# Pure-JAX reference (independent of the phase decomposition)
# --------------------------------------------------------------------------------------
def deconv3d_ref(x, w, b):
    """ConvTranspose3d(k=4, s=2, p=1) + bias + LeakyReLU via lax.conv_general_dilated."""
    rhs = jnp.transpose(jnp.flip(w, (2, 3, 4)), (1, 0, 2, 3, 4))   # (Cout, Cin, 4, 4, 4)
    y = lax.conv_general_dilated(
        x, rhs,
        window_strides=(1, 1, 1),
        padding=[(2, 2)] * 3,
        lhs_dilation=(2, 2, 2),
        rhs_dilation=(1, 1, 1),
        dimension_numbers=("NCDHW", "OIDHW", "NCDHW"),
        precision=lax.Precision.HIGHEST)
    y = y + b[None, :, None, None, None]
    return jnp.where(y >= 0, y, NEG_SLOPE * y)


def _run_case(key, B, Cin, Cout, D, H, W):
    kx, kw, kb = jax.random.split(key, 3)
    # bf16-representable f32 values: the bf16 operand cast and both backends' f32
    # accumulation stay (near-)exact, so a tight tolerance is meaningful.
    x = jax.random.normal(kx, (B, Cin, D, H, W), jnp.float32)
    x = x.astype(jnp.bfloat16).astype(jnp.float32)
    w = (0.2 * jax.random.normal(kw, (Cin, Cout, 4, 4, 4), jnp.float32))
    w = w.astype(jnp.bfloat16).astype(jnp.float32)
    b = (0.1 * jax.random.normal(kb, (Cout,), jnp.float32))
    b = b.astype(jnp.bfloat16).astype(jnp.float32)

    y = jax.block_until_ready(deconv3d_block(x, w, b))
    y_ref = deconv3d_ref(x, w, b)
    assert y.shape == (B, Cout, 2 * D, 2 * H, 2 * W), y.shape
    max_err = float(jnp.max(jnp.abs(y - y_ref)))
    assert jnp.allclose(y, y_ref, rtol=1e-3, atol=1e-3), \
        f"mismatch vs reference, max abs err {max_err}"


if __name__ == "__main__":
    key = jax.random.PRNGKey(0)
    k1, k2 = jax.random.split(key)
    # pd-split path (2*Cout < 128): small decoder-like shape.
    _run_case(k1, B=2, Cin=8, Cout=4, D=4, H=8, W=8)
    # pd+ph-split path (2*Cout >= 128): exercises the lane-dense phase-split weights.
    _run_case(k2, B=1, Cin=16, Cout=64, D=2, H=4, W=4)
    print("KERNEL_OK")
</pallas_src>

<mosaic_0001>
module attributes {stable_mosaic.version = 11 : i64} {
  func.func @_deconv_kernel(%arg0: i32, %arg1: i32, %arg2: memref<1x2x10x10x8xbf16, #tpu.memory_space<vmem>>, %arg3: memref<1x2x10x10x8xbf16, #tpu.memory_space<vmem>>, %arg4: memref<4x72x16xbf16, #tpu.memory_space<vmem>>, %arg5: memref<1x32xf32, #tpu.memory_space<vmem>>, %arg6: memref<1x128x32xf32, #tpu.memory_space<vmem>>, %arg7: memref<256x72xbf16, #tpu.memory_space<vmem>>, %arg8: memref<128x32xf32, #tpu.memory_space<vmem>>) attributes {dimension_semantics = [#tpu.dimension_semantics<parallel>, #tpu.dimension_semantics<parallel>], iteration_bounds = array<i64: 2, 2>, scalar_prefetch = 0 : i64, scratch_operands = 2 : i64, tpu.core_type = #tpu.core_type<tc>, window_params = [{transform_indices = @transform_0, window_bounds = array<i64: 1, 2, 10, 10, 8>}, {transform_indices = @transform_1, window_bounds = array<i64: 1, 2, 10, 10, 8>}, {pipeline_mode = #tpu.pipeline_mode<synchronous>, transform_indices = @transform_2, window_bounds = array<i64: 4, 72, 16>}, {pipeline_mode = #tpu.pipeline_mode<synchronous>, transform_indices = @transform_3, window_bounds = array<i64: 1, 32>}, {transform_indices = @transform_4, window_bounds = array<i64: 1, 128, 32>}]} {
    %c0 = arith.constant 0 : index
    %c0_0 = arith.constant 0 : index
    %0 = vector.load %arg5[%c0, %c0_0] : memref<1x32xf32, #tpu.memory_space<vmem>>, vector<1x32xf32>
    %1 = vector.shape_cast %0 : vector<1x32xf32> to vector<1x32xf32>
    %2 = vector.broadcast %1 : vector<1x32xf32> to vector<128x32xf32>
    %c0_1 = arith.constant 0 : index
    %c0_2 = arith.constant 0 : index
    %3 = vector.load %arg8[%c0_1, %c0_2] : memref<128x32xf32, #tpu.memory_space<vmem>>, vector<128x32xf32>
    tpu.vector_store %arg8[%c0_1, %c0_2], %2 {strides = array<i32>} : memref<128x32xf32, #tpu.memory_space<vmem>>, vector<128x32xf32>,
    %c0_3 = arith.constant 0 : index
    %c0_4 = arith.constant 0 : index
    %c0_5 = arith.constant 0 : index
    %c0_6 = arith.constant 0 : index
    %c0_7 = arith.constant 0 : index
    %4 = vector.load %arg2[%c0_3, %c0_4, %c0_5, %c0_6, %c0_7] : memref<1x2x10x10x8xbf16, #tpu.memory_space<vmem>>, vector<1x1x8x8x8xbf16>
    %5 = vector.shape_cast %4 : vector<1x1x8x8x8xbf16> to vector<8x8x8xbf16>
    %6 = vector.shape_cast %5 : vector<8x8x8xbf16> to vector<64x8xbf16>
    %c0_8 = arith.constant 0 : index
    %c0_9 = arith.constant 0 : index
    %7 = vector.load %arg7[%c0_8, %c0_9] : memref<256x72xbf16, #tpu.memory_space<vmem>>, vector<64x8xbf16>
    tpu.vector_store %arg7[%c0_8, %c0_9], %6 {strides = array<i32>} : memref<256x72xbf16, #tpu.memory_space<vmem>>, vector<64x8xbf16>,
    %c0_10 = arith.constant 0 : index
    %c0_11 = arith.constant 0 : index
    %c0_12 = arith.constant 0 : index
    %c1 = arith.constant 1 : index
    %c0_13 = arith.constant 0 : index
    %8 = vector.load %arg2[%c0_10, %c0_11, %c0_12, %c1, %c0_13] : memref<1x2x10x10x8xbf16, #tpu.memory_space<vmem>>, vector<1x1x8x8x8xbf16>
    %9 = vector.shape_cast %8 : vector<1x1x8x8x8xbf16> to vector<8x8x8xbf16>
    %10 = vector.shape_cast %9 : vector<8x8x8xbf16> to vector<64x8xbf16>
    %c0_14 = arith.constant 0 : index
    %c8 = arith.constant 8 : index
    %11 = vector.load %arg7[%c0_14, %c8] : memref<256x72xbf16, #tpu.memory_space<vmem>>, vector<64x8xbf16>
    tpu.vector_store %arg7[%c0_14, %c8], %10 {strides = array<i32>} : memref<256x72xbf16, #tpu.memory_space<vmem>>, vector<64x8xbf16>,
    %c0_15 = arith.constant 0 : index
    %c0_16 = arith.constant 0 : index
    %c0_17 = arith.constant 0 : index
    %c2 = arith.constant 2 : index
    %c0_18 = arith.constant 0 : index
    %12 = vector.load %arg2[%c0_15, %c0_16, %c0_17, %c2, %c0_18] : memref<1x2x10x10x8xbf16, #tpu.memory_space<vmem>>, vector<1x1x8x8x8xbf16>
    %13 = vector.shape_cast %12 : vector<1x1x8x8x8xbf16> to vector<8x8x8xbf16>
    %14 = vector.shape_cast %13 : vector<8x8x8xbf16> to vector<64x8xbf16>
    %c0_19 = arith.constant 0 : index
    %c16 = arith.constant 16 : index
    %15 = vector.load %arg7[%c0_19, %c16] : memref<256x72xbf16, #tpu.memory_space<vmem>>, vector<64x8xbf16>
    tpu.vector_store %arg7[%c0_19, %c16], %14 {strides = array<i32>} : memref<256x72xbf16, #tpu.memory_space<vmem>>, vector<64x8xbf16>,
    %c0_20 = arith.constant 0 : index
    %c0_21 = arith.constant 0 : index
    %c1_22 = arith.constant 1 : index
    %c0_23 = arith.constant 0 : index
    %c0_24 = arith.constant 0 : index
    %16 = vector.load %arg2[%c0_20, %c0_21, %c1_22, %c0_23, %c0_24] : memref<1x2x10x10x8xbf16, #tpu.memory_space<vmem>>, vector<1x1x8x8x8xbf16>
    %17 = vector.shape_cast %16 : vector<1x1x8x8x8xbf16> to vector<8x8x8xbf16>
    %18 = vector.shape_cast %17 : vector<8x8x8xbf16> to vector<64x8xbf16>
    %c0_25 = arith.constant 0 : index
    %c24 = arith.constant 24 : index
    %19 = vector.load %arg7[%c0_25, %c24] : memref<256x72xbf16, #tpu.memory_space<vmem>>, vector<64x8xbf16>
    tpu.vector_store %arg7[%c0_25, %c24], %18 {strides = array<i32>} : memref<256x72xbf16, #tpu.memory_space<vmem>>, vector<64x8xbf16>,
    %c0_26 = arith.constant 0 : index
    %c0_27 = arith.constant 0 : index
    %c1_28 = arith.constant 1 : index
    %c1_29 = arith.constant 1 : index
    %c0_30 = arith.constant 0 : index
    %20 = vector.load %arg2[%c0_26, %c0_27, %c1_28, %c1_29, %c0_30] : memref<1x2x10x10x8xbf16, #tpu.memory_space<vmem>>, vector<1x1x8x8x8xbf16>
    %21 = vector.shape_cast %20 : vector<1x1x8x8x8xbf16> to vector<8x8x8xbf16>
    %22 = vector.shape_cast %21 : vector<8x8x8xbf16> to vector<64x8xbf16>
    %c0_31 = arith.constant 0 : index
    %c32 = arith.constant 32 : index
    %23 = vector.load %arg7[%c0_31, %c32] : memref<256x72xbf16, #tpu.memory_space<vmem>>, vector<64x8xbf16>
    tpu.vector_store %arg7[%c0_31, %c32], %22 {strides = array<i32>} : memref<256x72xbf16, #tpu.memory_space<vmem>>, vector<64x8xbf16>,
    %c0_32 = arith.constant 0 : index
    %c0_33 = arith.constant 0 : index
    %c1_34 = arith.constant 1 : index
    %c2_35 = arith.constant 2 : index
    %c0_36 = arith.constant 0 : index
    %24 = vector.load %arg2[%c0_32, %c0_33, %c1_34, %c2_35, %c0_36] : memref<1x2x10x10x8xbf16, #tpu.memory_space<vmem>>, vector<1x1x8x8x8xbf16>
    %25 = vector.shape_cast %24 : vector<1x1x8x8x8xbf16> to vector<8x8x8xbf16>
    %26 = vector.shape_cast %25 : vector<8x8x8xbf16> to vector<64x8xbf16>
    %c0_37 = arith.constant 0 : index
    %c40 = arith.constant 40 : index
    %27 = vector.load %arg7[%c0_37, %c40] : memref<256x72xbf16, #tpu.memory_space<vmem>>, vector<64x8xbf16>
    tpu.vector_store %arg7[%c0_37, %c40], %26 {strides = array<i32>} : memref<256x72xbf16, #tpu.memory_space<vmem>>, vector<64x8xbf16>,
    %c0_38 = arith.constant 0 : index
    %c0_39 = arith.constant 0 : index
    %c2_40 = arith.constant 2 : index
    %c0_41 = arith.constant 0 : index
    %c0_42 = arith.constant 0 : index
    %28 = vector.load %arg2[%c0_38, %c0_39, %c2_40, %c0_41, %c0_42] : memref<1x2x10x10x8xbf16, #tpu.memory_space<vmem>>, vector<1x1x8x8x8xbf16>
    %29 = vector.shape_cast %28 : vector<1x1x8x8x8xbf16> to vector<8x8x8xbf16>
    %30 = vector.shape_cast %29 : vector<8x8x8xbf16> to vector<64x8xbf16>
    %c0_43 = arith.constant 0 : index
    %c48 = arith.constant 48 : index
    %31 = vector.load %arg7[%c0_43, %c48] : memref<256x72xbf16, #tpu.memory_space<vmem>>, vector<64x8xbf16>
    tpu.vector_store %arg7[%c0_43, %c48], %30 {strides = array<i32>} : memref<256x72xbf16, #tpu.memory_space<vmem>>, vector<64x8xbf16>,
    %c0_44 = arith.constant 0 : index
    %c0_45 = arith.constant 0 : index
    %c2_46 = arith.constant 2 : index
    %c1_47 = arith.constant 1 : index
    %c0_48 = arith.constant 0 : index
    %32 = vector.load %arg2[%c0_44, %c0_45, %c2_46, %c1_47, %c0_48] : memref<1x2x10x10x8xbf16, #tpu.memory_space<vmem>>, vector<1x1x8x8x8xbf16>
    %33 = vector.shape_cast %32 : vector<1x1x8x8x8xbf16> to vector<8x8x8xbf16>
    %34 = vector.shape_cast %33 : vector<8x8x8xbf16> to vector<64x8xbf16>
    %c0_49 = arith.constant 0 : index
    %c56 = arith.constant 56 : index
    %35 = vector.load %arg7[%c0_49, %c56] : memref<256x72xbf16, #tpu.memory_space<vmem>>, vector<64x8xbf16>
    tpu.vector_store %arg7[%c0_49, %c56], %34 {strides = array<i32>} : memref<256x72xbf16, #tpu.memory_space<vmem>>, vector<64x8xbf16>,
    %c0_50 = arith.constant 0 : index
    %c0_51 = arith.constant 0 : index
    %c2_52 = arith.constant 2 : index
    %c2_53 = arith.constant 2 : index
    %c0_54 = arith.constant 0 : index
    %36 = vector.load %arg2[%c0_50, %c0_51, %c2_52, %c2_53, %c0_54] : memref<1x2x10x10x8xbf16, #tpu.memory_space<vmem>>, vector<1x1x8x8x8xbf16>
    %37 = vector.shape_cast %36 : vector<1x1x8x8x8xbf16> to vector<8x8x8xbf16>
    %38 = vector.shape_cast %37 : vector<8x8x8xbf16> to vector<64x8xbf16>
    %c0_55 = arith.constant 0 : index
    %c64 = arith.constant 64 : index
    %39 = vector.load %arg7[%c0_55, %c64] : memref<256x72xbf16, #tpu.memory_space<vmem>>, vector<64x8xbf16>
    tpu.vector_store %arg7[%c0_55, %c64], %38 {strides = array<i32>} : memref<256x72xbf16, #tpu.memory_space<vmem>>, vector<64x8xbf16>,
    %c0_56 = arith.constant 0 : index
    %c1_57 = arith.constant 1 : index
    %c0_58 = arith.constant 0 : index
    %c0_59 = arith.constant 0 : index
    %c0_60 = arith.constant 0 : index
    %40 = vector.load %arg2[%c0_56, %c1_57, %c0_58, %c0_59, %c0_60] : memref<1x2x10x10x8xbf16, #tpu.memory_space<vmem>>, vector<1x1x8x8x8xbf16>
    %41 = vector.shape_cast %40 : vector<1x1x8x8x8xbf16> to vector<8x8x8xbf16>
    %42 = vector.shape_cast %41 : vector<8x8x8xbf16> to vector<64x8xbf16>
    %c64_61 = arith.constant 64 : index
    %c0_62 = arith.constant 0 : index
    %43 = vector.load %arg7[%c64_61, %c0_62] : memref<256x72xbf16, #tpu.memory_space<vmem>>, vector<64x8xbf16>
    tpu.vector_store %arg7[%c64_61, %c0_62], %42 {strides = array<i32>} : memref<256x72xbf16, #tpu.memory_space<vmem>>, vector<64x8xbf16>,
    %c0_63 = arith.constant 0 : index
    %c1_64 = arith.constant 1 : index
    %c0_65 = arith.constant 0 : index
    %c1_66 = arith.constant 1 : index
    %c0_67 = arith.constant 0 : index
    %44 = vector.load %arg2[%c0_63, %c1_64, %c0_65, %c1_66, %c0_67] : memref<1x2x10x10x8xbf16, #tpu.memory_space<vmem>>, vector<1x1x8x8x8xbf16>
    %45 = vector.shape_cast %44 : vector<1x1x8x8x8xbf16> to vector<8x8x8xbf16>
    %46 = vector.shape_cast %45 : vector<8x8x8xbf16> to vector<64x8xbf16>
    %c64_68 = arith.constant 64 : index
    %c8_69 = arith.constant 8 : index
    %47 = vector.load %arg7[%c64_68, %c8_69] : memref<256x72xbf16, #tpu.memory_space<vmem>>, vector<64x8xbf16>
    tpu.vector_store %arg7[%c64_68, %c8_69], %46 {strides = array<i32>} : memref<256x72xbf16, #tpu.memory_space<vmem>>, vector<64x8xbf16>,
    %c0_70 = arith.constant 0 : index
    %c1_71 = arith.constant 1 : index
    %c0_72 = arith.constant 0 : index
    %c2_73 = arith.constant 2 : index
    %c0_74 = arith.constant 0 : index
    %48 = vector.load %arg2[%c0_70, %c1_71, %c0_72, %c2_73, %c0_74] : memref<1x2x10x10x8xbf16, #tpu.memory_space<vmem>>, vector<1x1x8x8x8xbf16>
    %49 = vector.shape_cast %48 : vector<1x1x8x8x8xbf16> to vector<8x8x8xbf16>
    %50 = vector.shape_cast %49 : vector<8x8x8xbf16> to vector<64x8xbf16>
    %c64_75 = arith.constant 64 : index
    %c16_76 = arith.constant 16 : index
    %51 = vector.load %arg7[%c64_75, %c16_76] : memref<256x72xbf16, #tpu.memory_space<vmem>>, vector<64x8xbf16>
    tpu.vector_store %arg7[%c64_75, %c16_76], %50 {strides = array<i32>} : memref<256x72xbf16, #tpu.memory_space<vmem>>, vector<64x8xbf16>,
    %c0_77 = arith.constant 0 : index
    %c1_78 = arith.constant 1 : index
    %c1_79 = arith.constant 1 : index
    %c0_80 = arith.constant 0 : index
    %c0_81 = arith.constant 0 : index
    %52 = vector.load %arg2[%c0_77, %c1_78, %c1_79, %c0_80, %c0_81] : memref<1x2x10x10x8xbf16, #tpu.memory_space<vmem>>, vector<1x1x8x8x8xbf16>
    %53 = vector.shape_cast %52 : vector<1x1x8x8x8xbf16> to vector<8x8x8xbf16>
    %54 = vector.shape_cast %53 : vector<8x8x8xbf16> to vector<64x8xbf16>
    %c64_82 = arith.constant 64 : index
    %c24_83 = arith.constant 24 : index
    %55 = vector.load %arg7[%c64_82, %c24_83] : memref<256x72xbf16, #tpu.memory_space<vmem>>, vector<64x8xbf16>
    tpu.vector_store %arg7[%c64_82, %c24_83], %54 {strides = array<i32>} : memref<256x72xbf16, #tpu.memory_space<vmem>>, vector<64x8xbf16>,
    %c0_84 = arith.constant 0 : index
    %c1_85 = arith.constant 1 : index
    %c1_86 = arith.constant 1 : index
    %c1_87 = arith.constant 1 : index
    %c0_88 = arith.constant 0 : index
    %56 = vector.load %arg2[%c0_84, %c1_85, %c1_86, %c1_87, %c0_88] : memref<1x2x10x10x8xbf16, #tpu.memory_space<vmem>>, vector<1x1x8x8x8xbf16>
    %57 = vector.shape_cast %56 : vector<1x1x8x8x8xbf16> to vector<8x8x8xbf16>
    %58 = vector.shape_cast %57 : vector<8x8x8xbf16> to vector<64x8xbf16>
    %c64_89 = arith.constant 64 : index
    %c32_90 = arith.constant 32 : index
    %59 = vector.load %arg7[%c64_89, %c32_90] : memref<256x72xbf16, #tpu.memory_space<vmem>>, vector<64x8xbf16>
    tpu.vector_store %arg7[%c64_89, %c32_90], %58 {strides = array<i32>} : memref<256x72xbf16, #tpu.memory_space<vmem>>, vector<64x8xbf16>,
    %c0_91 = arith.constant 0 : index
    %c1_92 = arith.constant 1 : index
    %c1_93 = arith.constant 1 : index
    %c2_94 = arith.constant 2 : index
    %c0_95 = arith.constant 0 : index
    %60 = vector.load %arg2[%c0_91, %c1_92, %c1_93, %c2_94, %c0_95] : memref<1x2x10x10x8xbf16, #tpu.memory_space<vmem>>, vector<1x1x8x8x8xbf16>
    %61 = vector.shape_cast %60 : vector<1x1x8x8x8xbf16> to vector<8x8x8xbf16>
    %62 = vector.shape_cast %61 : vector<8x8x8xbf16> to vector<64x8xbf16>
    %c64_96 = arith.constant 64 : index
    %c40_97 = arith.constant 40 : index
    %63 = vector.load %arg7[%c64_96, %c40_97] : memref<256x72xbf16, #tpu.memory_space<vmem>>, vector<64x8xbf16>
    tpu.vector_store %arg7[%c64_96, %c40_97], %62 {strides = array<i32>} : memref<256x72xbf16, #tpu.memory_space<vmem>>, vector<64x8xbf16>,
    %c0_98 = arith.constant 0 : index
    %c1_99 = arith.constant 1 : index
    %c2_100 = arith.constant 2 : index
    %c0_101 = arith.constant 0 : index
    %c0_102 = arith.constant 0 : index
    %64 = vector.load %arg2[%c0_98, %c1_99, %c2_100, %c0_101, %c0_102] : memref<1x2x10x10x8xbf16, #tpu.memory_space<vmem>>, vector<1x1x8x8x8xbf16>
    %65 = vector.shape_cast %64 : vector<1x1x8x8x8xbf16> to vector<8x8x8xbf16>
    %66 = vector.shape_cast %65 : vector<8x8x8xbf16> to vector<64x8xbf16>
    %c64_103 = arith.constant 64 : index
    %c48_104 = arith.constant 48 : index
    %67 = vector.load %arg7[%c64_103, %c48_104] : memref<256x72xbf16, #tpu.memory_space<vmem>>, vector<64x8xbf16>
    tpu.vector_store %arg7[%c64_103, %c48_104], %66 {strides = array<i32>} : memref<256x72xbf16, #tpu.memory_space<vmem>>, vector<64x8xbf16>,
    %c0_105 = arith.constant 0 : index
    %c1_106 = arith.constant 1 : index
    %c2_107 = arith.constant 2 : index
    %c1_108 = arith.constant 1 : index
    %c0_109 = arith.constant 0 : index
    %68 = vector.load %arg2[%c0_105, %c1_106, %c2_107, %c1_108, %c0_109] : memref<1x2x10x10x8xbf16, #tpu.memory_space<vmem>>, vector<1x1x8x8x8xbf16>
    %69 = vector.shape_cast %68 : vector<1x1x8x8x8xbf16> to vector<8x8x8xbf16>
    %70 = vector.shape_cast %69 : vector<8x8x8xbf16> to vector<64x8xbf16>
    %c64_110 = arith.constant 64 : index
    %c56_111 = arith.constant 56 : index
    %71 = vector.load %arg7[%c64_110, %c56_111] : memref<256x72xbf16, #tpu.memory_space<vmem>>, vector<64x8xbf16>
    tpu.vector_store %arg7[%c64_110, %c56_111], %70 {strides = array<i32>} : memref<256x72xbf16, #tpu.memory_space<vmem>>, vector<64x8xbf16>,
    %c0_112 = arith.constant 0 : index
    %c1_113 = arith.constant 1 : index
    %c2_114 = arith.constant 2 : index
    %c2_115 = arith.constant 2 : index
    %c0_116 = arith.constant 0 : index
    %72 = vector.load %arg2[%c0_112, %c1_113, %c2_114, %c2_115, %c0_116] : memref<1x2x10x10x8xbf16, #tpu.memory_space<vmem>>, vector<1x1x8x8x8xbf16>
    %73 = vector.shape_cast %72 : vector<1x1x8x8x8xbf16> to vector<8x8x8xbf16>
    %74 = vector.shape_cast %73 : vector<8x8x8xbf16> to vector<64x8xbf16>
    %c64_117 = arith.constant 64 : index
    %c64_118 = arith.constant 64 : index
    %75 = vector.load %arg7[%c64_117, %c64_118] : memref<256x72xbf16, #tpu.memory_space<vmem>>, vector<64x8xbf16>
    tpu.vector_store %arg7[%c64_117, %c64_118], %74 {strides = array<i32>} : memref<256x72xbf16, #tpu.memory_space<vmem>>, vector<64x8xbf16>,
    %c0_119 = arith.constant 0 : index
    %c0_120 = arith.constant 0 : index
    %c0_121 = arith.constant 0 : index
    %c0_122 = arith.constant 0 : index
    %c0_123 = arith.constant 0 : index
    %76 = vector.load %arg3[%c0_119, %c0_120, %c0_121, %c0_122, %c0_123] : memref<1x2x10x10x8xbf16, #tpu.memory_space<vmem>>, vector<1x1x8x8x8xbf16>
    %77 = vector.shape_cast %76 : vector<1x1x8x8x8xbf16> to vector<8x8x8xbf16>
    %78 = vector.shape_cast %77 : vector<8x8x8xbf16> to vector<64x8xbf16>
    %c128 = arith.constant 128 : index
    %c0_124 = arith.constant 0 : index
    %79 = vector.load %arg7[%c128, %c0_124] : memref<256x72xbf16, #tpu.memory_space<vmem>>, vector<64x8xbf16>
    tpu.vector_store %arg7[%c128, %c0_124], %78 {strides = array<i32>} : memref<256x72xbf16, #tpu.memory_space<vmem>>, vector<64x8xbf16>,
    %c0_125 = arith.constant 0 : index
    %c0_126 = arith.constant 0 : index
    %c0_127 = arith.constant 0 : index
    %c1_128 = arith.constant 1 : index
    %c0_129 = arith.constant 0 : index
    %80 = vector.load %arg3[%c0_125, %c0_126, %c0_127, %c1_128, %c0_129] : memref<1x2x10x10x8xbf16, #tpu.memory_space<vmem>>, vector<1x1x8x8x8xbf16>
    %81 = vector.shape_cast %80 : vector<1x1x8x8x8xbf16> to vector<8x8x8xbf16>
    %82 = vector.shape_cast %81 : vector<8x8x8xbf16> to vector<64x8xbf16>
    %c128_130 = arith.constant 128 : index
    %c8_131 = arith.constant 8 : index
    %83 = vector.load %arg7[%c128_130, %c8_131] : memref<256x72xbf16, #tpu.memory_space<vmem>>, vector<64x8xbf16>
    tpu.vector_store %arg7[%c128_130, %c8_131], %82 {strides = array<i32>} : memref<256x72xbf16, #tpu.memory_space<vmem>>, vector<64x8xbf16>,
    %c0_132 = arith.constant 0 : index
    %c0_133 = arith.constant 0 : index
    %c0_134 = arith.constant 0 : index
    %c2_135 = arith.constant 2 : index
    %c0_136 = arith.constant 0 : index
    %84 = vector.load %arg3[%c0_132, %c0_133, %c0_134, %c2_135, %c0_136] : memref<1x2x10x10x8xbf16, #tpu.memory_space<vmem>>, vector<1x1x8x8x8xbf16>
    %85 = vector.shape_cast %84 : vector<1x1x8x8x8xbf16> to vector<8x8x8xbf16>
    %86 = vector.shape_cast %85 : vector<8x8x8xbf16> to vector<64x8xbf16>
    %c128_137 = arith.constant 128 : index
    %c16_138 = arith.constant 16 : index
    %87 = vector.load %arg7[%c128_137, %c16_138] : memref<256x72xbf16, #tpu.memory_space<vmem>>, vector<64x8xbf16>
    tpu.vector_store %arg7[%c128_137, %c16_138], %86 {strides = array<i32>} : memref<256x72xbf16, #tpu.memory_space<vmem>>, vector<64x8xbf16>,
    %c0_139 = arith.constant 0 : index
    %c0_140 = arith.constant 0 : index
    %c1_141 = arith.constant 1 : index
    %c0_142 = arith.constant 0 : index
    %c0_143 = arith.constant 0 : index
    %88 = vector.load %arg3[%c0_139, %c0_140, %c1_141, %c0_142, %c0_143] : memref<1x2x10x10x8xbf16, #tpu.memory_space<vmem>>, vector<1x1x8x8x8xbf16>
    %89 = vector.shape_cast %88 : vector<1x1x8x8x8xbf16> to vector<8x8x8xbf16>
    %90 = vector.shape_cast %89 : vector<8x8x8xbf16> to vector<64x8xbf16>
    %c128_144 = arith.constant 128 : index
    %c24_145 = arith.constant 24 : index
    %91 = vector.load %arg7[%c128_144, %c24_145] : memref<256x72xbf16, #tpu.memory_space<vmem>>, vector<64x8xbf16>
    tpu.vector_store %arg7[%c128_144, %c24_145], %90 {strides = array<i32>} : memref<256x72xbf16, #tpu.memory_space<vmem>>, vector<64x8xbf16>,
    %c0_146 = arith.constant 0 : index
    %c0_147 = arith.constant 0 : index
    %c1_148 = arith.constant 1 : index
    %c1_149 = arith.constant 1 : index
    %c0_150 = arith.constant 0 : index
    %92 = vector.load %arg3[%c0_146, %c0_147, %c1_148, %c1_149, %c0_150] : memref<1x2x10x10x8xbf16, #tpu.memory_space<vmem>>, vector<1x1x8x8x8xbf16>
    %93 = vector.shape_cast %92 : vector<1x1x8x8x8xbf16> to vector<8x8x8xbf16>
    %94 = vector.shape_cast %93 : vector<8x8x8xbf16> to vector<64x8xbf16>
    %c128_151 = arith.constant 128 : index
    %c32_152 = arith.constant 32 : index
    %95 = vector.load %arg7[%c128_151, %c32_152] : memref<256x72xbf16, #tpu.memory_space<vmem>>, vector<64x8xbf16>
    tpu.vector_store %arg7[%c128_151, %c32_152], %94 {strides = array<i32>} : memref<256x72xbf16, #tpu.memory_space<vmem>>, vector<64x8xbf16>,
    %c0_153 = arith.constant 0 : index
    %c0_154 = arith.constant 0 : index
    %c1_155 = arith.constant 1 : index
    %c2_156 = arith.constant 2 : index
    %c0_157 = arith.constant 0 : index
    %96 = vector.load %arg3[%c0_153, %c0_154, %c1_155, %c2_156, %c0_157] : memref<1x2x10x10x8xbf16, #tpu.memory_space<vmem>>, vector<1x1x8x8x8xbf16>
    %97 = vector.shape_cast %96 : vector<1x1x8x8x8xbf16> to vector<8x8x8xbf16>
    %98 = vector.shape_cast %97 : vector<8x8x8xbf16> to vector<64x8xbf16>
    %c128_158 = arith.constant 128 : index
    %c40_159 = arith.constant 40 : index
    %99 = vector.load %arg7[%c128_158, %c40_159] : memref<256x72xbf16, #tpu.memory_space<vmem>>, vector<64x8xbf16>
    tpu.vector_store %arg7[%c128_158, %c40_159], %98 {strides = array<i32>} : memref<256x72xbf16, #tpu.memory_space<vmem>>, vector<64x8xbf16>,
    %c0_160 = arith.constant 0 : index
    %c0_161 = arith.constant 0 : index
    %c2_162 = arith.constant 2 : index
    %c0_163 = arith.constant 0 : index
    %c0_164 = arith.constant 0 : index
    %100 = vector.load %arg3[%c0_160, %c0_161, %c2_162, %c0_163, %c0_164] : memref<1x2x10x10x8xbf16, #tpu.memory_space<vmem>>, vector<1x1x8x8x8xbf16>
    %101 = vector.shape_cast %100 : vector<1x1x8x8x8xbf16> to vector<8x8x8xbf16>
    %102 = vector.shape_cast %101 : vector<8x8x8xbf16> to vector<64x8xbf16>
    %c128_165 = arith.constant 128 : index
    %c48_166 = arith.constant 48 : index
    %103 = vector.load %arg7[%c128_165, %c48_166] : memref<256x72xbf16, #tpu.memory_space<vmem>>, vector<64x8xbf16>
    tpu.vector_store %arg7[%c128_165, %c48_166], %102 {strides = array<i32>} : memref<256x72xbf16, #tpu.memory_space<vmem>>, vector<64x8xbf16>,
    %c0_167 = arith.constant 0 : index
    %c0_168 = arith.constant 0 : index
    %c2_169 = arith.constant 2 : index
    %c1_170 = arith.constant 1 : index
    %c0_171 = arith.constant 0 : index
    %104 = vector.load %arg3[%c0_167, %c0_168, %c2_169, %c1_170, %c0_171] : memref<1x2x10x10x8xbf16, #tpu.memory_space<vmem>>, vector<1x1x8x8x8xbf16>
    %105 = vector.shape_cast %104 : vector<1x1x8x8x8xbf16> to vector<8x8x8xbf16>
    %106 = vector.shape_cast %105 : vector<8x8x8xbf16> to vector<64x8xbf16>
    %c128_172 = arith.constant 128 : index
    %c56_173 = arith.constant 56 : index
    %107 = vector.load %arg7[%c128_172, %c56_173] : memref<256x72xbf16, #tpu.memory_space<vmem>>, vector<64x8xbf16>
    tpu.vector_store %arg7[%c128_172, %c56_173], %106 {strides = array<i32>} : memref<256x72xbf16, #tpu.memory_space<vmem>>, vector<64x8xbf16>,
    %c0_174 = arith.constant 0 : index
    %c0_175 = arith.constant 0 : index
    %c2_176 = arith.constant 2 : index
    %c2_177 = arith.constant 2 : index
    %c0_178 = arith.constant 0 : index
    %108 = vector.load %arg3[%c0_174, %c0_175, %c2_176, %c2_177, %c0_178] : memref<1x2x10x10x8xbf16, #tpu.memory_space<vmem>>, vector<1x1x8x8x8xbf16>
    %109 = vector.shape_cast %108 : vector<1x1x8x8x8xbf16> to vector<8x8x8xbf16>
    %110 = vector.shape_cast %109 : vector<8x8x8xbf16> to vector<64x8xbf16>
    %c128_179 = arith.constant 128 : index
    %c64_180 = arith.constant 64 : index
    %111 = vector.load %arg7[%c128_179, %c64_180] : memref<256x72xbf16, #tpu.memory_space<vmem>>, vector<64x8xbf16>
    tpu.vector_store %arg7[%c128_179, %c64_180], %110 {strides = array<i32>} : memref<256x72xbf16, #tpu.memory_space<vmem>>, vector<64x8xbf16>,
    %c0_181 = arith.constant 0 : index
    %c1_182 = arith.constant 1 : index
    %c0_183 = arith.constant 0 : index
    %c0_184 = arith.constant 0 : index
    %c0_185 = arith.constant 0 : index
    %112 = vector.load %arg3[%c0_181, %c1_182, %c0_183, %c0_184, %c0_185] : memref<1x2x10x10x8xbf16, #tpu.memory_space<vmem>>, vector<1x1x8x8x8xbf16>
    %113 = vector.shape_cast %112 : vector<1x1x8x8x8xbf16> to vector<8x8x8xbf16>
    %114 = vector.shape_cast %113 : vector<8x8x8xbf16> to vector<64x8xbf16>
    %c192 = arith.constant 192 : index
    %c0_186 = arith.constant 0 : index
    %115 = vector.load %arg7[%c192, %c0_186] : memref<256x72xbf16, #tpu.memory_space<vmem>>, vector<64x8xbf16>
    tpu.vector_store %arg7[%c192, %c0_186], %114 {strides = array<i32>} : memref<256x72xbf16, #tpu.memory_space<vmem>>, vector<64x8xbf16>,
    %c0_187 = arith.constant 0 : index
    %c1_188 = arith.constant 1 : index
    %c0_189 = arith.constant 0 : index
    %c1_190 = arith.constant 1 : index
    %c0_191 = arith.constant 0 : index
    %116 = vector.load %arg3[%c0_187, %c1_188, %c0_189, %c1_190, %c0_191] : memref<1x2x10x10x8xbf16, #tpu.memory_space<vmem>>, vector<1x1x8x8x8xbf16>
    %117 = vector.shape_cast %116 : vector<1x1x8x8x8xbf16> to vector<8x8x8xbf16>
    %118 = vector.shape_cast %117 : vector<8x8x8xbf16> to vector<64x8xbf16>
    %c192_192 = arith.constant 192 : index
    %c8_193 = arith.constant 8 : index
    %119 = vector.load %arg7[%c192_192, %c8_193] : memref<256x72xbf16, #tpu.memory_space<vmem>>, vector<64x8xbf16>
    tpu.vector_store %arg7[%c192_192, %c8_193], %118 {strides = array<i32>} : memref<256x72xbf16, #tpu.memory_space<vmem>>, vector<64x8xbf16>,
    %c0_194 = arith.constant 0 : index
    %c1_195 = arith.constant 1 : index
    %c0_196 = arith.constant 0 : index
    %c2_197 = arith.constant 2 : index
    %c0_198 = arith.constant 0 : index
    %120 = vector.load %arg3[%c0_194, %c1_195, %c0_196, %c2_197, %c0_198] : memref<1x2x10x10x8xbf16, #tpu.memory_space<vmem>>, vector<1x1x8x8x8xbf16>
    %121 = vector.shape_cast %120 : vector<1x1x8x8x8xbf16> to vector<8x8x8xbf16>
    %122 = vector.shape_cast %121 : vector<8x8x8xbf16> to vector<64x8xbf16>
    %c192_199 = arith.constant 192 : index
    %c16_200 = arith.constant 16 : index
    %123 = vector.load %arg7[%c192_199, %c16_200] : memref<256x72xbf16, #tpu.memory_space<vmem>>, vector<64x8xbf16>
    tpu.vector_store %arg7[%c192_199, %c16_200], %122 {strides = array<i32>} : memref<256x72xbf16, #tpu.memory_space<vmem>>, vector<64x8xbf16>,
    %c0_201 = arith.constant 0 : index
    %c1_202 = arith.constant 1 : index
    %c1_203 = arith.constant 1 : index
    %c0_204 = arith.constant 0 : index
    %c0_205 = arith.constant 0 : index
    %124 = vector.load %arg3[%c0_201, %c1_202, %c1_203, %c0_204, %c0_205] : memref<1x2x10x10x8xbf16, #tpu.memory_space<vmem>>, vector<1x1x8x8x8xbf16>
    %125 = vector.shape_cast %124 : vector<1x1x8x8x8xbf16> to vector<8x8x8xbf16>
    %126 = vector.shape_cast %125 : vector<8x8x8xbf16> to vector<64x8xbf16>
    %c192_206 = arith.constant 192 : index
    %c24_207 = arith.constant 24 : index
    %127 = vector.load %arg7[%c192_206, %c24_207] : memref<256x72xbf16, #tpu.memory_space<vmem>>, vector<64x8xbf16>
    tpu.vector_store %arg7[%c192_206, %c24_207], %126 {strides = array<i32>} : memref<256x72xbf16, #tpu.memory_space<vmem>>, vector<64x8xbf16>,
    %c0_208 = arith.constant 0 : index
    %c1_209 = arith.constant 1 : index
    %c1_210 = arith.constant 1 : index
    %c1_211 = arith.constant 1 : index
    %c0_212 = arith.constant 0 : index
    %128 = vector.load %arg3[%c0_208, %c1_209, %c1_210, %c1_211, %c0_212] : memref<1x2x10x10x8xbf16, #tpu.memory_space<vmem>>, vector<1x1x8x8x8xbf16>
    %129 = vector.shape_cast %128 : vector<1x1x8x8x8xbf16> to vector<8x8x8xbf16>
    %130 = vector.shape_cast %129 : vector<8x8x8xbf16> to vector<64x8xbf16>
    %c192_213 = arith.constant 192 : index
    %c32_214 = arith.constant 32 : index
    %131 = vector.load %arg7[%c192_213, %c32_214] : memref<256x72xbf16, #tpu.memory_space<vmem>>, vector<64x8xbf16>
    tpu.vector_store %arg7[%c192_213, %c32_214], %130 {strides = array<i32>} : memref<256x72xbf16, #tpu.memory_space<vmem>>, vector<64x8xbf16>,
    %c0_215 = arith.constant 0 : index
    %c1_216 = arith.constant 1 : index
    %c1_217 = arith.constant 1 : index
    %c2_218 = arith.constant 2 : index
    %c0_219 = arith.constant 0 : index
    %132 = vector.load %arg3[%c0_215, %c1_216, %c1_217, %c2_218, %c0_219] : memref<1x2x10x10x8xbf16, #tpu.memory_space<vmem>>, vector<1x1x8x8x8xbf16>
    %133 = vector.shape_cast %132 : vector<1x1x8x8x8xbf16> to vector<8x8x8xbf16>
    %134 = vector.shape_cast %133 : vector<8x8x8xbf16> to vector<64x8xbf16>
    %c192_220 = arith.constant 192 : index
    %c40_221 = arith.constant 40 : index
    %135 = vector.load %arg7[%c192_220, %c40_221] : memref<256x72xbf16, #tpu.memory_space<vmem>>, vector<64x8xbf16>
    tpu.vector_store %arg7[%c192_220, %c40_221], %134 {strides = array<i32>} : memref<256x72xbf16, #tpu.memory_space<vmem>>, vector<64x8xbf16>,
    %c0_222 = arith.constant 0 : index
    %c1_223 = arith.constant 1 : index
    %c2_224 = arith.constant 2 : index
    %c0_225 = arith.constant 0 : index
    %c0_226 = arith.constant 0 : index
    %136 = vector.load %arg3[%c0_222, %c1_223, %c2_224, %c0_225, %c0_226] : memref<1x2x10x10x8xbf16, #tpu.memory_space<vmem>>, vector<1x1x8x8x8xbf16>
    %137 = vector.shape_cast %136 : vector<1x1x8x8x8xbf16> to vector<8x8x8xbf16>
    %138 = vector.shape_cast %137 : vector<8x8x8xbf16> to vector<64x8xbf16>
    %c192_227 = arith.constant 192 : index
    %c48_228 = arith.constant 48 : index
    %139 = vector.load %arg7[%c192_227, %c48_228] : memref<256x72xbf16, #tpu.memory_space<vmem>>, vector<64x8xbf16>
    tpu.vector_store %arg7[%c192_227, %c48_228], %138 {strides = array<i32>} : memref<256x72xbf16, #tpu.memory_space<vmem>>, vector<64x8xbf16>,
    %c0_229 = arith.constant 0 : index
    %c1_230 = arith.constant 1 : index
    %c2_231 = arith.constant 2 : index
    %c1_232 = arith.constant 1 : index
    %c0_233 = arith.constant 0 : index
    %140 = vector.load %arg3[%c0_229, %c1_230, %c2_231, %c1_232, %c0_233] : memref<1x2x10x10x8xbf16, #tpu.memory_space<vmem>>, vector<1x1x8x8x8xbf16>
    %141 = vector.shape_cast %140 : vector<1x1x8x8x8xbf16> to vector<8x8x8xbf16>
    %142 = vector.shape_cast %141 : vector<8x8x8xbf16> to vector<64x8xbf16>
    %c192_234 = arith.constant 192 : index
    %c56_235 = arith.constant 56 : index
    %143 = vector.load %arg7[%c192_234, %c56_235] : memref<256x72xbf16, #tpu.memory_space<vmem>>, vector<64x8xbf16>
    tpu.vector_store %arg7[%c192_234, %c56_235], %142 {strides = array<i32>} : memref<256x72xbf16, #tpu.memory_space<vmem>>, vector<64x8xbf16>,
    %c0_236 = arith.constant 0 : index
    %c1_237 = arith.constant 1 : index
    %c2_238 = arith.constant 2 : index
    %c2_239 = arith.constant 2 : index
    %c0_240 = arith.constant 0 : index
    %144 = vector.load %arg3[%c0_236, %c1_237, %c2_238, %c2_239, %c0_240] : memref<1x2x10x10x8xbf16, #tpu.memory_space<vmem>>, vector<1x1x8x8x8xbf16>
    %145 = vector.shape_cast %144 : vector<1x1x8x8x8xbf16> to vector<8x8x8xbf16>
    %146 = vector.shape_cast %145 : vector<8x8x8xbf16> to vector<64x8xbf16>
    %c192_241 = arith.constant 192 : index
    %c64_242 = arith.constant 64 : index
    %147 = vector.load %arg7[%c192_241, %c64_242] : memref<256x72xbf16, #tpu.memory_space<vmem>>, vector<64x8xbf16>
    tpu.vector_store %arg7[%c192_241, %c64_242], %146 {strides = array<i32>} : memref<256x72xbf16, #tpu.memory_space<vmem>>, vector<64x8xbf16>,
    %c0_243 = arith.constant 0 : index
    %c0_244 = arith.constant 0 : index
    %148 = vector.load %arg7[%c0_243, %c0_244] : memref<256x72xbf16, #tpu.memory_space<vmem>>, vector<128x72xbf16>
    %c0_245 = arith.constant 0 : index
    %c0_246 = arith.constant 0 : index
    %149 = vector.load %arg8[%c0_245, %c0_246] : memref<128x32xf32, #tpu.memory_space<vmem>>, vector<128x16xf32>
    %c0_247 = arith.constant 0 : index
    %c0_248 = arith.constant 0 : index
    %c0_249 = arith.constant 0 : index
    %150 = vector.load %arg4[%c0_247, %c0_248, %c0_249] : memref<4x72x16xbf16, #tpu.memory_space<vmem>>, vector<1x72x16xbf16>
    %151 = vector.shape_cast %150 : vector<1x72x16xbf16> to vector<72x16xbf16>
    %cst = arith.constant dense<0.000000e+00> : vector<128x16xf32>
    %152 = tpu.matmul %148, %151, %cst {dimension_numbers = #tpu.dot_dimension_numbers<[1], [0], [0], [1], [0, 0, 1, 1], [], []>} : vector<128x72xbf16>, vector<72x16xbf16>, vector<128x16xf32> -> vector<128x16xf32>
    %153 = arith.addf %149, %152 : vector<128x16xf32>
    %c0_250 = arith.constant 0 : index
    %c0_251 = arith.constant 0 : index
    %154 = vector.load %arg8[%c0_250, %c0_251] : memref<128x32xf32, #tpu.memory_space<vmem>>, vector<128x16xf32>
    tpu.vector_store %arg8[%c0_250, %c0_251], %153 {strides = array<i32>} : memref<128x32xf32, #tpu.memory_space<vmem>>, vector<128x16xf32>,
    %c64_252 = arith.constant 64 : index
    %c0_253 = arith.constant 0 : index
    %155 = vector.load %arg7[%c64_252, %c0_253] : memref<256x72xbf16, #tpu.memory_space<vmem>>, vector<128x72xbf16>
    %c0_254 = arith.constant 0 : index
    %c0_255 = arith.constant 0 : index
    %156 = vector.load %arg8[%c0_254, %c0_255] : memref<128x32xf32, #tpu.memory_space<vmem>>, vector<128x16xf32>
    %c1_256 = arith.constant 1 : index
    %c0_257 = arith.constant 0 : index
    %c0_258 = arith.constant 0 : index
    %157 = vector.load %arg4[%c1_256, %c0_257, %c0_258] : memref<4x72x16xbf16, #tpu.memory_space<vmem>>, vector<1x72x16xbf16>
    %158 = vector.shape_cast %157 : vector<1x72x16xbf16> to vector<72x16xbf16>
    %cst_259 = arith.constant dense<0.000000e+00> : vector<128x16xf32>
    %159 = tpu.matmul %155, %158, %cst_259 {dimension_numbers = #tpu.dot_dimension_numbers<[1], [0], [0], [1], [0, 0, 1, 1], [], []>} : vector<128x72xbf16>, vector<72x16xbf16>, vector<128x16xf32> -> vector<128x16xf32>
    %160 = arith.addf %156, %159 : vector<128x16xf32>
    %c0_260 = arith.constant 0 : index
    %c0_261 = arith.constant 0 : index
    %161 = vector.load %arg8[%c0_260, %c0_261] : memref<128x32xf32, #tpu.memory_space<vmem>>, vector<128x16xf32>
    tpu.vector_store %arg8[%c0_260, %c0_261], %160 {strides = array<i32>} : memref<128x32xf32, #tpu.memory_space<vmem>>, vector<128x16xf32>,
    %c0_262 = arith.constant 0 : index
    %c16_263 = arith.constant 16 : index
    %162 = vector.load %arg8[%c0_262, %c16_263] : memref<128x32xf32, #tpu.memory_space<vmem>>, vector<128x16xf32>
    %c2_264 = arith.constant 2 : index
    %c0_265 = arith.constant 0 : index
    %c0_266 = arith.constant 0 : index
    %163 = vector.load %arg4[%c2_264, %c0_265, %c0_266] : memref<4x72x16xbf16, #tpu.memory_space<vmem>>, vector<1x72x16xbf16>
    %164 = vector.shape_cast %163 : vector<1x72x16xbf16> to vector<72x16xbf16>
    %cst_267 = arith.constant dense<0.000000e+00> : vector<128x16xf32>
    %165 = tpu.matmul %155, %164, %cst_267 {dimension_numbers = #tpu.dot_dimension_numbers<[1], [0], [0], [1], [0, 0, 1, 1], [], []>} : vector<128x72xbf16>, vector<72x16xbf16>, vector<128x16xf32> -> vector<128x16xf32>
    %166 = arith.addf %162, %165 : vector<128x16xf32>
    %c0_268 = arith.constant 0 : index
    %c16_269 = arith.constant 16 : index
    %167 = vector.load %arg8[%c0_268, %c16_269] : memref<128x32xf32, #tpu.memory_space<vmem>>, vector<128x16xf32>
    tpu.vector_store %arg8[%c0_268, %c16_269], %166 {strides = array<i32>} : memref<128x32xf32, #tpu.memory_space<vmem>>, vector<128x16xf32>,
    %c128_270 = arith.constant 128 : index
    %c0_271 = arith.constant 0 : index
    %168 = vector.load %arg7[%c128_270, %c0_271] : memref<256x72xbf16, #tpu.memory_space<vmem>>, vector<128x72xbf16>
    %c0_272 = arith.constant 0 : index
    %c16_273 = arith.constant 16 : index
    %169 = vector.load %arg8[%c0_272, %c16_273] : memref<128x32xf32, #tpu.memory_space<vmem>>, vector<128x16xf32>
    %c3 = arith.constant 3 : index
    %c0_274 = arith.constant 0 : index
    %c0_275 = arith.constant 0 : index
    %170 = vector.load %arg4[%c3, %c0_274, %c0_275] : memref<4x72x16xbf16, #tpu.memory_space<vmem>>, vector<1x72x16xbf16>
    %171 = vector.shape_cast %170 : vector<1x72x16xbf16> to vector<72x16xbf16>
    %cst_276 = arith.constant dense<0.000000e+00> : vector<128x16xf32>
    %172 = tpu.matmul %168, %171, %cst_276 {dimension_numbers = #tpu.dot_dimension_numbers<[1], [0], [0], [1], [0, 0, 1, 1], [], []>} : vector<128x72xbf16>, vector<72x16xbf16>, vector<128x16xf32> -> vector<128x16xf32>
    %173 = arith.addf %169, %172 : vector<128x16xf32>
    %c0_277 = arith.constant 0 : index
    %c16_278 = arith.constant 16 : index
    %174 = vector.load %arg8[%c0_277, %c16_278] : memref<128x32xf32, #tpu.memory_space<vmem>>, vector<128x16xf32>
    tpu.vector_store %arg8[%c0_277, %c16_278], %173 {strides = array<i32>} : memref<128x32xf32, #tpu.memory_space<vmem>>, vector<128x16xf32>,
    %c0_279 = arith.constant 0 : index
    %c0_280 = arith.constant 0 : index
    %175 = vector.load %arg8[%c0_279, %c0_280] : memref<128x32xf32, #tpu.memory_space<vmem>>, vector<128x32xf32>
    %cst_281 = arith.constant 0.00999999977 : f32
    %176 = vector.broadcast %cst_281 : f32 to vector<128x32xf32>
    %177 = arith.mulf %176, %175 : vector<128x32xf32>
    %178 = arith.maximumf %175, %177 : vector<128x32xf32>
    %c0_282 = arith.constant 0 : index
    %c0_283 = arith.constant 0 : index
    %c0_284 = arith.constant 0 : index
    %179 = vector.load %arg6[%c0_282, %c0_283, %c0_284] : memref<1x128x32xf32, #tpu.memory_space<vmem>>, vector<1x128x32xf32>
    %180 = vector.shape_cast %179 : vector<1x128x32xf32> to vector<128x32xf32>
    %181 = vector.shape_cast %178 : vector<128x32xf32> to vector<1x128x32xf32>
    tpu.vector_store %arg6[%c0_282, %c0_283, %c0_284], %181 {strides = array<i32>} : memref<1x128x32xf32, #tpu.memory_space<vmem>>, vector<1x128x32xf32>,
    return
  }
  func.func @transform_0(%arg0: i32, %arg1: i32) -> (i32, i32, i32, i32, i32) {
    %c0_i32 = arith.constant 0 : i32
    %c0_i32_0 = arith.constant 0 : i32
    %c0_i32_1 = arith.constant 0 : i32
    %c0_i32_2 = arith.constant 0 : i32
    return %arg0, %arg1, %c0_i32, %c0_i32_0, %c0_i32_1 : i32, i32, i32, i32, i32
  }
  func.func @transform_1(%arg0: i32, %arg1: i32) -> (i32, i32, i32, i32, i32) {
    %c1_i32 = arith.constant 1 : i32
    %0 = arith.muli %arg1, %c1_i32 : i32
    %c1_i32_0 = arith.constant 1 : i32
    %1 = arith.addi %0, %c1_i32_0 : i32
    %c0_i32 = arith.constant 0 : i32
    %c0_i32_1 = arith.constant 0 : i32
    %c0_i32_2 = arith.constant 0 : i32
    %c0_i32_3 = arith.constant 0 : i32
    return %arg0, %1, %c0_i32, %c0_i32_1, %c0_i32_2 : i32, i32, i32, i32, i32
  }
  func.func @transform_2(%arg0: i32, %arg1: i32) -> (i32, i32, i32) {
    %c0_i32 = arith.constant 0 : i32
    %c0_i32_0 = arith.constant 0 : i32
    %c0_i32_1 = arith.constant 0 : i32
    %c0_i32_2 = arith.constant 0 : i32
    return %c0_i32, %c0_i32_0, %c0_i32_1 : i32, i32, i32
  }
  func.func @transform_3(%arg0: i32, %arg1: i32) -> (i32, i32) {
    %c0_i32 = arith.constant 0 : i32
    %c0_i32_0 = arith.constant 0 : i32
    %c0_i32_1 = arith.constant 0 : i32
    return %c0_i32, %c0_i32_0 : i32, i32
  }
  func.func @transform_4(%arg0: i32, %arg1: i32) -> (i32, i32, i32) {
    %c0_i32 = arith.constant 0 : i32
    %c0_i32_0 = arith.constant 0 : i32
    return %arg0, %arg1, %c0_i32 : i32, i32, i32
  }
}

</mosaic_0001>

<llo_original>
// kernel: deconv3d_block.1
$region0: #{deconv3d_block.1}
  #allocation0 [shape = 'u32[]', space=smem, size = 0x4, offset = 0x4, fixed_abs, tag = 'smem constant byte address 0x4 - core index']
  #allocation1 [shape = 'u32[144,128]{1,0:T(1,128)}', space=vmem, size = 0x12000, scoped, tag = 'internal scratch']
  #allocation2 [shape = 'bf16[256,72]{1,0:T(16,128)(2,1)}', space=vmem, size = 0x10000, scoped, tag = 'scratch operand']
  #allocation3 [shape = 'f32[128,32]{1,0:T(8,128)}', space=vmem, size = 0x10000, scoped, tag = 'scratch operand']
  %s0 = inlined_call_operand.hbm [shape: bf16[2,6,10,10,8], index: 0, kind: input, shape index: {}, may-alias: {0,1}]
  %s1 = inlined_call_operand.hbm [shape: bf16[2,6,10,10,8], index: 1, kind: input, shape index: {}, may-alias: {0,1}]
  %s2 = inlined_call_operand.hbm [shape: bf16[4,72,16], index: 2, kind: input, shape index: {}]
  %s3 = inlined_call_operand.hbm [shape: f32[1,32], index: 3, kind: input, shape index: {}]
  %s4 = inlined_call_operand.hbm [shape: f32[2,256,32], index: 4, kind: output, shape index: {}]
  %s5 = sld [smem:[#allocation0]]
  $region65: #{deconv3d_block.1} parent=0
    _
  %s7 = ssub.s32 1, %s5
  %s8 = scalar_select 0, %s7, %s5
  $region1: #{deconv3d_block.1} parent=0
    #allocation4 [shape = 'u8[163840]{0}', space=vmem, size = 0x28000, scoped, tag = 'input window, operand 0']
    #allocation5 [shape = 's32[2]{0}', space=sflag, size = 0x8, scoped, tag = 'scoped memory for deconv3d_block.1']
    #allocation6 [shape = 's32[2]{0}', space=sflag, size = 0x8, scoped, tag = 'scoped memory for deconv3d_block.1']
    #allocation7 [shape = 'u8[163840]{0}', space=vmem, size = 0x28000, scoped, tag = 'input window, operand 1']
    #allocation8 [shape = 's32[2]{0}', space=sflag, size = 0x8, scoped, tag = 'scoped memory for deconv3d_block.1']
    #allocation9 [shape = 'u8[73728]{0}', space=vmem, size = 0x12000, scoped, tag = 'input window, operand 2, single buffered']
    #allocation10 [shape = 'u8[512]{0}', space=vmem, size = 0x400, scoped, tag = 'input window, operand 3, single buffered']
    #allocation11 [shape = 's32[1]{0}', space=sflag, size = 0x4, scoped, tag = 'scoped memory for deconv3d_block.1']
    #allocation12 [shape = 'u8[131072]{0}', space=vmem, size = 0x20000, scoped, tag = 'output window, operand 0']
    %9 = vsyncpa [#allocation5], 0
    %s10 = scalar_lea.sflag [#allocation5], 1
    %11 = vsyncpa %s10, 0
    %12 = vsyncpa [#allocation8], 0
    %s13 = scalar_lea.sflag [#allocation8], 1
    %14 = vsyncpa %s13, 0
    %15 = vsyncpa [#allocation11], 0
    %16 = vsyncpa [#allocation6], 0
    %s17 = scalar_lea.sflag [#allocation6], 1
    %18 = vsyncpa %s17, 0
    loop: start=0, step=1, limit=6
    $region2: #{deconv3d_block.1} parent=1 // loop_pre_header
      _
    $region3: #{deconv3d_block.1} parent=1 // loop_header
      %s20 = sphi 0, %s24
      %p21 = scmp.ge.s32.totalorder %s20, 6
      %s27 = sphi 0, %s39
      %s28 = sphi 0, %s35
      %s29 = sphi 0, %s27
      %s30 = sphi 0, %s28
      %s31 = sphi 0, %s29
      %s32 = sphi 0, %s30
      %s44 = sphi 0, %s46
      %s47 = sphi 0, %s44
      %s48 = sphi 0, %s47
      %s64 = sphi 0, %s48
      %s74 = sphi 0, %s76
      %s77 = sphi 0, %s74
      %s78 = sphi 0, %s77
      %s94 = sphi 0, %s78
      %s98 = sphi 0, %s98
      %s100 = sphi 0, %s98
      %s101 = sphi 0, %s100
      %s115 = sphi 0, %s101
      %s119 = sphi 0, %s119
      %s121 = sphi 0, %s119
      %s122 = sphi 0, %s121
      %s136 = sphi 0, %s122
      %s144 = sphi 0, %s146
      %s147 = sphi 0, %s144
      %s148 = sphi 0, %s147
      %s164 = sphi 0, %s148
    $region4: #{deconv3d_block.1} parent=1 // loop_header_branch
      %23 = sbr.rel (%p21) target = $region8
    $region5: #{deconv3d_block.1} parent=1 // loop_body
      %s25 = ssub.s32 %s20, 1
      %s26 = ssub.s32 %s20, 2
      %s33 = sadd.s32 1, %s28
      %p34 = scmp.ge.s32.totalorder %s33, 2
      %s35 = scalar_select %p34, 0, %s33
      %s36 = sadd.s32 1, %s27
      %s37 = scalar_select %p34, %s36, %s27
      %p38 = scmp.ge.s32.totalorder %s37, 2
      %s39 = scalar_select %p38, 0, %s37
      %s40 = ssub.s32 %s27, %s39
      %s41 = ssub.s32 %s28, %s35
      %s42 = sor.u32 %s40, %s41
      %p43 = scmp.eq.s32.totalorder %s42, 0
      %s45 = sadd.s32 %s44, 1
      %s46 = scalar_select %p43, %s44, %s45
      %p49 = pneg %p43
      %p50 = scmp.eq.s32.totalorder %s20, 3
      %p51 = por %p49, %p50
      %p52 = scmp.ne.s32.totalorder %s44, %s47
      %p53 = scmp.eq.s32.totalorder %s20, 0
      %p54 = por %p52, %p53
      %p55 = scmp.ne.s32.totalorder %s44, %s47
      %p56 = scmp.eq.s32.totalorder %s25, 3
      %p57 = por %p55, %p56
      %p58 = scmp.ne.s32.totalorder %s47, %s48
      %p59 = scmp.eq.s32.totalorder %s25, 0
      %p60 = por %p58, %p59
      %p61 = scmp.ne.s32.totalorder %s47, %s48
      %p62 = scmp.eq.s32.totalorder %s26, 3
      %p63 = por %p61, %p62
      %p65 = scmp.ne.s32.totalorder %s48, %s64
      %p66 = scmp.eq.s32.totalorder %s26, 0
      %p67 = por %p65, %p66
      %s68 = sadd.s32 %s28, 1
      %s69 = sadd.s32 %s35, 1
      %s70 = ssub.s32 %s27, %s39
      %s71 = ssub.s32 %s68, %s69
      %s72 = sor.u32 %s70, %s71
      %p73 = scmp.eq.s32.totalorder %s72, 0
      %s75 = sadd.s32 %s74, 1
      %s76 = scalar_select %p73, %s74, %s75
      %p79 = pneg %p73
      %p80 = scmp.eq.s32.totalorder %s20, 3
      %p81 = por %p79, %p80
      %p82 = scmp.ne.s32.totalorder %s74, %s77
      %p83 = scmp.eq.s32.totalorder %s20, 0
      %p84 = por %p82, %p83
      %p85 = scmp.ne.s32.totalorder %s74, %s77
      %p86 = scmp.eq.s32.totalorder %s25, 3
      %p87 = por %p85, %p86
      %p88 = scmp.ne.s32.totalorder %s77, %s78
      %p89 = scmp.eq.s32.totalorder %s25, 0
      %p90 = por %p88, %p89
      %p91 = scmp.ne.s32.totalorder %s77, %s78
      %p92 = scmp.eq.s32.totalorder %s26, 3
      %p93 = por %p91, %p92
      %p95 = scmp.ne.s32.totalorder %s78, %s94
      %p96 = scmp.eq.s32.totalorder %s26, 0
      %p97 = por %p95, %p96
      %s99 = sadd.s32 %s98, 1
      %p102 = scmp.eq.s32.totalorder %s20, 3
      %p103 = scmp.ne.s32.totalorder %s98, %s100
      %p104 = scmp.eq.s32.totalorder %s20, 0
      %p105 = por %p103, %p104
      %p106 = scmp.ne.s32.totalorder %s98, %s100
      %p107 = scmp.eq.s32.totalorder %s25, 3
      %p108 = por %p106, %p107
      %p109 = scmp.ne.s32.totalorder %s100, %s101
      %p110 = scmp.eq.s32.totalorder %s25, 0
      %p111 = por %p109, %p110
      %p112 = scmp.ne.s32.totalorder %s100, %s101
      %p113 = scmp.eq.s32.totalorder %s26, 3
      %p114 = por %p112, %p113
      %p116 = scmp.ne.s32.totalorder %s101, %s115
      %p117 = scmp.eq.s32.totalorder %s26, 0
      %p118 = por %p116, %p117
      %s120 = sadd.s32 %s119, 1
      %p123 = scmp.eq.s32.totalorder %s20, 3
      %p124 = scmp.ne.s32.totalorder %s119, %s121
      %p125 = scmp.eq.s32.totalorder %s20, 0
      %p126 = por %p124, %p125
      %p127 = scmp.ne.s32.totalorder %s119, %s121
      %p128 = scmp.eq.s32.totalorder %s25, 3
      %p129 = por %p127, %p128
      %p130 = scmp.ne.s32.totalorder %s121, %s122
      %p131 = scmp.eq.s32.totalorder %s25, 0
      %p132 = por %p130, %p131
      %p133 = scmp.ne.s32.totalorder %s121, %s122
      %p134 = scmp.eq.s32.totalorder %s26, 3
      %p135 = por %p133, %p134
      %p137 = scmp.ne.s32.totalorder %s122, %s136
      %p138 = scmp.eq.s32.totalorder %s26, 0
      %p139 = por %p137, %p138
      %s140 = ssub.s32 %s27, %s39
      %s141 = ssub.s32 %s28, %s35
      %s142 = sor.u32 %s140, %s141
      %p143 = scmp.eq.s32.totalorder %s142, 0
      %s145 = sadd.s32 %s144, 1
      %s146 = scalar_select %p143, %s144, %s145
      %p149 = pneg %p143
      %p150 = scmp.eq.s32.totalorder %s20, 3
      %p151 = por %p149, %p150
      %p152 = scmp.ne.s32.totalorder %s144, %s147
      %p153 = scmp.eq.s32.totalorder %s20, 0
      %p154 = por %p152, %p153
      %p155 = scmp.ne.s32.totalorder %s144, %s147
      %p156 = scmp.eq.s32.totalorder %s25, 3
      %p157 = por %p155, %p156
      %p158 = scmp.ne.s32.totalorder %s147, %s148
      %p159 = scmp.eq.s32.totalorder %s25, 0
      %p160 = por %p158, %p159
      %p161 = scmp.ne.s32.totalorder %s147, %s148
      %p162 = scmp.eq.s32.totalorder %s26, 3
      %p163 = por %p161, %p162
      %p165 = scmp.ne.s32.totalorder %s148, %s164
      %p166 = scmp.eq.s32.totalorder %s26, 0
      %p167 = por %p165, %p166
      %p168 = scmp.le.s32.totalorder 1, %s20
      %p169 = scmp.lt.s32.totalorder %s20, 5
      %p170 = pnand %p168, %p169
      %p171 = pneg %p170
      // Predicated region
      $region9: #{deconv3d_block.1} parent=5 // pred_check
        _
      $region10: #{deconv3d_block.1} parent=5 // pred_check_branch
        %173 = sbr.rel (%p170) target = $region12
      $region11: #{deconv3d_block.1} parent=5 // pred_region
        %s174 = ssub.s32 %s20, 1
        // Predicated region
        $region13: #{deconv3d_block.1} parent=11 // pred_check
          %p175 = pneg %p111
        $region14: #{deconv3d_block.1} parent=11 // pred_check_branch
          %177 = sbr.rel (%p175) target = $region16
        $region15: #{deconv3d_block.1} parent=11 // pred_region
          %s179 = ssub.s32 2304, 2304
          %180 = vsyncadd [#allocation8], %s179
          %s181 = sshll.u32 [#allocation9], 4
          %s182 = int_to_ptr.vmem [resolvable:$true] %s181
          %187 = dma.hbm_to_vmem [thread:$0]  %s2, 2304, %s182, [#allocation8], 64, 64, 4
        $region16: #{deconv3d_block.1} parent=11 // pred_fallthru
          _
        // Predicated region
        $region17: #{deconv3d_block.1} parent=11 // pred_check
          %p188 = pneg %p132
        $region18: #{deconv3d_block.1} parent=11 // pred_check_branch
          %190 = sbr.rel (%p188) target = $region20
        $region19: #{deconv3d_block.1} parent=11 // pred_region
          %s192 = ssub.s32 16, 16
          %193 = vsyncadd [#allocation11], %s192
          %s195 = sshll.u32 [#allocation10], 4
          %s196 = int_to_ptr.vmem [resolvable:$true] %s195
          %198 = dma.hbm_to_vmem [thread:$0]  %s3, 16, %s196, [#allocation11]
        $region20: #{deconv3d_block.1} parent=11 // pred_fallthru
          _
      $region12: #{deconv3d_block.1} parent=5 // pred_fallthru
        _
      %p199 = scmp.lt.s32.totalorder %s20, 4
      // Predicated region
      $region21: #{deconv3d_block.1} parent=5 // pred_check
        %p200 = pneg %p199
      $region22: #{deconv3d_block.1} parent=5 // pred_check_branch
        %202 = sbr.rel (%p200) target = $region24
      $region23: #{deconv3d_block.1} parent=5 // pred_region
        // Predicated region
        $region25: #{deconv3d_block.1} parent=23 // pred_check
          %p203 = pneg %p54
        $region26: #{deconv3d_block.1} parent=23 // pred_check_branch
          %205 = sbr.rel (%p203) target = $region28
        $region27: #{deconv3d_block.1} parent=23 // pred_region
          %s206 = sand.u32 %s44, 1
          %s207 = scalar_lea.sflag [#allocation5], %s206
          %s208 = sand.u32 %s44, 1
          %s209 = smul.addr %s208, 160
          %s210 = scalar_lea.vmem [#allocation4], %s209
          %s211 = smul.u32 2, %s28
          %s213 = ssub.s32 2560, 2560
          %214 = vsyncadd %s207, %s213
          %s215 = smul.addr %s211, 20
          %s216 = smul.addr %s27, 120
          %s217 = sadd.s32 %s215, %s216
          %s218 = smul.addr %s217, 64
          %s219 = scalar_lea.hbm %s0, %s218
          %s220 = sshll.u32 %s210, 4
          %s221 = int_to_ptr.vmem [resolvable:$true] %s220
          %226 = dma.hbm_to_vmem [thread:$0]  %s219, 2560, %s221, %s207, 64, 64, 4
        $region28: #{deconv3d_block.1} parent=23 // pred_fallthru
          _
        // Predicated region
        $region29: #{deconv3d_block.1} parent=23 // pred_check
          %p227 = pneg %p84
        $region30: #{deconv3d_block.1} parent=23 // pred_check_branch
          %229 = sbr.rel (%p227) target = $region32
        $region31: #{deconv3d_block.1} parent=23 // pred_region
          %s230 = sand.u32 %s20, 1
          %s231 = scalar_lea.sflag [#allocation8], %s230
          %s232 = sand.u32 %s74, 1
          %s233 = smul.addr %s232, 160
          %s234 = scalar_lea.vmem [#allocation7], %s233
          %s235 = sadd.s32 %s28, 1
          %s236 = smul.u32 2, %s235
          %s238 = ssub.s32 2560, 2560
          %239 = vsyncadd %s231, %s238
          %s240 = smul.addr %s236, 20
          %s241 = smul.addr %s27, 120
          %s242 = sadd.s32 %s240, %s241
          %s243 = smul.addr %s242, 64
          %s244 = scalar_lea.hbm %s1, %s243
          %s245 = sshll.u32 %s234, 4
          %s246 = int_to_ptr.vmem [resolvable:$true] %s245
          %251 = dma.hbm_to_vmem [thread:$0]  %s244, 2560, %s246, %s231, 64, 64, 4
        $region32: #{deconv3d_block.1} parent=23 // pred_fallthru
          _
      $region24: #{deconv3d_block.1} parent=5 // pred_fallthru
        _
      %p252 = scmp.le.s32.totalorder 1, %s20
      %p253 = scmp.lt.s32.totalorder %s20, 5
      %p254 = pnand %p252, %p253
      %p255 = pneg %p254
      // Predicated region
      $region33: #{deconv3d_block.1} parent=5 // pred_check
        _
      $region34: #{deconv3d_block.1} parent=5 // pred_check_branch
        %257 = sbr.rel (%p254) target = $region36
      $region35: #{deconv3d_block.1} parent=5 // pred_region
        %s258 = ssub.s32 %s20, 1
        %s259 = sand.u32 %s47, 1
        %s260 = scalar_lea.sflag [#allocation5], %s259
        %s261 = sand.u32 %s47, 1
        %s262 = smul.addr %s261, 160
        %s263 = scalar_lea.vmem [#allocation4], %s262
        // Predicated region
        $region37: #{deconv3d_block.1} parent=35 // pred_check
          %p264 = pneg %p60
        $region38: #{deconv3d_block.1} parent=35 // pred_check_branch
          %266 = sbr.rel (%p264) target = $region40
        $region39: #{deconv3d_block.1} parent=35 // pred_region
          %267 = dma.done %s260, 2560
        $region40: #{deconv3d_block.1} parent=35 // pred_fallthru
          _
        %s268 = sand.u32 %s25, 1
        %s269 = scalar_lea.sflag [#allocation8], %s268
        %s270 = sand.u32 %s77, 1
        %s271 = smul.addr %s270, 160
        %s272 = scalar_lea.vmem [#allocation7], %s271
        // Predicated region
        $region41: #{deconv3d_block.1} parent=35 // pred_check
          %p273 = pneg %p90
        $region42: #{deconv3d_block.1} parent=35 // pred_check_branch
          %275 = sbr.rel (%p273) target = $region44
        $region43: #{deconv3d_block.1} parent=35 // pred_region
          %276 = dma.done %s269, 2560
        $region44: #{deconv3d_block.1} parent=35 // pred_fallthru
          _
        // Predicated region
        $region45: #{deconv3d_block.1} parent=35 // pred_check
          %p277 = pneg %p111
        $region46: #{deconv3d_block.1} parent=35 // pred_check_branch
          %279 = sbr.rel (%p277) target = $region48
        $region47: #{deconv3d_block.1} parent=35 // pred_region
          %280 = dma.done [#allocation8], 2304
        $region48: #{deconv3d_block.1} parent=35 // pred_fallthru
          _
        // Predicated region
        $region49: #{deconv3d_block.1} parent=35 // pred_check
          %p281 = pneg %p132
        $region50: #{deconv3d_block.1} parent=35 // pred_check_branch
          %283 = sbr.rel (%p281) target = $region52
        $region51: #{deconv3d_block.1} parent=35 // pred_region
          %284 = dma.done [#allocation11], 16
        $region52: #{deconv3d_block.1} parent=35 // pred_fallthru
          _
        %s285 = sand.u32 %s47, 1
        %s286 = scalar_lea.sflag [#allocation5], %s285
        %s287 = sand.u32 %s47, 1
        %s288 = smul.addr %s287, 160
        %s289 = scalar_lea.vmem [#allocation4], %s288
        %p290 = pneg %p60
        %p291 = pneg %p57
        %s292 = sand.u32 %s25, 1
        %s293 = scalar_lea.sflag [#allocation8], %s292
        %s294 = sand.u32 %s77, 1
        %s295 = smul.addr %s294, 160
        %s296 = scalar_lea.vmem [#allocation7], %s295
        %p297 = pneg %p90
        %p298 = pneg %p87
        %p299 = pneg %p111
        %p300 = pneg %p108
        %p301 = pneg %p132
        %p302 = pneg %p129
        %p303 = pneg %p160
        %p304 = pneg %p157
        %s305 = sand.u32 %s147, 1
        %s306 = scalar_lea.sflag [#allocation6], %s305
        %s307 = sand.u32 %s147, 1
        %s308 = smul.addr %s307, 128
        %s309 = scalar_lea.vmem [#allocation12], %s308
        %s310 = smul.u32 2, %s30
        %s311 = sadd.s32 %s30, 1
        %s312 = smul.u32 2, %s311
        %s313 = smul.u32 16, %s30
        %v315 = vld [vmem:[#allocation10] sm:$0x1]
        %v317 = vlaneseq
        %v318 = vshrl.u32 %v317, 7
        %v319 = vsub.s32 0, %v318
        %v320 = vrot.slane %v315, %v319
        %vm322 = vcmask 261120
        %323 = vst.msk [vmem:[#allocation3] sm:$0xff] %vm322, %v320
        %324 = vst.msk [vmem:[#allocation3 + $0x8] sm:$0xff] %vm322, %v320
        %325 = vst.msk [vmem:[#allocation3 + $0x10] sm:$0xff] %vm322, %v320
        %326 = vst.msk [vmem:[#allocation3 + $0x18] sm:$0xff] %vm322, %v320
        %327 = vst.msk [vmem:[#allocation3 + $0x20] sm:$0xff] %vm322, %v320
        %328 = vst.msk [vmem:[#allocation3 + $0x28] sm:$0xff] %vm322, %v320
        %329 = vst.msk [vmem:[#allocation3 + $0x30] sm:$0xff] %vm322, %v320
        %330 = vst.msk [vmem:[#allocation3 + $0x38] sm:$0xff] %vm322, %v320
        %331 = vst.msk [vmem:[#allocation3 + $0x40] sm:$0xff] %vm322, %v320
        %332 = vst.msk [vmem:[#allocation3 + $0x48] sm:$0xff] %vm322, %v320
        %333 = vst.msk [vmem:[#allocation3 + $0x50] sm:$0xff] %vm322, %v320
        %334 = vst.msk [vmem:[#allocation3 + $0x58] sm:$0xff] %vm322, %v320
        %335 = vst.msk [vmem:[#allocation3 + $0x60] sm:$0xff] %vm322, %v320
        %336 = vst.msk [vmem:[#allocation3 + $0x68] sm:$0xff] %vm322, %v320
        %337 = vst.msk [vmem:[#allocation3 + $0x70] sm:$0xff] %vm322, %v320
        %338 = vst.msk [vmem:[#allocation3 + $0x78] sm:$0xff] %vm322, %v320
        %v339 = vld [vmem:[%s263] sm:$0xf]
        %v340 = vld [vmem:[%s263 + $0x8] sm:$0xf]
        %v341 = vld [vmem:[%s263 + $0x10] sm:$0xf]
        %v342 = vld [vmem:[%s263 + $0x18] sm:$0xf]
        %v343 = vld [vmem:[%s263 + $0x20] sm:$0xf]
        %v344 = vld [vmem:[%s263 + $0x28] sm:$0xf]
        %v345 = vld [vmem:[%s263 + $0x30] sm:$0xf]
        %v346 = vld [vmem:[%s263 + $0x38] sm:$0xf]
        %v355 = vunpack.c.l.b16 %v339
        %v356 = vunpack.c.l.b16 %v340
        %v357 = vunpack.c.l.b16 %v341
        %v358 = vunpack.c.l.b16 %v342
        %v359 = vunpack.c.l.b16 %v343
        %v360 = vunpack.c.l.b16 %v344
        %v361 = vunpack.c.l.b16 %v345
        %v362 = vunpack.c.l.b16 %v346
        %v363 = vpack.c.b16 %v356, %v355
        %v364 = vpack.c.b16 %v358, %v357
        %v365 = vpack.c.b16 %v360, %v359
        %v366 = vpack.c.b16 %v362, %v361
        %vm371 = vcmask 64512
        %372 = vst.msk [vmem:[#allocation2] sm:$0xff] %vm371, %v363
        %373 = vst.msk [vmem:[#allocation2 + $0x8] sm:$0xff] %vm371, %v364
        %374 = vst.msk [vmem:[#allocation2 + $0x10] sm:$0xff] %vm371, %v365
        %375 = vst.msk [vmem:[#allocation2 + $0x18] sm:$0xff] %vm371, %v366
        %v376 = vld [vmem:[%s263] sm:$0xf]
        %v377 = vld [vmem:[%s263 + $0x4] sm:$0x1]
        %v378 = vld [vmem:[%s263 + $0x8] sm:$0xf]
        %v379 = vld [vmem:[%s263 + $0xc] sm:$0x1]
        %v380 = vld [vmem:[%s263 + $0x10] sm:$0xf]
        %v381 = vld [vmem:[%s263 + $0x14] sm:$0x1]
        %v382 = vld [vmem:[%s263 + $0x18] sm:$0xf]
        %v383 = vld [vmem:[%s263 + $0x1c] sm:$0x1]
        %v384 = vld [vmem:[%s263 + $0x20] sm:$0xf]
        %v385 = vld [vmem:[%s263 + $0x24] sm:$0x1]
        %v386 = vld [vmem:[%s263 + $0x28] sm:$0xf]
        %v387 = vld [vmem:[%s263 + $0x2c] sm:$0x1]
        %v388 = vld [vmem:[%s263 + $0x30] sm:$0xf]
        %v389 = vld [vmem:[%s263 + $0x34] sm:$0x1]
        %v390 = vld [vmem:[%s263 + $0x38] sm:$0xf]
        %v391 = vld [vmem:[%s263 + $0x3c] sm:$0x1]
        %vm392 = vsmask.f32 3328
        %vm393 = vsmask.f32 7440
        %vm394 = vmor %vm392, %vm393
        %v396 = vshrl.u32 %v376, 16
        %v398 = vrot.slane %v396, 4
        %v399 = vshll.u32 %v376, 16
        %v401 = vrot.slane %v399, 5
        %v402 = vor.u32 %v398, %v401
        %v403 = vrot.slane %v402, 4
        %v405 = vshll.u32 %v377, 16
        %v407 = vrot.slane %v405, 5
        %v408 = vsel %vm394, %v403, %v407
        %v410 = vshrl.u32 %v378, 16
        %v412 = vrot.slane %v410, 4
        %v413 = vshll.u32 %v378, 16
        %v415 = vrot.slane %v413, 5
        %v416 = vor.u32 %v412, %v415
        %v417 = vrot.slane %v416, 4
        %v419 = vshll.u32 %v379, 16
        %v421 = vrot.slane %v419, 5
        %v422 = vsel %vm394, %v417, %v421
        %v424 = vshrl.u32 %v380, 16
        %v426 = vrot.slane %v424, 4
        %v427 = vshll.u32 %v380, 16
        %v429 = vrot.slane %v427, 5
        %v430 = vor.u32 %v426, %v429
        %v431 = vrot.slane %v430, 4
        %v433 = vshll.u32 %v381, 16
        %v435 = vrot.slane %v433, 5
        %v436 = vsel %vm394, %v431, %v435
        %v438 = vshrl.u32 %v382, 16
        %v440 = vrot.slane %v438, 4
        %v441 = vshll.u32 %v382, 16
        %v443 = vrot.slane %v441, 5
        %v444 = vor.u32 %v440, %v443
        %v445 = vrot.slane %v444, 4
        %v447 = vshll.u32 %v383, 16
        %v449 = vrot.slane %v447, 5
        %v450 = vsel %vm394, %v445, %v449
        %v452 = vshrl.u32 %v384, 16
        %v454 = vrot.slane %v452, 4
        %v455 = vshll.u32 %v384, 16
        %v457 = vrot.slane %v455, 5
        %v458 = vor.u32 %v454, %v457
        %v459 = vrot.slane %v458, 4
        %v461 = vshll.u32 %v385, 16
        %v463 = vrot.slane %v461, 5
        %v464 = vsel %vm394, %v459, %v463
        %v466 = vshrl.u32 %v386, 16
        %v468 = vrot.slane %v466, 4
        %v469 = vshll.u32 %v386, 16
        %v471 = vrot.slane %v469, 5
        %v472 = vor.u32 %v468, %v471
        %v473 = vrot.slane %v472, 4
        %v475 = vshll.u32 %v387, 16
        %v477 = vrot.slane %v475, 5
        %v478 = vsel %vm394, %v473, %v477
        %v480 = vshrl.u32 %v388, 16
        %v482 = vrot.slane %v480, 4
        %v483 = vshll.u32 %v388, 16
        %v485 = vrot.slane %v483, 5
        %v486 = vor.u32 %v482, %v485
        %v487 = vrot.slane %v486, 4
        %v489 = vshll.u32 %v389, 16
        %v491 = vrot.slane %v489, 5
        %v492 = vsel %vm394, %v487, %v491
        %v494 = vshrl.u32 %v390, 16
        %v496 = vrot.slane %v494, 4
        %v497 = vshll.u32 %v390, 16
        %v499 = vrot.slane %v497, 5
        %v500 = vor.u32 %v496, %v499
        %v501 = vrot.slane %v500, 4
        %v503 = vshll.u32 %v391, 16
        %v505 = vrot.slane %v503, 5
        %v506 = vsel %vm394, %v501, %v505
        %v507 = vunpack.c.l.b16 %v408
        %v508 = vunpack.c.l.b16 %v422
        %v509 = vunpack.c.l.b16 %v436
        %v510 = vunpack.c.l.b16 %v450
        %v511 = vunpack.c.l.b16 %v464
        %v512 = vunpack.c.l.b16 %v478
        %v513 = vunpack.c.l.b16 %v492
        %v514 = vunpack.c.l.b16 %v506
        %v515 = vpack.c.b16 %v508, %v507
        %v516 = vpack.c.b16 %v510, %v509
        %v517 = vpack.c.b16 %v512, %v511
        %v518 = vpack.c.b16 %v514, %v513
        %519 = vrot.lane.b32.xlu0 %v515, 8
        %v520 = vpop.permute.xlu0 %519
        %521 = vrot.lane.b32.xlu0 %v516, 8
        %v522 = vpop.permute.xlu0 %521
        %523 = vrot.lane.b32.xlu0 %v517, 8
        %v524 = vpop.permute.xlu0 %523
        %525 = vrot.lane.b32.xlu0 %v518, 8
        %v526 = vpop.permute.xlu0 %525
        %vm531 = vcmask 130112
        %532 = vst.msk [vmem:[#allocation2] sm:$0xff] %vm531, %v520
        %533 = vst.msk [vmem:[#allocation2 + $0x8] sm:$0xff] %vm531, %v522
        %534 = vst.msk [vmem:[#allocation2 + $0x10] sm:$0xff] %vm531, %v524
        %535 = vst.msk [vmem:[#allocation2 + $0x18] sm:$0xff] %vm531, %v526
        %v536 = vld [vmem:[%s263] sm:$0xe]
        %v537 = vld [vmem:[%s263 + $0x4] sm:$0x1]
        %v538 = vld [vmem:[%s263 + $0x8] sm:$0xe]
        %v539 = vld [vmem:[%s263 + $0xc] sm:$0x1]
        %v540 = vld [vmem:[%s263 + $0x10] sm:$0xe]
        %v541 = vld [vmem:[%s263 + $0x14] sm:$0x1]
        %v542 = vld [vmem:[%s263 + $0x18] sm:$0xe]
        %v543 = vld [vmem:[%s263 + $0x1c] sm:$0x1]
        %v544 = vld [vmem:[%s263 + $0x20] sm:$0xe]
        %v545 = vld [vmem:[%s263 + $0x24] sm:$0x1]
        %v546 = vld [vmem:[%s263 + $0x28] sm:$0xe]
        %v547 = vld [vmem:[%s263 + $0x2c] sm:$0x1]
        %v548 = vld [vmem:[%s263 + $0x30] sm:$0xe]
        %v549 = vld [vmem:[%s263 + $0x34] sm:$0x1]
        %v550 = vld [vmem:[%s263 + $0x38] sm:$0xe]
        %v551 = vld [vmem:[%s263 + $0x3c] sm:$0x1]
        %vm568 = vcmask 1042432
        %vm569 = vcmask 1046532
        %vm570 = vmor %vm568, %vm569
        %v571 = vrot.slane %v536, 5
        %v572 = vrot.slane %v571, 4
        %v573 = vrot.slane %v537, 5
        %v574 = vsel %vm570, %v572, %v573
        %v575 = vrot.slane %v538, 5
        %v576 = vrot.slane %v575, 4
        %v577 = vrot.slane %v539, 5
        %v578 = vsel %vm570, %v576, %v577
        %v579 = vrot.slane %v540, 5
        %v580 = vrot.slane %v579, 4
        %v581 = vrot.slane %v541, 5
        %v582 = vsel %vm570, %v580, %v581
        %v583 = vrot.slane %v542, 5
        %v584 = vrot.slane %v583, 4
        %v585 = vrot.slane %v543, 5
        %v586 = vsel %vm570, %v584, %v585
        %v587 = vrot.slane %v544, 5
        %v588 = vrot.slane %v587, 4
        %v589 = vrot.slane %v545, 5
        %v590 = vsel %vm570, %v588, %v589
        %v591 = vrot.slane %v546, 5
        %v592 = vrot.slane %v591, 4
        %v593 = vrot.slane %v547, 5
        %v594 = vsel %vm570, %v592, %v593
        %v595 = vrot.slane %v548, 5
        %v596 = vrot.slane %v595, 4
        %v597 = vrot.slane %v549, 5
        %v598 = vsel %vm570, %v596, %v597
        %v599 = vrot.slane %v550, 5
        %v600 = vrot.slane %v599, 4
        %v601 = vrot.slane %v551, 5
        %v602 = vsel %vm570, %v600, %v601
        %v603 = vunpack.c.l.b16 %v574
        %v604 = vunpack.c.l.b16 %v578
        %v605 = vunpack.c.l.b16 %v582
        %v606 = vunpack.c.l.b16 %v586
        %v607 = vunpack.c.l.b16 %v590
        %v608 = vunpack.c.l.b16 %v594
        %v609 = vunpack.c.l.b16 %v598
        %v610 = vunpack.c.l.b16 %v602
        %v611 = vpack.c.b16 %v604, %v603
        %v612 = vpack.c.b16 %v606, %v605
        %v613 = vpack.c.b16 %v608, %v607
        %v614 = vpack.c.b16 %v610, %v609
        %615 = vrot.lane.b32.xlu0 %v611, 16
        %v616 = vpop.permute.xlu0 %615
        %617 = vrot.lane.b32.xlu0 %v612, 16
        %v618 = vpop.permute.xlu0 %617
        %619 = vrot.lane.b32.xlu0 %v613, 16
        %v620 = vpop.permute.xlu0 %619
        %621 = vrot.lane.b32.xlu0 %v614, 16
        %v622 = vpop.permute.xlu0 %621
        %vm627 = vcmask 195712
        %628 = vst.msk [vmem:[#allocation2] sm:$0xff] %vm627, %v616
        %629 = vst.msk [vmem:[#allocation2 + $0x8] sm:$0xff] %vm627, %v618
        %630 = vst.msk [vmem:[#allocation2 + $0x10] sm:$0xff] %vm627, %v620
        %631 = vst.msk [vmem:[#allocation2 + $0x18] sm:$0xff] %vm627, %v622
        %s632 = scalar_lea.vmem %s263, 8 [#allocation4]
        %v633 = vld [vmem:[%s632] sm:$0xf]
        %v634 = vld [vmem:[%s632 + $0x8] sm:$0xf]
        %v635 = vld [vmem:[%s632 + $0x10] sm:$0xf]
        %v636 = vld [vmem:[%s632 + $0x18] sm:$0xf]
        %v637 = vld [vmem:[%s632 + $0x20] sm:$0xf]
        %v638 = vld [vmem:[%s632 + $0x28] sm:$0xf]
        %v639 = vld [vmem:[%s632 + $0x30] sm:$0xf]
        %v640 = vld [vmem:[%s632 + $0x38] sm:$0xf]
        %v649 = vunpack.c.l.b16 %v633
        %v650 = vunpack.c.l.b16 %v634
        %v651 = vunpack.c.l.b16 %v635
        %v652 = vunpack.c.l.b16 %v636
        %v653 = vunpack.c.l.b16 %v637
        %v654 = vunpack.c.l.b16 %v638
        %v655 = vunpack.c.l.b16 %v639
        %v656 = vunpack.c.l.b16 %v640
        %v657 = vpack.c.b16 %v650, %v649
        %v658 = vpack.c.b16 %v652, %v651
        %v659 = vpack.c.b16 %v654, %v653
        %v660 = vpack.c.b16 %v656, %v655
        %661 = vrot.lane.b32.xlu0 %v657, 24
        %v662 = vpop.permute.xlu0 %661
        %663 = vrot.lane.b32.xlu0 %v658, 24
        %v664 = vpop.permute.xlu0 %663
        %665 = vrot.lane.b32.xlu0 %v659, 24
        %v666 = vpop.permute.xlu0 %665
        %667 = vrot.lane.b32.xlu0 %v660, 24
        %v668 = vpop.permute.xlu0 %667
        %vm673 = vcmask 261312
        %674 = vst.msk [vmem:[#allocation2] sm:$0xff] %vm673, %v662
        %675 = vst.msk [vmem:[#allocation2 + $0x8] sm:$0xff] %vm673, %v664
        %676 = vst.msk [vmem:[#allocation2 + $0x10] sm:$0xff] %vm673, %v666
        %677 = vst.msk [vmem:[#allocation2 + $0x18] sm:$0xff] %vm673, %v668
        %v678 = vld [vmem:[%s632] sm:$0xf]
        %v679 = vld [vmem:[%s632 + $0x4] sm:$0x1]
        %v680 = vld [vmem:[%s632 + $0x8] sm:$0xf]
        %v681 = vld [vmem:[%s632 + $0xc] sm:$0x1]
        %v682 = vld [vmem:[%s632 + $0x10] sm:$0xf]
        %v683 = vld [vmem:[%s632 + $0x14] sm:$0x1]
        %v684 = vld [vmem:[%s632 + $0x18] sm:$0xf]
        %v685 = vld [vmem:[%s632 + $0x1c] sm:$0x1]
        %v686 = vld [vmem:[%s632 + $0x20] sm:$0xf]
        %v687 = vld [vmem:[%s632 + $0x24] sm:$0x1]
        %v688 = vld [vmem:[%s632 + $0x28] sm:$0xf]
        %v689 = vld [vmem:[%s632 + $0x2c] sm:$0x1]
        %v690 = vld [vmem:[%s632 + $0x30] sm:$0xf]
        %v691 = vld [vmem:[%s632 + $0x34] sm:$0x1]
        %v692 = vld [vmem:[%s632 + $0x38] sm:$0xf]
        %v693 = vld [vmem:[%s632 + $0x3c] sm:$0x1]
        %v695 = vshrl.u32 %v678, 16
        %v697 = vrot.slane %v695, 4
        %v698 = vshll.u32 %v678, 16
        %v700 = vrot.slane %v698, 5
        %v701 = vor.u32 %v697, %v700
        %v702 = vrot.slane %v701, 4
        %v704 = vshll.u32 %v679, 16
        %v706 = vrot.slane %v704, 5
        %v707 = vsel %vm394, %v702, %v706
        %v709 = vshrl.u32 %v680, 16
        %v711 = vrot.slane %v709, 4
        %v712 = vshll.u32 %v680, 16
        %v714 = vrot.slane %v712, 5
        %v715 = vor.u32 %v711, %v714
        %v716 = vrot.slane %v715, 4
        %v718 = vshll.u32 %v681, 16
        %v720 = vrot.slane %v718, 5
        %v721 = vsel %vm394, %v716, %v720
        %v723 = vshrl.u32 %v682, 16
        %v725 = vrot.slane %v723, 4
        %v726 = vshll.u32 %v682, 16
        %v728 = vrot.slane %v726, 5
        %v729 = vor.u32 %v725, %v728
        %v730 = vrot.slane %v729, 4
        %v732 = vshll.u32 %v683, 16
        %v734 = vrot.slane %v732, 5
        %v735 = vsel %vm394, %v730, %v734
        %v737 = vshrl.u32 %v684, 16
        %v739 = vrot.slane %v737, 4
        %v740 = vshll.u32 %v684, 16
        %v742 = vrot.slane %v740, 5
        %v743 = vor.u32 %v739, %v742
        %v744 = vrot.slane %v743, 4
        %v746 = vshll.u32 %v685, 16
        %v748 = vrot.slane %v746, 5
        %v749 = vsel %vm394, %v744, %v748
        %v751 = vshrl.u32 %v686, 16
        %v753 = vrot.slane %v751, 4
        %v754 = vshll.u32 %v686, 16
        %v756 = vrot.slane %v754, 5
        %v757 = vor.u32 %v753, %v756
        %v758 = vrot.slane %v757, 4
        %v760 = vshll.u32 %v687, 16
        %v762 = vrot.slane %v760, 5
        %v763 = vsel %vm394, %v758, %v762
        %v765 = vshrl.u32 %v688, 16
        %v767 = vrot.slane %v765, 4
        %v768 = vshll.u32 %v688, 16
        %v770 = vrot.slane %v768, 5
        %v771 = vor.u32 %v767, %v770
        %v772 = vrot.slane %v771, 4
        %v774 = vshll.u32 %v689, 16
        %v776 = vrot.slane %v774, 5
        %v777 = vsel %vm394, %v772, %v776
        %v779 = vshrl.u32 %v690, 16
        %v781 = vrot.slane %v779, 4
        %v782 = vshll.u32 %v690, 16
        %v784 = vrot.slane %v782, 5
        %v785 = vor.u32 %v781, %v784
        %v786 = vrot.slane %v785, 4
        %v788 = vshll.u32 %v691, 16
        %v790 = vrot.slane %v788, 5
        %v791 = vsel %vm394, %v786, %v790
        %v793 = vshrl.u32 %v692, 16
        %v795 = vrot.slane %v793, 4
        %v796 = vshll.u32 %v692, 16
        %v798 = vrot.slane %v796, 5
        %v799 = vor.u32 %v795, %v798
        %v800 = vrot.slane %v799, 4
        %v802 = vshll.u32 %v693, 16
        %v804 = vrot.slane %v802, 5
        %v805 = vsel %vm394, %v800, %v804
        %v806 = vunpack.c.l.b16 %v707
        %v807 = vunpack.c.l.b16 %v721
        %v808 = vunpack.c.l.b16 %v735
        %v809 = vunpack.c.l.b16 %v749
        %v810 = vunpack.c.l.b16 %v763
        %v811 = vunpack.c.l.b16 %v777
        %v812 = vunpack.c.l.b16 %v791
        %v813 = vunpack.c.l.b16 %v805
        %v814 = vpack.c.b16 %v807, %v806
        %v815 = vpack.c.b16 %v809, %v808
        %v816 = vpack.c.b16 %v811, %v810
        %v817 = vpack.c.b16 %v813, %v812
        %818 = vrot.lane.b32.xlu0 %v814, 32
        %v819 = vpop.permute.xlu0 %818
        %820 = vrot.lane.b32.xlu0 %v815, 32
        %v821 = vpop.permute.xlu0 %820
        %822 = vrot.lane.b32.xlu0 %v816, 32
        %v823 = vpop.permute.xlu0 %822
        %824 = vrot.lane.b32.xlu0 %v817, 32
        %v825 = vpop.permute.xlu0 %824
        %vm830 = vcmask 326912
        %831 = vst.msk [vmem:[#allocation2] sm:$0xff] %vm830, %v819
        %832 = vst.msk [vmem:[#allocation2 + $0x8] sm:$0xff] %vm830, %v821
        %833 = vst.msk [vmem:[#allocation2 + $0x10] sm:$0xff] %vm830, %v823
        %834 = vst.msk [vmem:[#allocation2 + $0x18] sm:$0xff] %vm830, %v825
        %v835 = vld [vmem:[%s632] sm:$0xe]
        %v836 = vld [vmem:[%s632 + $0x4] sm:$0x1]
        %v837 = vld [vmem:[%s632 + $0x8] sm:$0xe]
        %v838 = vld [vmem:[%s632 + $0xc] sm:$0x1]
        %v839 = vld [vmem:[%s632 + $0x10] sm:$0xe]
        %v840 = vld [vmem:[%s632 + $0x14] sm:$0x1]
        %v841 = vld [vmem:[%s632 + $0x18] sm:$0xe]
        %v842 = vld [vmem:[%s632 + $0x1c] sm:$0x1]
        %v843 = vld [vmem:[%s632 + $0x20] sm:$0xe]
        %v844 = vld [vmem:[%s632 + $0x24] sm:$0x1]
        %v845 = vld [vmem:[%s632 + $0x28] sm:$0xe]
        %v846 = vld [vmem:[%s632 + $0x2c] sm:$0x1]
        %v847 = vld [vmem:[%s632 + $0x30] sm:$0xe]
        %v848 = vld [vmem:[%s632 + $0x34] sm:$0x1]
        %v849 = vld [vmem:[%s632 + $0x38] sm:$0xe]
        %v850 = vld [vmem:[%s632 + $0x3c] sm:$0x1]
        %v867 = vrot.slane %v835, 5
        %v868 = vrot.slane %v867, 4
        %v869 = vrot.slane %v836, 5
        %v870 = vsel %vm570, %v868, %v869
        %v871 = vrot.slane %v837, 5
        %v872 = vrot.slane %v871, 4
        %v873 = vrot.slane %v838, 5
        %v874 = vsel %vm570, %v872, %v873
        %v875 = vrot.slane %v839, 5
        %v876 = vrot.slane %v875, 4
        %v877 = vrot.slane %v840, 5
        %v878 = vsel %vm570, %v876, %v877
        %v879 = vrot.slane %v841, 5
        %v880 = vrot.slane %v879, 4
        %v881 = vrot.slane %v842, 5
        %v882 = vsel %vm570, %v880, %v881
        %v883 = vrot.slane %v843, 5
        %v884 = vrot.slane %v883, 4
        %v885 = vrot.slane %v844, 5
        %v886 = vsel %vm570, %v884, %v885
        %v887 = vrot.slane %v845, 5
        %v888 = vrot.slane %v887, 4
        %v889 = vrot.slane %v846, 5
        %v890 = vsel %vm570, %v888, %v889
        %v891 = vrot.slane %v847, 5
        %v892 = vrot.slane %v891, 4
        %v893 = vrot.slane %v848, 5
        %v894 = vsel %vm570, %v892, %v893
        %v895 = vrot.slane %v849, 5
        %v896 = vrot.slane %v895, 4
        %v897 = vrot.slane %v850, 5
        %v898 = vsel %vm570, %v896, %v897
        %v899 = vunpack.c.l.b16 %v870
        %v900 = vunpack.c.l.b16 %v874
        %v901 = vunpack.c.l.b16 %v878
        %v902 = vunpack.c.l.b16 %v882
        %v903 = vunpack.c.l.b16 %v886
        %v904 = vunpack.c.l.b16 %v890
        %v905 = vunpack.c.l.b16 %v894
        %v906 = vunpack.c.l.b16 %v898
        %v907 = vpack.c.b16 %v900, %v899
        %v908 = vpack.c.b16 %v902, %v901
        %v909 = vpack.c.b16 %v904, %v903
        %v910 = vpack.c.b16 %v906, %v905
        %911 = vrot.lane.b32.xlu0 %v907, 40
        %v912 = vpop.permute.xlu0 %911
        %913 = vrot.lane.b32.xlu0 %v908, 40
        %v914 = vpop.permute.xlu0 %913
        %915 = vrot.lane.b32.xlu0 %v909, 40
        %v916 = vpop.permute.xlu0 %915
        %917 = vrot.lane.b32.xlu0 %v910, 40
        %v918 = vpop.permute.xlu0 %917
        %vm923 = vcmask 392512
        %924 = vst.msk [vmem:[#allocation2] sm:$0xff] %vm923, %v912
        %925 = vst.msk [vmem:[#allocation2 + $0x8] sm:$0xff] %vm923, %v914
        %926 = vst.msk [vmem:[#allocation2 + $0x10] sm:$0xff] %vm923, %v916
        %927 = vst.msk [vmem:[#allocation2 + $0x18] sm:$0xff] %vm923, %v918
        %s928 = scalar_lea.vmem %s263, 16 [#allocation4]
        %v929 = vld [vmem:[%s928] sm:$0xf]
        %v930 = vld [vmem:[%s928 + $0x8] sm:$0xf]
        %v931 = vld [vmem:[%s928 + $0x10] sm:$0xf]
        %v932 = vld [vmem:[%s928 + $0x18] sm:$0xf]
        %v933 = vld [vmem:[%s928 + $0x20] sm:$0xf]
        %v934 = vld [vmem:[%s928 + $0x28] sm:$0xf]
        %v935 = vld [vmem:[%s928 + $0x30] sm:$0xf]
        %v936 = vld [vmem:[%s928 + $0x38] sm:$0xf]
        %v945 = vunpack.c.l.b16 %v929
        %v946 = vunpack.c.l.b16 %v930
        %v947 = vunpack.c.l.b16 %v931
        %v948 = vunpack.c.l.b16 %v932
        %v949 = vunpack.c.l.b16 %v933
        %v950 = vunpack.c.l.b16 %v934
        %v951 = vunpack.c.l.b16 %v935
        %v952 = vunpack.c.l.b16 %v936
        %v953 = vpack.c.b16 %v946, %v945
        %v954 = vpack.c.b16 %v948, %v947
        %v955 = vpack.c.b16 %v950, %v949
        %v956 = vpack.c.b16 %v952, %v951
        %957 = vrot.lane.b32.xlu0 %v953, 48
        %v958 = vpop.permute.xlu0 %957
        %959 = vrot.lane.b32.xlu0 %v954, 48
        %v960 = vpop.permute.xlu0 %959
        %961 = vrot.lane.b32.xlu0 %v955, 48
        %v962 = vpop.permute.xlu0 %961
        %963 = vrot.lane.b32.xlu0 %v956, 48
        %v964 = vpop.permute.xlu0 %963
        %vm969 = vcmask 458112
        %970 = vst.msk [vmem:[#allocation2] sm:$0xff] %vm969, %v958
        %971 = vst.msk [vmem:[#allocation2 + $0x8] sm:$0xff] %vm969, %v960
        %972 = vst.msk [vmem:[#allocation2 + $0x10] sm:$0xff] %vm969, %v962
        %973 = vst.msk [vmem:[#allocation2 + $0x18] sm:$0xff] %vm969, %v964
        %v974 = vld [vmem:[%s928] sm:$0xf]
        %v975 = vld [vmem:[%s928 + $0x4] sm:$0x1]
        %v976 = vld [vmem:[%s928 + $0x8] sm:$0xf]
        %v977 = vld [vmem:[%s928 + $0xc] sm:$0x1]
        %v978 = vld [vmem:[%s928 + $0x10] sm:$0xf]
        %v979 = vld [vmem:[%s928 + $0x14] sm:$0x1]
        %v980 = vld [vmem:[%s928 + $0x18] sm:$0xf]
        %v981 = vld [vmem:[%s928 + $0x1c] sm:$0x1]
        %v982 = vld [vmem:[%s928 + $0x20] sm:$0xf]
        %v983 = vld [vmem:[%s928 + $0x24] sm:$0x1]
        %v984 = vld [vmem:[%s928 + $0x28] sm:$0xf]
        %v985 = vld [vmem:[%s928 + $0x2c] sm:$0x1]
        %v986 = vld [vmem:[%s928 + $0x30] sm:$0xf]
        %v987 = vld [vmem:[%s928 + $0x34] sm:$0x1]
        %v988 = vld [vmem:[%s928 + $0x38] sm:$0xf]
        %v989 = vld [vmem:[%s928 + $0x3c] sm:$0x1]
        %v991 = vshrl.u32 %v974, 16
        %v993 = vrot.slane %v991, 4
        %v994 = vshll.u32 %v974, 16
        %v996 = vrot.slane %v994, 5
        %v997 = vor.u32 %v993, %v996
        %v998 = vrot.slane %v997, 4
        %v1000 = vshll.u32 %v975, 16
        %v1002 = vrot.slane %v1000, 5
        %v1003 = vsel %vm394, %v998, %v1002
        %v1005 = vshrl.u32 %v976, 16
        %v1007 = vrot.slane %v1005, 4
        %v1008 = vshll.u32 %v976, 16
        %v1010 = vrot.slane %v1008, 5
        %v1011 = vor.u32 %v1007, %v1010
        %v1012 = vrot.slane %v1011, 4
        %v1014 = vshll.u32 %v977, 16
        %v1016 = vrot.slane %v1014, 5
        %v1017 = vsel %vm394, %v1012, %v1016
        %v1019 = vshrl.u32 %v978, 16
        %v1021 = vrot.slane %v1019, 4
        %v1022 = vshll.u32 %v978, 16
        %v1024 = vrot.slane %v1022, 5
        %v1025 = vor.u32 %v1021, %v1024
        %v1026 = vrot.slane %v1025, 4
        %v1028 = vshll.u32 %v979, 16
        %v1030 = vrot.slane %v1028, 5
        %v1031 = vsel %vm394, %v1026, %v1030
        %v1033 = vshrl.u32 %v980, 16
        %v1035 = vrot.slane %v1033, 4
        %v1036 = vshll.u32 %v980, 16
        %v1038 = vrot.slane %v1036, 5
        %v1039 = vor.u32 %v1035, %v1038
        %v1040 = vrot.slane %v1039, 4
        %v1042 = vshll.u32 %v981, 16
        %v1044 = vrot.slane %v1042, 5
        %v1045 = vsel %vm394, %v1040, %v1044
        %v1047 = vshrl.u32 %v982, 16
        %v1049 = vrot.slane %v1047, 4
        %v1050 = vshll.u32 %v982, 16
        %v1052 = vrot.slane %v1050, 5
        %v1053 = vor.u32 %v1049, %v1052
        %v1054 = vrot.slane %v1053, 4
        %v1056 = vshll.u32 %v983, 16
        %v1058 = vrot.slane %v1056, 5
        %v1059 = vsel %vm394, %v1054, %v1058
        %v1061 = vshrl.u32 %v984, 16
        %v1063 = vrot.slane %v1061, 4
        %v1064 = vshll.u32 %v984, 16
        %v1066 = vrot.slane %v1064, 5
        %v1067 = vor.u32 %v1063, %v1066
        %v1068 = vrot.slane %v1067, 4
        %v1070 = vshll.u32 %v985, 16
        %v1072 = vrot.slane %v1070, 5
        %v1073 = vsel %vm394, %v1068, %v1072
        %v1075 = vshrl.u32 %v986, 16
        %v1077 = vrot.slane %v1075, 4
        %v1078 = vshll.u32 %v986, 16
        %v1080 = vrot.slane %v1078, 5
        %v1081 = vor.u32 %v1077, %v1080
        %v1082 = vrot.slane %v1081, 4
        %v1084 = vshll.u32 %v987, 16
        %v1086 = vrot.slane %v1084, 5
        %v1087 = vsel %vm394, %v1082, %v1086
        %v1089 = vshrl.u32 %v988, 16
        %v1091 = vrot.slane %v1089, 4
        %v1092 = vshll.u32 %v988, 16
        %v1094 = vrot.slane %v1092, 5
        %v1095 = vor.u32 %v1091, %v1094
        %v1096 = vrot.slane %v1095, 4
        %v1098 = vshll.u32 %v989, 16
        %v1100 = vrot.slane %v1098, 5
        %v1101 = vsel %vm394, %v1096, %v1100
        %v1102 = vunpack.c.l.b16 %v1003
        %v1103 = vunpack.c.l.b16 %v1017
        %v1104 = vunpack.c.l.b16 %v1031
        %v1105 = vunpack.c.l.b16 %v1045
        %v1106 = vunpack.c.l.b16 %v1059
        %v1107 = vunpack.c.l.b16 %v1073
        %v1108 = vunpack.c.l.b16 %v1087
        %v1109 = vunpack.c.l.b16 %v1101
        %v1110 = vpack.c.b16 %v1103, %v1102
        %v1111 = vpack.c.b16 %v1105, %v1104
        %v1112 = vpack.c.b16 %v1107, %v1106
        %v1113 = vpack.c.b16 %v1109, %v1108
        %1114 = vrot.lane.b32.xlu0 %v1110, 56
        %v1115 = vpop.permute.xlu0 %1114
        %1116 = vrot.lane.b32.xlu0 %v1111, 56
        %v1117 = vpop.permute.xlu0 %1116
        %1118 = vrot.lane.b32.xlu0 %v1112, 56
        %v1119 = vpop.permute.xlu0 %1118
        %1120 = vrot.lane.b32.xlu0 %v1113, 56
        %v1121 = vpop.permute.xlu0 %1120
        %vm1126 = vcmask 523712
        %1127 = vst.msk [vmem:[#allocation2] sm:$0xff] %vm1126, %v1115
        %1128 = vst.msk [vmem:[#allocation2 + $0x8] sm:$0xff] %vm1126, %v1117
        %1129 = vst.msk [vmem:[#allocation2 + $0x10] sm:$0xff] %vm1126, %v1119
        %1130 = vst.msk [vmem:[#allocation2 + $0x18] sm:$0xff] %vm1126, %v1121
        %v1131 = vld [vmem:[%s928] sm:$0xe]
        %v1132 = vld [vmem:[%s928 + $0x4] sm:$0x1]
        %v1133 = vld [vmem:[%s928 + $0x8] sm:$0xe]
        %v1134 = vld [vmem:[%s928 + $0xc] sm:$0x1]
        %v1135 = vld [vmem:[%s928 + $0x10] sm:$0xe]
        %v1136 = vld [vmem:[%s928 + $0x14] sm:$0x1]
        %v1137 = vld [vmem:[%s928 + $0x18] sm:$0xe]
        %v1138 = vld [vmem:[%s928 + $0x1c] sm:$0x1]
        %v1139 = vld [vmem:[%s928 + $0x20] sm:$0xe]
        %v1140 = vld [vmem:[%s928 + $0x24] sm:$0x1]
        %v1141 = vld [vmem:[%s928 + $0x28] sm:$0xe]
        %v1142 = vld [vmem:[%s928 + $0x2c] sm:$0x1]
        %v1143 = vld [vmem:[%s928 + $0x30] sm:$0xe]
        %v1144 = vld [vmem:[%s928 + $0x34] sm:$0x1]
        %v1145 = vld [vmem:[%s928 + $0x38] sm:$0xe]
        %v1146 = vld [vmem:[%s928 + $0x3c] sm:$0x1]
        %v1163 = vrot.slane %v1131, 5
        %v1164 = vrot.slane %v1163, 4
        %v1165 = vrot.slane %v1132, 5
        %v1166 = vsel %vm570, %v1164, %v1165
        %v1167 = vrot.slane %v1133, 5
        %v1168 = vrot.slane %v1167, 4
        %v1169 = vrot.slane %v1134, 5
        %v1170 = vsel %vm570, %v1168, %v1169
        %v1171 = vrot.slane %v1135, 5
        %v1172 = vrot.slane %v1171, 4
        %v1173 = vrot.slane %v1136, 5
        %v1174 = vsel %vm570, %v1172, %v1173
        %v1175 = vrot.slane %v1137, 5
        %v1176 = vrot.slane %v1175, 4
        %v1177 = vrot.slane %v1138, 5
        %v1178 = vsel %vm570, %v1176, %v1177
        %v1179 = vrot.slane %v1139, 5
        %v1180 = vrot.slane %v1179, 4
        %v1181 = vrot.slane %v1140, 5
        %v1182 = vsel %vm570, %v1180, %v1181
        %v1183 = vrot.slane %v1141, 5
        %v1184 = vrot.slane %v1183, 4
        %v1185 = vrot.slane %v1142, 5
        %v1186 = vsel %vm570, %v1184, %v1185
        %v1187 = vrot.slane %v1143, 5
        %v1188 = vrot.slane %v1187, 4
        %v1189 = vrot.slane %v1144, 5
        %v1190 = vsel %vm570, %v1188, %v1189
        %v1191 = vrot.slane %v1145, 5
        %v1192 = vrot.slane %v1191, 4
        %v1193 = vrot.slane %v1146, 5
        %v1194 = vsel %vm570, %v1192, %v1193
        %v1195 = vunpack.c.l.b16 %v1166
        %v1196 = vunpack.c.l.b16 %v1170
        %v1197 = vunpack.c.l.b16 %v1174
        %v1198 = vunpack.c.l.b16 %v1178
        %v1199 = vunpack.c.l.b16 %v1182
        %v1200 = vunpack.c.l.b16 %v1186
        %v1201 = vunpack.c.l.b16 %v1190
        %v1202 = vunpack.c.l.b16 %v1194
        %v1203 = vpack.c.b16 %v1196, %v1195
        %v1204 = vpack.c.b16 %v1198, %v1197
        %v1205 = vpack.c.b16 %v1200, %v1199
        %v1206 = vpack.c.b16 %v1202, %v1201
        %1207 = vrot.lane.b32.xlu0 %v1203, 64
        %v1208 = vpop.permute.xlu0 %1207
        %1209 = vrot.lane.b32.xlu0 %v1204, 64
        %v1210 = vpop.permute.xlu0 %1209
        %1211 = vrot.lane.b32.xlu0 %v1205, 64
        %v1212 = vpop.permute.xlu0 %1211
        %1213 = vrot.lane.b32.xlu0 %v1206, 64
        %v1214 = vpop.permute.xlu0 %1213
        %vm1219 = vcmask 589312
        %1220 = vst.msk [vmem:[#allocation2] sm:$0xff] %vm1219, %v1208
        %1221 = vst.msk [vmem:[#allocation2 + $0x8] sm:$0xff] %vm1219, %v1210
        %1222 = vst.msk [vmem:[#allocation2 + $0x10] sm:$0xff] %vm1219, %v1212
        %1223 = vst.msk [vmem:[#allocation2 + $0x18] sm:$0xff] %vm1219, %v1214
        %s1224 = scalar_lea.vmem %s263, 80 [#allocation4]
        %v1225 = vld [vmem:[%s1224] sm:$0xf]
        %v1226 = vld [vmem:[%s1224 + $0x8] sm:$0xf]
        %v1227 = vld [vmem:[%s1224 + $0x10] sm:$0xf]
        %v1228 = vld [vmem:[%s1224 + $0x18] sm:$0xf]
        %v1229 = vld [vmem:[%s1224 + $0x20] sm:$0xf]
        %v1230 = vld [vmem:[%s1224 + $0x28] sm:$0xf]
        %v1231 = vld [vmem:[%s1224 + $0x30] sm:$0xf]
        %v1232 = vld [vmem:[%s1224 + $0x38] sm:$0xf]
        %v1241 = vunpack.c.l.b16 %v1225
        %v1242 = vunpack.c.l.b16 %v1226
        %v1243 = vunpack.c.l.b16 %v1227
        %v1244 = vunpack.c.l.b16 %v1228
        %v1245 = vunpack.c.l.b16 %v1229
        %v1246 = vunpack.c.l.b16 %v1230
        %v1247 = vunpack.c.l.b16 %v1231
        %v1248 = vunpack.c.l.b16 %v1232
        %v1249 = vpack.c.b16 %v1242, %v1241
        %v1250 = vpack.c.b16 %v1244, %v1243
        %v1251 = vpack.c.b16 %v1246, %v1245
        %v1252 = vpack.c.b16 %v1248, %v1247
        %1257 = vst.msk [vmem:[#allocation2 + $0x20] sm:$0xff] %vm371, %v1249
        %1258 = vst.msk [vmem:[#allocation2 + $0x28] sm:$0xff] %vm371, %v1250
        %1259 = vst.msk [vmem:[#allocation2 + $0x30] sm:$0xff] %vm371, %v1251
        %1260 = vst.msk [vmem:[#allocation2 + $0x38] sm:$0xff] %vm371, %v1252
        %v1261 = vld [vmem:[%s1224] sm:$0xf]
        %v1262 = vld [vmem:[%s1224 + $0x4] sm:$0x1]
        %v1263 = vld [vmem:[%s1224 + $0x8] sm:$0xf]
        %v1264 = vld [vmem:[%s1224 + $0xc] sm:$0x1]
        %v1265 = vld [vmem:[%s1224 + $0x10] sm:$0xf]
        %v1266 = vld [vmem:[%s1224 + $0x14] sm:$0x1]
        %v1267 = vld [vmem:[%s1224 + $0x18] sm:$0xf]
        %v1268 = vld [vmem:[%s1224 + $0x1c] sm:$0x1]
        %v1269 = vld [vmem:[%s1224 + $0x20] sm:$0xf]
        %v1270 = vld [vmem:[%s1224 + $0x24] sm:$0x1]
        %v1271 = vld [vmem:[%s1224 + $0x28] sm:$0xf]
        %v1272 = vld [vmem:[%s1224 + $0x2c] sm:$0x1]
        %v1273 = vld [vmem:[%s1224 + $0x30] sm:$0xf]
        %v1274 = vld [vmem:[%s1224 + $0x34] sm:$0x1]
        %v1275 = vld [vmem:[%s1224 + $0x38] sm:$0xf]
        %v1276 = vld [vmem:[%s1224 + $0x3c] sm:$0x1]
        %v1278 = vshrl.u32 %v1261, 16
        %v1280 = vrot.slane %v1278, 4
        %v1281 = vshll.u32 %v1261, 16
        %v1283 = vrot.slane %v1281, 5
        %v1284 = vor.u32 %v1280, %v1283
        %v1285 = vrot.slane %v1284, 4
        %v1287 = vshll.u32 %v1262, 16
        %v1289 = vrot.slane %v1287, 5
        %v1290 = vsel %vm394, %v1285, %v1289
        %v1292 = vshrl.u32 %v1263, 16
        %v1294 = vrot.slane %v1292, 4
        %v1295 = vshll.u32 %v1263, 16
        %v1297 = vrot.slane %v1295, 5
        %v1298 = vor.u32 %v1294, %v1297
        %v1299 = vrot.slane %v1298, 4
        %v1301 = vshll.u32 %v1264, 16
        %v1303 = vrot.slane %v1301, 5
        %v1304 = vsel %vm394, %v1299, %v1303
        %v1306 = vshrl.u32 %v1265, 16
        %v1308 = vrot.slane %v1306, 4
        %v1309 = vshll.u32 %v1265, 16
        %v1311 = vrot.slane %v1309, 5
        %v1312 = vor.u32 %v1308, %v1311
        %v1313 = vrot.slane %v1312, 4
        %v1315 = vshll.u32 %v1266, 16
        %v1317 = vrot.slane %v1315, 5
        %v1318 = vsel %vm394, %v1313, %v1317
        %v1320 = vshrl.u32 %v1267, 16
        %v1322 = vrot.slane %v1320, 4
        %v1323 = vshll.u32 %v1267, 16
        %v1325 = vrot.slane %v1323, 5
        %v1326 = vor.u32 %v1322, %v1325
        %v1327 = vrot.slane %v1326, 4
        %v1329 = vshll.u32 %v1268, 16
        %v1331 = vrot.slane %v1329, 5
        %v1332 = vsel %vm394, %v1327, %v1331
        %v1334 = vshrl.u32 %v1269, 16
        %v1336 = vrot.slane %v1334, 4
        %v1337 = vshll.u32 %v1269, 16
        %v1339 = vrot.slane %v1337, 5
        %v1340 = vor.u32 %v1336, %v1339
        %v1341 = vrot.slane %v1340, 4
        %v1343 = vshll.u32 %v1270, 16
        %v1345 = vrot.slane %v1343, 5
        %v1346 = vsel %vm394, %v1341, %v1345
        %v1348 = vshrl.u32 %v1271, 16
        %v1350 = vrot.slane %v1348, 4
        %v1351 = vshll.u32 %v1271, 16
        %v1353 = vrot.slane %v1351, 5
        %v1354 = vor.u32 %v1350, %v1353
        %v1355 = vrot.slane %v1354, 4
        %v1357 = vshll.u32 %v1272, 16
        %v1359 = vrot.slane %v1357, 5
        %v1360 = vsel %vm394, %v1355, %v1359
        %v1362 = vshrl.u32 %v1273, 16
        %v1364 = vrot.slane %v1362, 4
        %v1365 = vshll.u32 %v1273, 16
        %v1367 = vrot.slane %v1365, 5
        %v1368 = vor.u32 %v1364, %v1367
        %v1369 = vrot.slane %v1368, 4
        %v1371 = vshll.u32 %v1274, 16
        %v1373 = vrot.slane %v1371, 5
        %v1374 = vsel %vm394, %v1369, %v1373
        %v1376 = vshrl.u32 %v1275, 16
        %v1378 = vrot.slane %v1376, 4
        %v1379 = vshll.u32 %v1275, 16
        %v1381 = vrot.slane %v1379, 5
        %v1382 = vor.u32 %v1378, %v1381
        %v1383 = vrot.slane %v1382, 4
        %v1385 = vshll.u32 %v1276, 16
        %v1387 = vrot.slane %v1385, 5
        %v1388 = vsel %vm394, %v1383, %v1387
        %v1389 = vunpack.c.l.b16 %v1290
        %v1390 = vunpack.c.l.b16 %v1304
        %v1391 = vunpack.c.l.b16 %v1318
        %v1392 = vunpack.c.l.b16 %v1332
        %v1393 = vunpack.c.l.b16 %v1346
        %v1394 = vunpack.c.l.b16 %v1360
        %v1395 = vunpack.c.l.b16 %v1374
        %v1396 = vunpack.c.l.b16 %v1388
        %v1397 = vpack.c.b16 %v1390, %v1389
        %v1398 = vpack.c.b16 %v1392, %v1391
        %v1399 = vpack.c.b16 %v1394, %v1393
        %v1400 = vpack.c.b16 %v1396, %v1395
        %1401 = vrot.lane.b32.xlu0 %v1397, 8
        %v1402 = vpop.permute.xlu0 %1401
        %1403 = vrot.lane.b32.xlu0 %v1398, 8
        %v1404 = vpop.permute.xlu0 %1403
        %1405 = vrot.lane.b32.xlu0 %v1399, 8
        %v1406 = vpop.permute.xlu0 %1405
        %1407 = vrot.lane.b32.xlu0 %v1400, 8
        %v1408 = vpop.permute.xlu0 %1407
        %1413 = vst.msk [vmem:[#allocation2 + $0x20] sm:$0xff] %vm531, %v1402
        %1414 = vst.msk [vmem:[#allocation2 + $0x28] sm:$0xff] %vm531, %v1404
        %1415 = vst.msk [vmem:[#allocation2 + $0x30] sm:$0xff] %vm531, %v1406
        %1416 = vst.msk [vmem:[#allocation2 + $0x38] sm:$0xff] %vm531, %v1408
        %v1417 = vld [vmem:[%s1224] sm:$0xe]
        %v1418 = vld [vmem:[%s1224 + $0x4] sm:$0x1]
        %v1419 = vld [vmem:[%s1224 + $0x8] sm:$0xe]
        %v1420 = vld [vmem:[%s1224 + $0xc] sm:$0x1]
        %v1421 = vld [vmem:[%s1224 + $0x10] sm:$0xe]
        %v1422 = vld [vmem:[%s1224 + $0x14] sm:$0x1]
        %v1423 = vld [vmem:[%s1224 + $0x18] sm:$0xe]
        %v1424 = vld [vmem:[%s1224 + $0x1c] sm:$0x1]
        %v1425 = vld [vmem:[%s1224 + $0x20] sm:$0xe]
        %v1426 = vld [vmem:[%s1224 + $0x24] sm:$0x1]
        %v1427 = vld [vmem:[%s1224 + $0x28] sm:$0xe]
        %v1428 = vld [vmem:[%s1224 + $0x2c] sm:$0x1]
        %v1429 = vld [vmem:[%s1224 + $0x30] sm:$0xe]
        %v1430 = vld [vmem:[%s1224 + $0x34] sm:$0x1]
        %v1431 = vld [vmem:[%s1224 + $0x38] sm:$0xe]
        %v1432 = vld [vmem:[%s1224 + $0x3c] sm:$0x1]
        %v1449 = vrot.slane %v1417, 5
        %v1450 = vrot.slane %v1449, 4
        %v1451 = vrot.slane %v1418, 5
        %v1452 = vsel %vm570, %v1450, %v1451
        %v1453 = vrot.slane %v1419, 5
        %v1454 = vrot.slane %v1453, 4
        %v1455 = vrot.slane %v1420, 5
        %v1456 = vsel %vm570, %v1454, %v1455
        %v1457 = vrot.slane %v1421, 5
        %v1458 = vrot.slane %v1457, 4
        %v1459 = vrot.slane %v1422, 5
        %v1460 = vsel %vm570, %v1458, %v1459
        %v1461 = vrot.slane %v1423, 5
        %v1462 = vrot.slane %v1461, 4
        %v1463 = vrot.slane %v1424, 5
        %v1464 = vsel %vm570, %v1462, %v1463
        %v1465 = vrot.slane %v1425, 5
        %v1466 = vrot.slane %v1465, 4
        %v1467 = vrot.slane %v1426, 5
        %v1468 = vsel %vm570, %v1466, %v1467
        %v1469 = vrot.slane %v1427, 5
        %v1470 = vrot.slane %v1469, 4
        %v1471 = vrot.slane %v1428, 5
        %v1472 = vsel %vm570, %v1470, %v1471
        %v1473 = vrot.slane %v1429, 5
        %v1474 = vrot.slane %v1473, 4
        %v1475 = vrot.slane %v1430, 5
        %v1476 = vsel %vm570, %v1474, %v1475
        %v1477 = vrot.slane %v1431, 5
        %v1478 = vrot.slane %v1477, 4
        %v1479 = vrot.slane %v1432, 5
        %v1480 = vsel %vm570, %v1478, %v1479
        %v1481 = vunpack.c.l.b16 %v1452
        %v1482 = vunpack.c.l.b16 %v1456
        %v1483 = vunpack.c.l.b16 %v1460
        %v1484 = vunpack.c.l.b16 %v1464
        %v1485 = vunpack.c.l.b16 %v1468
        %v1486 = vunpack.c.l.b16 %v1472
        %v1487 = vunpack.c.l.b16 %v1476
        %v1488 = vunpack.c.l.b16 %v1480
        %v1489 = vpack.c.b16 %v1482, %v1481
        %v1490 = vpack.c.b16 %v1484, %v1483
        %v1491 = vpack.c.b16 %v1486, %v1485
        %v1492 = vpack.c.b16 %v1488, %v1487
        %1493 = vrot.lane.b32.xlu0 %v1489, 16
        %v1494 = vpop.permute.xlu0 %1493
        %1495 = vrot.lane.b32.xlu0 %v1490, 16
        %v1496 = vpop.permute.xlu0 %1495
        %1497 = vrot.lane.b32.xlu0 %v1491, 16
        %v1498 = vpop.permute.xlu0 %1497
        %1499 = vrot.lane.b32.xlu0 %v1492, 16
        %v1500 = vpop.permute.xlu0 %1499
        %1505 = vst.msk [vmem:[#allocation2 + $0x20] sm:$0xff] %vm627, %v1494
        %1506 = vst.msk [vmem:[#allocation2 + $0x28] sm:$0xff] %vm627, %v1496
        %1507 = vst.msk [vmem:[#allocation2 + $0x30] sm:$0xff] %vm627, %v1498
        %1508 = vst.msk [vmem:[#allocation2 + $0x38] sm:$0xff] %vm627, %v1500
        %s1509 = scalar_lea.vmem %s263, 88 [#allocation4]
        %v1510 = vld [vmem:[%s1509] sm:$0xf]
        %v1511 = vld [vmem:[%s1509 + $0x8] sm:$0xf]
        %v1512 = vld [vmem:[%s1509 + $0x10] sm:$0xf]
        %v1513 = vld [vmem:[%s1509 + $0x18] sm:$0xf]
        %v1514 = vld [vmem:[%s1509 + $0x20] sm:$0xf]
        %v1515 = vld [vmem:[%s1509 + $0x28] sm:$0xf]
        %v1516 = vld [vmem:[%s1509 + $0x30] sm:$0xf]
        %v1517 = vld [vmem:[%s1509 + $0x38] sm:$0xf]
        %v1526 = vunpack.c.l.b16 %v1510
        %v1527 = vunpack.c.l.b16 %v1511
        %v1528 = vunpack.c.l.b16 %v1512
        %v1529 = vunpack.c.l.b16 %v1513
        %v1530 = vunpack.c.l.b16 %v1514
        %v1531 = vunpack.c.l.b16 %v1515
        %v1532 = vunpack.c.l.b16 %v1516
        %v1533 = vunpack.c.l.b16 %v1517
        %v1534 = vpack.c.b16 %v1527, %v1526
        %v1535 = vpack.c.b16 %v1529, %v1528
        %v1536 = vpack.c.b16 %v1531, %v1530
        %v1537 = vpack.c.b16 %v1533, %v1532
        %1538 = vrot.lane.b32.xlu0 %v1534, 24
        %v1539 = vpop.permute.xlu0 %1538
        %1540 = vrot.lane.b32.xlu0 %v1535, 24
        %v1541 = vpop.permute.xlu0 %1540
        %1542 = vrot.lane.b32.xlu0 %v1536, 24
        %v1543 = vpop.permute.xlu0 %1542
        %1544 = vrot.lane.b32.xlu0 %v1537, 24
        %v1545 = vpop.permute.xlu0 %1544
        %1550 = vst.msk [vmem:[#allocation2 + $0x20] sm:$0xff] %vm673, %v1539
        %1551 = vst.msk [vmem:[#allocation2 + $0x28] sm:$0xff] %vm673, %v1541
        %1552 = vst.msk [vmem:[#allocation2 + $0x30] sm:$0xff] %vm673, %v1543
        %1553 = vst.msk [vmem:[#allocation2 + $0x38] sm:$0xff] %vm673, %v1545
        %v1554 = vld [vmem:[%s1509] sm:$0xf]
        %v1555 = vld [vmem:[%s1509 + $0x4] sm:$0x1]
        %v1556 = vld [vmem:[%s1509 + $0x8] sm:$0xf]
        %v1557 = vld [vmem:[%s1509 + $0xc] sm:$0x1]
        %v1558 = vld [vmem:[%s1509 + $0x10] sm:$0xf]
        %v1559 = vld [vmem:[%s1509 + $0x14] sm:$0x1]
        %v1560 = vld [vmem:[%s1509 + $0x18] sm:$0xf]
        %v1561 = vld [vmem:[%s1509 + $0x1c] sm:$0x1]
        %v1562 = vld [vmem:[%s1509 + $0x20] sm:$0xf]
        %v1563 = vld [vmem:[%s1509 + $0x24] sm:$0x1]
        %v1564 = vld [vmem:[%s1509 + $0x28] sm:$0xf]
        %v1565 = vld [vmem:[%s1509 + $0x2c] sm:$0x1]
        %v1566 = vld [vmem:[%s1509 + $0x30] sm:$0xf]
        %v1567 = vld [vmem:[%s1509 + $0x34] sm:$0x1]
        %v1568 = vld [vmem:[%s1509 + $0x38] sm:$0xf]
        %v1569 = vld [vmem:[%s1509 + $0x3c] sm:$0x1]
        %v1571 = vshrl.u32 %v1554, 16
        %v1573 = vrot.slane %v1571, 4
        %v1574 = vshll.u32 %v1554, 16
        %v1576 = vrot.slane %v1574, 5
        %v1577 = vor.u32 %v1573, %v1576
        %v1578 = vrot.slane %v1577, 4
        %v1580 = vshll.u32 %v1555, 16
        %v1582 = vrot.slane %v1580, 5
        %v1583 = vsel %vm394, %v1578, %v1582
        %v1585 = vshrl.u32 %v1556, 16
        %v1587 = vrot.slane %v1585, 4
        %v1588 = vshll.u32 %v1556, 16
        %v1590 = vrot.slane %v1588, 5
        %v1591 = vor.u32 %v1587, %v1590
        %v1592 = vrot.slane %v1591, 4
        %v1594 = vshll.u32 %v1557, 16
        %v1596 = vrot.slane %v1594, 5
        %v1597 = vsel %vm394, %v1592, %v1596
        %v1599 = vshrl.u32 %v1558, 16
        %v1601 = vrot.slane %v1599, 4
        %v1602 = vshll.u32 %v1558, 16
        %v1604 = vrot.slane %v1602, 5
        %v1605 = vor.u32 %v1601, %v1604
        %v1606 = vrot.slane %v1605, 4
        %v1608 = vshll.u32 %v1559, 16
        %v1610 = vrot.slane %v1608, 5
        %v1611 = vsel %vm394, %v1606, %v1610
        %v1613 = vshrl.u32 %v1560, 16
        %v1615 = vrot.slane %v1613, 4
        %v1616 = vshll.u32 %v1560, 16
        %v1618 = vrot.slane %v1616, 5
        %v1619 = vor.u32 %v1615, %v1618
        %v1620 = vrot.slane %v1619, 4
        %v1622 = vshll.u32 %v1561, 16
        %v1624 = vrot.slane %v1622, 5
        %v1625 = vsel %vm394, %v1620, %v1624
        %v1627 = vshrl.u32 %v1562, 16
        %v1629 = vrot.slane %v1627, 4
        %v1630 = vshll.u32 %v1562, 16
        %v1632 = vrot.slane %v1630, 5
        %v1633 = vor.u32 %v1629, %v1632
        %v1634 = vrot.slane %v1633, 4
        %v1636 = vshll.u32 %v1563, 16
        %v1638 = vrot.slane %v1636, 5
        %v1639 = vsel %vm394, %v1634, %v1638
        %v1641 = vshrl.u32 %v1564, 16
        %v1643 = vrot.slane %v1641, 4
        %v1644 = vshll.u32 %v1564, 16
        %v1646 = vrot.slane %v1644, 5
        %v1647 = vor.u32 %v1643, %v1646
        %v1648 = vrot.slane %v1647, 4
        %v1650 = vshll.u32 %v1565, 16
        %v1652 = vrot.slane %v1650, 5
        %v1653 = vsel %vm394, %v1648, %v1652
        %v1655 = vshrl.u32 %v1566, 16
        %v1657 = vrot.slane %v1655, 4
        %v1658 = vshll.u32 %v1566, 16
        %v1660 = vrot.slane %v1658, 5
        %v1661 = vor.u32 %v1657, %v1660
        %v1662 = vrot.slane %v1661, 4
        %v1664 = vshll.u32 %v1567, 16
        %v1666 = vrot.slane %v1664, 5
        %v1667 = vsel %vm394, %v1662, %v1666
        %v1669 = vshrl.u32 %v1568, 16
        %v1671 = vrot.slane %v1669, 4
        %v1672 = vshll.u32 %v1568, 16
        %v1674 = vrot.slane %v1672, 5
        %v1675 = vor.u32 %v1671, %v1674
        %v1676 = vrot.slane %v1675, 4
        %v1678 = vshll.u32 %v1569, 16
        %v1680 = vrot.slane %v1678, 5
        %v1681 = vsel %vm394, %v1676, %v1680
        %v1682 = vunpack.c.l.b16 %v1583
        %v1683 = vunpack.c.l.b16 %v1597
        %v1684 = vunpack.c.l.b16 %v1611
        %v1685 = vunpack.c.l.b16 %v1625
        %v1686 = vunpack.c.l.b16 %v1639
        %v1687 = vunpack.c.l.b16 %v1653
        %v1688 = vunpack.c.l.b16 %v1667
        %v1689 = vunpack.c.l.b16 %v1681
        %v1690 = vpack.c.b16 %v1683, %v1682
        %v1691 = vpack.c.b16 %v1685, %v1684
        %v1692 = vpack.c.b16 %v1687, %v1686
        %v1693 = vpack.c.b16 %v1689, %v1688
        %1694 = vrot.lane.b32.xlu0 %v1690, 32
        %v1695 = vpop.permute.xlu0 %1694
        %1696 = vrot.lane.b32.xlu0 %v1691, 32
        %v1697 = vpop.permute.xlu0 %1696
        %1698 = vrot.lane.b32.xlu0 %v1692, 32
        %v1699 = vpop.permute.xlu0 %1698
        %1700 = vrot.lane.b32.xlu0 %v1693, 32
        %v1701 = vpop.permute.xlu0 %1700
        %1706 = vst.msk [vmem:[#allocation2 + $0x20] sm:$0xff] %vm830, %v1695
        %1707 = vst.msk [vmem:[#allocation2 + $0x28] sm:$0xff] %vm830, %v1697
        %1708 = vst.msk [vmem:[#allocation2 + $0x30] sm:$0xff] %vm830, %v1699
        %1709 = vst.msk [vmem:[#allocation2 + $0x38] sm:$0xff] %vm830, %v1701
        %v1710 = vld [vmem:[%s1509] sm:$0xe]
        %v1711 = vld [vmem:[%s1509 + $0x4] sm:$0x1]
        %v1712 = vld [vmem:[%s1509 + $0x8] sm:$0xe]
        %v1713 = vld [vmem:[%s1509 + $0xc] sm:$0x1]
        %v1714 = vld [vmem:[%s1509 + $0x10] sm:$0xe]
        %v1715 = vld [vmem:[%s1509 + $0x14] sm:$0x1]
        %v1716 = vld [vmem:[%s1509 + $0x18] sm:$0xe]
        %v1717 = vld [vmem:[%s1509 + $0x1c] sm:$0x1]
        %v1718 = vld [vmem:[%s1509 + $0x20] sm:$0xe]
        %v1719 = vld [vmem:[%s1509 + $0x24] sm:$0x1]
        %v1720 = vld [vmem:[%s1509 + $0x28] sm:$0xe]
        %v1721 = vld [vmem:[%s1509 + $0x2c] sm:$0x1]
        %v1722 = vld [vmem:[%s1509 + $0x30] sm:$0xe]
        %v1723 = vld [vmem:[%s1509 + $0x34] sm:$0x1]
        %v1724 = vld [vmem:[%s1509 + $0x38] sm:$0xe]
        %v1725 = vld [vmem:[%s1509 + $0x3c] sm:$0x1]
        %v1742 = vrot.slane %v1710, 5
        %v1743 = vrot.slane %v1742, 4
        %v1744 = vrot.slane %v1711, 5
        %v1745 = vsel %vm570, %v1743, %v1744
        %v1746 = vrot.slane %v1712, 5
        %v1747 = vrot.slane %v1746, 4
        %v1748 = vrot.slane %v1713, 5
        %v1749 = vsel %vm570, %v1747, %v1748
        %v1750 = vrot.slane %v1714, 5
        %v1751 = vrot.slane %v1750, 4
        %v1752 = vrot.slane %v1715, 5
        %v1753 = vsel %vm570, %v1751, %v1752
        %v1754 = vrot.slane %v1716, 5
        %v1755 = vrot.slane %v1754, 4
        %v1756 = vrot.slane %v1717, 5
        %v1757 = vsel %vm570, %v1755, %v1756
        %v1758 = vrot.slane %v1718, 5
        %v1759 = vrot.slane %v1758, 4
        %v1760 = vrot.slane %v1719, 5
        %v1761 = vsel %vm570, %v1759, %v1760
        %v1762 = vrot.slane %v1720, 5
        %v1763 = vrot.slane %v1762, 4
        %v1764 = vrot.slane %v1721, 5
        %v1765 = vsel %vm570, %v1763, %v1764
        %v1766 = vrot.slane %v1722, 5
        %v1767 = vrot.slane %v1766, 4
        %v1768 = vrot.slane %v1723, 5
        %v1769 = vsel %vm570, %v1767, %v1768
        %v1770 = vrot.slane %v1724, 5
        %v1771 = vrot.slane %v1770, 4
        %v1772 = vrot.slane %v1725, 5
        %v1773 = vsel %vm570, %v1771, %v1772
        %v1774 = vunpack.c.l.b16 %v1745
        %v1775 = vunpack.c.l.b16 %v1749
        %v1776 = vunpack.c.l.b16 %v1753
        %v1777 = vunpack.c.l.b16 %v1757
        %v1778 = vunpack.c.l.b16 %v1761
        %v1779 = vunpack.c.l.b16 %v1765
        %v1780 = vunpack.c.l.b16 %v1769
        %v1781 = vunpack.c.l.b16 %v1773
        %v1782 = vpack.c.b16 %v1775, %v1774
        %v1783 = vpack.c.b16 %v1777, %v1776
        %v1784 = vpack.c.b16 %v1779, %v1778
        %v1785 = vpack.c.b16 %v1781, %v1780
        %1786 = vrot.lane.b32.xlu0 %v1782, 40
        %v1787 = vpop.permute.xlu0 %1786
        %1788 = vrot.lane.b32.xlu0 %v1783, 40
        %v1789 = vpop.permute.xlu0 %1788
        %1790 = vrot.lane.b32.xlu0 %v1784, 40
        %v1791 = vpop.permute.xlu0 %1790
        %1792 = vrot.lane.b32.xlu0 %v1785, 40
        %v1793 = vpop.permute.xlu0 %1792
        %1798 = vst.msk [vmem:[#allocation2 + $0x20] sm:$0xff] %vm923, %v1787
        %1799 = vst.msk [vmem:[#allocation2 + $0x28] sm:$0xff] %vm923, %v1789
        %1800 = vst.msk [vmem:[#allocation2 + $0x30] sm:$0xff] %vm923, %v1791
        %1801 = vst.msk [vmem:[#allocation2 + $0x38] sm:$0xff] %vm923, %v1793
        %s1802 = scalar_lea.vmem %s263, 96 [#allocation4]
        %v1803 = vld [vmem:[%s1802] sm:$0xf]
        %v1804 = vld [vmem:[%s1802 + $0x8] sm:$0xf]
        %v1805 = vld [vmem:[%s1802 + $0x10] sm:$0xf]
        %v1806 = vld [vmem:[%s1802 + $0x18] sm:$0xf]
        %v1807 = vld [vmem:[%s1802 + $0x20] sm:$0xf]
        %v1808 = vld [vmem:[%s1802 + $0x28] sm:$0xf]
        %v1809 = vld [vmem:[%s1802 + $0x30] sm:$0xf]
        %v1810 = vld [vmem:[%s1802 + $0x38] sm:$0xf]
        %v1819 = vunpack.c.l.b16 %v1803
        %v1820 = vunpack.c.l.b16 %v1804
        %v1821 = vunpack.c.l.b16 %v1805
        %v1822 = vunpack.c.l.b16 %v1806
        %v1823 = vunpack.c.l.b16 %v1807
        %v1824 = vunpack.c.l.b16 %v1808
        %v1825 = vunpack.c.l.b16 %v1809
        %v1826 = vunpack.c.l.b16 %v1810
        %v1827 = vpack.c.b16 %v1820, %v1819
        %v1828 = vpack.c.b16 %v1822, %v1821
        %v1829 = vpack.c.b16 %v1824, %v1823
        %v1830 = vpack.c.b16 %v1826, %v1825
        %1831 = vrot.lane.b32.xlu0 %v1827, 48
        %v1832 = vpop.permute.xlu0 %1831
        %1833 = vrot.lane.b32.xlu0 %v1828, 48
        %v1834 = vpop.permute.xlu0 %1833
        %1835 = vrot.lane.b32.xlu0 %v1829, 48
        %v1836 = vpop.permute.xlu0 %1835
        %1837 = vrot.lane.b32.xlu0 %v1830, 48
        %v1838 = vpop.permute.xlu0 %1837
        %1843 = vst.msk [vmem:[#allocation2 + $0x20] sm:$0xff] %vm969, %v1832
        %1844 = vst.msk [vmem:[#allocation2 + $0x28] sm:$0xff] %vm969, %v1834
        %1845 = vst.msk [vmem:[#allocation2 + $0x30] sm:$0xff] %vm969, %v1836
        %1846 = vst.msk [vmem:[#allocation2 + $0x38] sm:$0xff] %vm969, %v1838
        %v1847 = vld [vmem:[%s1802] sm:$0xf]
        %v1848 = vld [vmem:[%s1802 + $0x4] sm:$0x1]
        %v1849 = vld [vmem:[%s1802 + $0x8] sm:$0xf]
        %v1850 = vld [vmem:[%s1802 + $0xc] sm:$0x1]
        %v1851 = vld [vmem:[%s1802 + $0x10] sm:$0xf]
        %v1852 = vld [vmem:[%s1802 + $0x14] sm:$0x1]
        %v1853 = vld [vmem:[%s1802 + $0x18] sm:$0xf]
        %v1854 = vld [vmem:[%s1802 + $0x1c] sm:$0x1]
        %v1855 = vld [vmem:[%s1802 + $0x20] sm:$0xf]
        %v1856 = vld [vmem:[%s1802 + $0x24] sm:$0x1]
        %v1857 = vld [vmem:[%s1802 + $0x28] sm:$0xf]
        %v1858 = vld [vmem:[%s1802 + $0x2c] sm:$0x1]
        %v1859 = vld [vmem:[%s1802 + $0x30] sm:$0xf]
        %v1860 = vld [vmem:[%s1802 + $0x34] sm:$0x1]
        %v1861 = vld [vmem:[%s1802 + $0x38] sm:$0xf]
        %v1862 = vld [vmem:[%s1802 + $0x3c] sm:$0x1]
        %v1864 = vshrl.u32 %v1847, 16
        %v1866 = vrot.slane %v1864, 4
        %v1867 = vshll.u32 %v1847, 16
        %v1869 = vrot.slane %v1867, 5
        %v1870 = vor.u32 %v1866, %v1869
        %v1871 = vrot.slane %v1870, 4
        %v1873 = vshll.u32 %v1848, 16
        %v1875 = vrot.slane %v1873, 5
        %v1876 = vsel %vm394, %v1871, %v1875
        %v1878 = vshrl.u32 %v1849, 16
        %v1880 = vrot.slane %v1878, 4
        %v1881 = vshll.u32 %v1849, 16
        %v1883 = vrot.slane %v1881, 5
        %v1884 = vor.u32 %v1880, %v1883
        %v1885 = vrot.slane %v1884, 4
        %v1887 = vshll.u32 %v1850, 16
        %v1889 = vrot.slane %v1887, 5
        %v1890 = vsel %vm394, %v1885, %v1889
        %v1892 = vshrl.u32 %v1851, 16
        %v1894 = vrot.slane %v1892, 4
        %v1895 = vshll.u32 %v1851, 16
        %v1897 = vrot.slane %v1895, 5
        %v1898 = vor.u32 %v1894, %v1897
        %v1899 = vrot.slane %v1898, 4
        %v1901 = vshll.u32 %v1852, 16
        %v1903 = vrot.slane %v1901, 5
        %v1904 = vsel %vm394, %v1899, %v1903
        %v1906 = vshrl.u32 %v1853, 16
        %v1908 = vrot.slane %v1906, 4
        %v1909 = vshll.u32 %v1853, 16
        %v1911 = vrot.slane %v1909, 5
        %v1912 = vor.u32 %v1908, %v1911
        %v1913 = vrot.slane %v1912, 4
        %v1915 = vshll.u32 %v1854, 16
        %v1917 = vrot.slane %v1915, 5
        %v1918 = vsel %vm394, %v1913, %v1917
        %v1920 = vshrl.u32 %v1855, 16
        %v1922 = vrot.slane %v1920, 4
        %v1923 = vshll.u32 %v1855, 16
        %v1925 = vrot.slane %v1923, 5
        %v1926 = vor.u32 %v1922, %v1925
        %v1927 = vrot.slane %v1926, 4
        %v1929 = vshll.u32 %v1856, 16
        %v1931 = vrot.slane %v1929, 5
        %v1932 = vsel %vm394, %v1927, %v1931
        %v1934 = vshrl.u32 %v1857, 16
        %v1936 = vrot.slane %v1934, 4
        %v1937 = vshll.u32 %v1857, 16
        %v1939 = vrot.slane %v1937, 5
        %v1940 = vor.u32 %v1936, %v1939
        %v1941 = vrot.slane %v1940, 4
        %v1943 = vshll.u32 %v1858, 16
        %v1945 = vrot.slane %v1943, 5
        %v1946 = vsel %vm394, %v1941, %v1945
        %v1948 = vshrl.u32 %v1859, 16
        %v1950 = vrot.slane %v1948, 4
        %v1951 = vshll.u32 %v1859, 16
        %v1953 = vrot.slane %v1951, 5
        %v1954 = vor.u32 %v1950, %v1953
        %v1955 = vrot.slane %v1954, 4
        %v1957 = vshll.u32 %v1860, 16
        %v1959 = vrot.slane %v1957, 5
        %v1960 = vsel %vm394, %v1955, %v1959
        %v1962 = vshrl.u32 %v1861, 16
        %v1964 = vrot.slane %v1962, 4
        %v1965 = vshll.u32 %v1861, 16
        %v1967 = vrot.slane %v1965, 5
        %v1968 = vor.u32 %v1964, %v1967
        %v1969 = vrot.slane %v1968, 4
        %v1971 = vshll.u32 %v1862, 16
        %v1973 = vrot.slane %v1971, 5
        %v1974 = vsel %vm394, %v1969, %v1973
        %v1975 = vunpack.c.l.b16 %v1876
        %v1976 = vunpack.c.l.b16 %v1890
        %v1977 = vunpack.c.l.b16 %v1904
        %v1978 = vunpack.c.l.b16 %v1918
        %v1979 = vunpack.c.l.b16 %v1932
        %v1980 = vunpack.c.l.b16 %v1946
        %v1981 = vunpack.c.l.b16 %v1960
        %v1982 = vunpack.c.l.b16 %v1974
        %v1983 = vpack.c.b16 %v1976, %v1975
        %v1984 = vpack.c.b16 %v1978, %v1977
        %v1985 = vpack.c.b16 %v1980, %v1979
        %v1986 = vpack.c.b16 %v1982, %v1981
        %1987 = vrot.lane.b32.xlu0 %v1983, 56
        %v1988 = vpop.permute.xlu0 %1987
        %1989 = vrot.lane.b32.xlu0 %v1984, 56
        %v1990 = vpop.permute.xlu0 %1989
        %1991 = vrot.lane.b32.xlu0 %v1985, 56
        %v1992 = vpop.permute.xlu0 %1991
        %1993 = vrot.lane.b32.xlu0 %v1986, 56
        %v1994 = vpop.permute.xlu0 %1993
        %1999 = vst.msk [vmem:[#allocation2 + $0x20] sm:$0xff] %vm1126, %v1988
        %2000 = vst.msk [vmem:[#allocation2 + $0x28] sm:$0xff] %vm1126, %v1990
        %2001 = vst.msk [vmem:[#allocation2 + $0x30] sm:$0xff] %vm1126, %v1992
        %2002 = vst.msk [vmem:[#allocation2 + $0x38] sm:$0xff] %vm1126, %v1994
        %v2003 = vld [vmem:[%s1802] sm:$0xe]
        %v2004 = vld [vmem:[%s1802 + $0x4] sm:$0x1]
        %v2005 = vld [vmem:[%s1802 + $0x8] sm:$0xe]
        %v2006 = vld [vmem:[%s1802 + $0xc] sm:$0x1]
        %v2007 = vld [vmem:[%s1802 + $0x10] sm:$0xe]
        %v2008 = vld [vmem:[%s1802 + $0x14] sm:$0x1]
        %v2009 = vld [vmem:[%s1802 + $0x18] sm:$0xe]
        %v2010 = vld [vmem:[%s1802 + $0x1c] sm:$0x1]
        %v2011 = vld [vmem:[%s1802 + $0x20] sm:$0xe]
        %v2012 = vld [vmem:[%s1802 + $0x24] sm:$0x1]
        %v2013 = vld [vmem:[%s1802 + $0x28] sm:$0xe]
        %v2014 = vld [vmem:[%s1802 + $0x2c] sm:$0x1]
        %v2015 = vld [vmem:[%s1802 + $0x30] sm:$0xe]
        %v2016 = vld [vmem:[%s1802 + $0x34] sm:$0x1]
        %v2017 = vld [vmem:[%s1802 + $0x38] sm:$0xe]
        %v2018 = vld [vmem:[%s1802 + $0x3c] sm:$0x1]
        %v2035 = vrot.slane %v2003, 5
        %v2036 = vrot.slane %v2035, 4
        %v2037 = vrot.slane %v2004, 5
        %v2038 = vsel %vm570, %v2036, %v2037
        %v2039 = vrot.slane %v2005, 5
        %v2040 = vrot.slane %v2039, 4
        %v2041 = vrot.slane %v2006, 5
        %v2042 = vsel %vm570, %v2040, %v2041
        %v2043 = vrot.slane %v2007, 5
        %v2044 = vrot.slane %v2043, 4
        %v2045 = vrot.slane %v2008, 5
        %v2046 = vsel %vm570, %v2044, %v2045
        %v2047 = vrot.slane %v2009, 5
        %v2048 = vrot.slane %v2047, 4
        %v2049 = vrot.slane %v2010, 5
        %v2050 = vsel %vm570, %v2048, %v2049
        %v2051 = vrot.slane %v2011, 5
        %v2052 = vrot.slane %v2051, 4
        %v2053 = vrot.slane %v2012, 5
        %v2054 = vsel %vm570, %v2052, %v2053
        %v2055 = vrot.slane %v2013, 5
        %v2056 = vrot.slane %v2055, 4
        %v2057 = vrot.slane %v2014, 5
        %v2058 = vsel %vm570, %v2056, %v2057
        %v2059 = vrot.slane %v2015, 5
        %v2060 = vrot.slane %v2059, 4
        %v2061 = vrot.slane %v2016, 5
        %v2062 = vsel %vm570, %v2060, %v2061
        %v2063 = vrot.slane %v2017, 5
        %v2064 = vrot.slane %v2063, 4
        %v2065 = vrot.slane %v2018, 5
        %v2066 = vsel %vm570, %v2064, %v2065
        %v2067 = vunpack.c.l.b16 %v2038
        %v2068 = vunpack.c.l.b16 %v2042
        %v2069 = vunpack.c.l.b16 %v2046
        %v2070 = vunpack.c.l.b16 %v2050
        %v2071 = vunpack.c.l.b16 %v2054
        %v2072 = vunpack.c.l.b16 %v2058
        %v2073 = vunpack.c.l.b16 %v2062
        %v2074 = vunpack.c.l.b16 %v2066
        %v2075 = vpack.c.b16 %v2068, %v2067
        %v2076 = vpack.c.b16 %v2070, %v2069
        %v2077 = vpack.c.b16 %v2072, %v2071
        %v2078 = vpack.c.b16 %v2074, %v2073
        %2079 = vrot.lane.b32.xlu0 %v2075, 64
        %v2080 = vpop.permute.xlu0 %2079
        %2081 = vrot.lane.b32.xlu0 %v2076, 64
        %v2082 = vpop.permute.xlu0 %2081
        %2083 = vrot.lane.b32.xlu0 %v2077, 64
        %v2084 = vpop.permute.xlu0 %2083
        %2085 = vrot.lane.b32.xlu0 %v2078, 64
        %v2086 = vpop.permute.xlu0 %2085
        %2091 = vst.msk [vmem:[#allocation2 + $0x20] sm:$0xff] %vm1219, %v2080
        %2092 = vst.msk [vmem:[#allocation2 + $0x28] sm:$0xff] %vm1219, %v2082
        %2093 = vst.msk [vmem:[#allocation2 + $0x30] sm:$0xff] %vm1219, %v2084
        %2094 = vst.msk [vmem:[#allocation2 + $0x38] sm:$0xff] %vm1219, %v2086
        %v2095 = vld [vmem:[%s272] sm:$0xf]
        %v2096 = vld [vmem:[%s272 + $0x8] sm:$0xf]
        %v2097 = vld [vmem:[%s272 + $0x10] sm:$0xf]
        %v2098 = vld [vmem:[%s272 + $0x18] sm:$0xf]
        %v2099 = vld [vmem:[%s272 + $0x20] sm:$0xf]
        %v2100 = vld [vmem:[%s272 + $0x28] sm:$0xf]
        %v2101 = vld [vmem:[%s272 + $0x30] sm:$0xf]
        %v2102 = vld [vmem:[%s272 + $0x38] sm:$0xf]
        %v2111 = vunpack.c.l.b16 %v2095
        %v2112 = vunpack.c.l.b16 %v2096
        %v2113 = vunpack.c.l.b16 %v2097
        %v2114 = vunpack.c.l.b16 %v2098
        %v2115 = vunpack.c.l.b16 %v2099
        %v2116 = vunpack.c.l.b16 %v2100
        %v2117 = vunpack.c.l.b16 %v2101
        %v2118 = vunpack.c.l.b16 %v2102
        %v2119 = vpack.c.b16 %v2112, %v2111
        %v2120 = vpack.c.b16 %v2114, %v2113
        %v2121 = vpack.c.b16 %v2116, %v2115
        %v2122 = vpack.c.b16 %v2118, %v2117
        %2127 = vst.msk [vmem:[#allocation2 + $0x40] sm:$0xff] %vm371, %v2119
        %2128 = vst.msk [vmem:[#allocation2 + $0x48] sm:$0xff] %vm371, %v2120
        %2129 = vst.msk [vmem:[#allocation2 + $0x50] sm:$0xff] %vm371, %v2121
        %2130 = vst.msk [vmem:[#allocation2 + $0x58] sm:$0xff] %vm371, %v2122
        %v2131 = vld [vmem:[%s272] sm:$0xf]
        %v2132 = vld [vmem:[%s272 + $0x4] sm:$0x1]
        %v2133 = vld [vmem:[%s272 + $0x8] sm:$0xf]
        %v2134 = vld [vmem:[%s272 + $0xc] sm:$0x1]
        %v2135 = vld [vmem:[%s272 + $0x10] sm:$0xf]
        %v2136 = vld [vmem:[%s272 + $0x14] sm:$0x1]
        %v2137 = vld [vmem:[%s272 + $0x18] sm:$0xf]
        %v2138 = vld [vmem:[%s272 + $0x1c] sm:$0x1]
        %v2139 = vld [vmem:[%s272 + $0x20] sm:$0xf]
        %v2140 = vld [vmem:[%s272 + $0x24] sm:$0x1]
        %v2141 = vld [vmem:[%s272 + $0x28] sm:$0xf]
        %v2142 = vld [vmem:[%s272 + $0x2c] sm:$0x1]
        %v2143 = vld [vmem:[%s272 + $0x30] sm:$0xf]
        %v2144 = vld [vmem:[%s272 + $0x34] sm:$0x1]
        %v2145 = vld [vmem:[%s272 + $0x38] sm:$0xf]
        %v2146 = vld [vmem:[%s272 + $0x3c] sm:$0x1]
        %v2148 = vshrl.u32 %v2131, 16
        %v2150 = vrot.slane %v2148, 4
        %v2151 = vshll.u32 %v2131, 16
        %v2153 = vrot.slane %v2151, 5
        %v2154 = vor.u32 %v2150, %v2153
        %v2155 = vrot.slane %v2154, 4
        %v2157 = vshll.u32 %v2132, 16
        %v2159 = vrot.slane %v2157, 5
        %v2160 = vsel %vm394, %v2155, %v2159
        %v2162 = vshrl.u32 %v2133, 16
        %v2164 = vrot.slane %v2162, 4
        %v2165 = vshll.u32 %v2133, 16
        %v2167 = vrot.slane %v2165, 5
        %v2168 = vor.u32 %v2164, %v2167
        %v2169 = vrot.slane %v2168, 4
        %v2171 = vshll.u32 %v2134, 16
        %v2173 = vrot.slane %v2171, 5
        %v2174 = vsel %vm394, %v2169, %v2173
        %v2176 = vshrl.u32 %v2135, 16
        %v2178 = vrot.slane %v2176, 4
        %v2179 = vshll.u32 %v2135, 16
        %v2181 = vrot.slane %v2179, 5
        %v2182 = vor.u32 %v2178, %v2181
        %v2183 = vrot.slane %v2182, 4
        %v2185 = vshll.u32 %v2136, 16
        %v2187 = vrot.slane %v2185, 5
        %v2188 = vsel %vm394, %v2183, %v2187
        %v2190 = vshrl.u32 %v2137, 16
        %v2192 = vrot.slane %v2190, 4
        %v2193 = vshll.u32 %v2137, 16
        %v2195 = vrot.slane %v2193, 5
        %v2196 = vor.u32 %v2192, %v2195
        %v2197 = vrot.slane %v2196, 4
        %v2199 = vshll.u32 %v2138, 16
        %v2201 = vrot.slane %v2199, 5
        %v2202 = vsel %vm394, %v2197, %v2201
        %v2204 = vshrl.u32 %v2139, 16
        %v2206 = vrot.slane %v2204, 4
        %v2207 = vshll.u32 %v2139, 16
        %v2209 = vrot.slane %v2207, 5
        %v2210 = vor.u32 %v2206, %v2209
        %v2211 = vrot.slane %v2210, 4
        %v2213 = vshll.u32 %v2140, 16
        %v2215 = vrot.slane %v2213, 5
        %v2216 = vsel %vm394, %v2211, %v2215
        %v2218 = vshrl.u32 %v2141, 16
        %v2220 = vrot.slane %v2218, 4
        %v2221 = vshll.u32 %v2141, 16
        %v2223 = vrot.slane %v2221, 5
        %v2224 = vor.u32 %v2220, %v2223
        %v2225 = vrot.slane %v2224, 4
        %v2227 = vshll.u32 %v2142, 16
        %v2229 = vrot.slane %v2227, 5
        %v2230 = vsel %vm394, %v2225, %v2229
        %v2232 = vshrl.u32 %v2143, 16
        %v2234 = vrot.slane %v2232, 4
        %v2235 = vshll.u32 %v2143, 16
        %v2237 = vrot.slane %v2235, 5
        %v2238 = vor.u32 %v2234, %v2237
        %v2239 = vrot.slane %v2238, 4
        %v2241 = vshll.u32 %v2144, 16
        %v2243 = vrot.slane %v2241, 5
        %v2244 = vsel %vm394, %v2239, %v2243
        %v2246 = vshrl.u32 %v2145, 16
        %v2248 = vrot.slane %v2246, 4
        %v2249 = vshll.u32 %v2145, 16
        %v2251 = vrot.slane %v2249, 5
        %v2252 = vor.u32 %v2248, %v2251
        %v2253 = vrot.slane %v2252, 4
        %v2255 = vshll.u32 %v2146, 16
        %v2257 = vrot.slane %v2255, 5
        %v2258 = vsel %vm394, %v2253, %v2257
        %v2259 = vunpack.c.l.b16 %v2160
        %v2260 = vunpack.c.l.b16 %v2174
        %v2261 = vunpack.c.l.b16 %v2188
        %v2262 = vunpack.c.l.b16 %v2202
        %v2263 = vunpack.c.l.b16 %v2216
        %v2264 = vunpack.c.l.b16 %v2230
        %v2265 = vunpack.c.l.b16 %v2244
        %v2266 = vunpack.c.l.b16 %v2258
        %v2267 = vpack.c.b16 %v2260, %v2259
        %v2268 = vpack.c.b16 %v2262, %v2261
        %v2269 = vpack.c.b16 %v2264, %v2263
        %v2270 = vpack.c.b16 %v2266, %v2265
        %2271 = vrot.lane.b32.xlu0 %v2267, 8
        %v2272 = vpop.permute.xlu0 %2271
        %2273 = vrot.lane.b32.xlu0 %v2268, 8
        %v2274 = vpop.permute.xlu0 %2273
        %2275 = vrot.lane.b32.xlu0 %v2269, 8
        %v2276 = vpop.permute.xlu0 %2275
        %2277 = vrot.lane.b32.xlu0 %v2270, 8
        %v2278 = vpop.permute.xlu0 %2277
        %2283 = vst.msk [vmem:[#allocation2 + $0x40] sm:$0xff] %vm531, %v2272
        %2284 = vst.msk [vmem:[#allocation2 + $0x48] sm:$0xff] %vm531, %v2274
        %2285 = vst.msk [vmem:[#allocation2 + $0x50] sm:$0xff] %vm531, %v2276
        %2286 = vst.msk [vmem:[#allocation2 + $0x58] sm:$0xff] %vm531, %v2278
        %v2287 = vld [vmem:[%s272] sm:$0xe]
        %v2288 = vld [vmem:[%s272 + $0x4] sm:$0x1]
        %v2289 = vld [vmem:[%s272 + $0x8] sm:$0xe]
        %v2290 = vld [vmem:[%s272 + $0xc] sm:$0x1]
        %v2291 = vld [vmem:[%s272 + $0x10] sm:$0xe]
        %v2292 = vld [vmem:[%s272 + $0x14] sm:$0x1]
        %v2293 = vld [vmem:[%s272 + $0x18] sm:$0xe]
        %v2294 = vld [vmem:[%s272 + $0x1c] sm:$0x1]
        %v2295 = vld [vmem:[%s272 + $0x20] sm:$0xe]
        %v2296 = vld [vmem:[%s272 + $0x24] sm:$0x1]
        %v2297 = vld [vmem:[%s272 + $0x28] sm:$0xe]
        %v2298 = vld [vmem:[%s272 + $0x2c] sm:$0x1]
        %v2299 = vld [vmem:[%s272 + $0x30] sm:$0xe]
        %v2300 = vld [vmem:[%s272 + $0x34] sm:$0x1]
        %v2301 = vld [vmem:[%s272 + $0x38] sm:$0xe]
        %v2302 = vld [vmem:[%s272 + $0x3c] sm:$0x1]
        %v2319 = vrot.slane %v2287, 5
        %v2320 = vrot.slane %v2319, 4
        %v2321 = vrot.slane %v2288, 5
        %v2322 = vsel %vm570, %v2320, %v2321
        %v2323 = vrot.slane %v2289, 5
        %v2324 = vrot.slane %v2323, 4
        %v2325 = vrot.slane %v2290, 5
        %v2326 = vsel %vm570, %v2324, %v2325
        %v2327 = vrot.slane %v2291, 5
        %v2328 = vrot.slane %v2327, 4
        %v2329 = vrot.slane %v2292, 5
        %v2330 = vsel %vm570, %v2328, %v2329
        %v2331 = vrot.slane %v2293, 5
        %v2332 = vrot.slane %v2331, 4
        %v2333 = vrot.slane %v2294, 5
        %v2334 = vsel %vm570, %v2332, %v2333
        %v2335 = vrot.slane %v2295, 5
        %v2336 = vrot.slane %v2335, 4
        %v2337 = vrot.slane %v2296, 5
        %v2338 = vsel %vm570, %v2336, %v2337
        %v2339 = vrot.slane %v2297, 5
        %v2340 = vrot.slane %v2339, 4
        %v2341 = vrot.slane %v2298, 5
        %v2342 = vsel %vm570, %v2340, %v2341
        %v2343 = vrot.slane %v2299, 5
        %v2344 = vrot.slane %v2343, 4
        %v2345 = vrot.slane %v2300, 5
        %v2346 = vsel %vm570, %v2344, %v2345
        %v2347 = vrot.slane %v2301, 5
        %v2348 = vrot.slane %v2347, 4
        %v2349 = vrot.slane %v2302, 5
        %v2350 = vsel %vm570, %v2348, %v2349
        %v2351 = vunpack.c.l.b16 %v2322
        %v2352 = vunpack.c.l.b16 %v2326
        %v2353 = vunpack.c.l.b16 %v2330
        %v2354 = vunpack.c.l.b16 %v2334
        %v2355 = vunpack.c.l.b16 %v2338
        %v2356 = vunpack.c.l.b16 %v2342
        %v2357 = vunpack.c.l.b16 %v2346
        %v2358 = vunpack.c.l.b16 %v2350
        %v2359 = vpack.c.b16 %v2352, %v2351
        %v2360 = vpack.c.b16 %v2354, %v2353
        %v2361 = vpack.c.b16 %v2356, %v2355
        %v2362 = vpack.c.b16 %v2358, %v2357
        %2363 = vrot.lane.b32.xlu0 %v2359, 16
        %v2364 = vpop.permute.xlu0 %2363
        %2365 = vrot.lane.b32.xlu0 %v2360, 16
        %v2366 = vpop.permute.xlu0 %2365
        %2367 = vrot.lane.b32.xlu0 %v2361, 16
        %v2368 = vpop.permute.xlu0 %2367
        %2369 = vrot.lane.b32.xlu0 %v2362, 16
        %v2370 = vpop.permute.xlu0 %2369
        %2375 = vst.msk [vmem:[#allocation2 + $0x40] sm:$0xff] %vm627, %v2364
        %2376 = vst.msk [vmem:[#allocation2 + $0x48] sm:$0xff] %vm627, %v2366
        %2377 = vst.msk [vmem:[#allocation2 + $0x50] sm:$0xff] %vm627, %v2368
        %2378 = vst.msk [vmem:[#allocation2 + $0x58] sm:$0xff] %vm627, %v2370
        %s2379 = scalar_lea.vmem %s272, 8 [#allocation7]
        %v2380 = vld [vmem:[%s2379] sm:$0xf]
        %v2381 = vld [vmem:[%s2379 + $0x8] sm:$0xf]
        %v2382 = vld [vmem:[%s2379 + $0x10] sm:$0xf]
        %v2383 = vld [vmem:[%s2379 + $0x18] sm:$0xf]
        %v2384 = vld [vmem:[%s2379 + $0x20] sm:$0xf]
        %v2385 = vld [vmem:[%s2379 + $0x28] sm:$0xf]
        %v2386 = vld [vmem:[%s2379 + $0x30] sm:$0xf]
        %v2387 = vld [vmem:[%s2379 + $0x38] sm:$0xf]
        %v2396 = vunpack.c.l.b16 %v2380
        %v2397 = vunpack.c.l.b16 %v2381
        %v2398 = vunpack.c.l.b16 %v2382
        %v2399 = vunpack.c.l.b16 %v2383
        %v2400 = vunpack.c.l.b16 %v2384
        %v2401 = vunpack.c.l.b16 %v2385
        %v2402 = vunpack.c.l.b16 %v2386
        %v2403 = vunpack.c.l.b16 %v2387
        %v2404 = vpack.c.b16 %v2397, %v2396
        %v2405 = vpack.c.b16 %v2399, %v2398
        %v2406 = vpack.c.b16 %v2401, %v2400
        %v2407 = vpack.c.b16 %v2403, %v2402
        %2408 = vrot.lane.b32.xlu0 %v2404, 24
        %v2409 = vpop.permute.xlu0 %2408
        %2410 = vrot.lane.b32.xlu0 %v2405, 24
        %v2411 = vpop.permute.xlu0 %2410
        %2412 = vrot.lane.b32.xlu0 %v2406, 24
        %v2413 = vpop.permute.xlu0 %2412
        %2414 = vrot.lane.b32.xlu0 %v2407, 24
        %v2415 = vpop.permute.xlu0 %2414
        %2420 = vst.msk [vmem:[#allocation2 + $0x40] sm:$0xff] %vm673, %v2409
        %2421 = vst.msk [vmem:[#allocation2 + $0x48] sm:$0xff] %vm673, %v2411
        %2422 = vst.msk [vmem:[#allocation2 + $0x50] sm:$0xff] %vm673, %v2413
        %2423 = vst.msk [vmem:[#allocation2 + $0x58] sm:$0xff] %vm673, %v2415
        %v2424 = vld [vmem:[%s2379] sm:$0xf]
        %v2425 = vld [vmem:[%s2379 + $0x4] sm:$0x1]
        %v2426 = vld [vmem:[%s2379 + $0x8] sm:$0xf]
        %v2427 = vld [vmem:[%s2379 + $0xc] sm:$0x1]
        %v2428 = vld [vmem:[%s2379 + $0x10] sm:$0xf]
        %v2429 = vld [vmem:[%s2379 + $0x14] sm:$0x1]
        %v2430 = vld [vmem:[%s2379 + $0x18] sm:$0xf]
        %v2431 = vld [vmem:[%s2379 + $0x1c] sm:$0x1]
        %v2432 = vld [vmem:[%s2379 + $0x20] sm:$0xf]
        %v2433 = vld [vmem:[%s2379 + $0x24] sm:$0x1]
        %v2434 = vld [vmem:[%s2379 + $0x28] sm:$0xf]
        %v2435 = vld [vmem:[%s2379 + $0x2c] sm:$0x1]
        %v2436 = vld [vmem:[%s2379 + $0x30] sm:$0xf]
        %v2437 = vld [vmem:[%s2379 + $0x34] sm:$0x1]
        %v2438 = vld [vmem:[%s2379 + $0x38] sm:$0xf]
        %v2439 = vld [vmem:[%s2379 + $0x3c] sm:$0x1]
        %v2441 = vshrl.u32 %v2424, 16
        %v2443 = vrot.slane %v2441, 4
        %v2444 = vshll.u32 %v2424, 16
        %v2446 = vrot.slane %v2444, 5
        %v2447 = vor.u32 %v2443, %v2446
        %v2448 = vrot.slane %v2447, 4
        %v2450 = vshll.u32 %v2425, 16
        %v2452 = vrot.slane %v2450, 5
        %v2453 = vsel %vm394, %v2448, %v2452
        %v2455 = vshrl.u32 %v2426, 16
        %v2457 = vrot.slane %v2455, 4
        %v2458 = vshll.u32 %v2426, 16
        %v2460 = vrot.slane %v2458, 5
        %v2461 = vor.u32 %v2457, %v2460
        %v2462 = vrot.slane %v2461, 4
        %v2464 = vshll.u32 %v2427, 16
        %v2466 = vrot.slane %v2464, 5
        %v2467 = vsel %vm394, %v2462, %v2466
        %v2469 = vshrl.u32 %v2428, 16
        %v2471 = vrot.slane %v2469, 4
        %v2472 = vshll.u32 %v2428, 16
        %v2474 = vrot.slane %v2472, 5
        %v2475 = vor.u32 %v2471, %v2474
        %v2476 = vrot.slane %v2475, 4
        %v2478 = vshll.u32 %v2429, 16
        %v2480 = vrot.slane %v2478, 5
        %v2481 = vsel %vm394, %v2476, %v2480
        %v2483 = vshrl.u32 %v2430, 16
        %v2485 = vrot.slane %v2483, 4
        %v2486 = vshll.u32 %v2430, 16
        %v2488 = vrot.slane %v2486, 5
        %v2489 = vor.u32 %v2485, %v2488
        %v2490 = vrot.slane %v2489, 4
        %v2492 = vshll.u32 %v2431, 16
        %v2494 = vrot.slane %v2492, 5
        %v2495 = vsel %vm394, %v2490, %v2494
        %v2497 = vshrl.u32 %v2432, 16
        %v2499 = vrot.slane %v2497, 4
        %v2500 = vshll.u32 %v2432, 16
        %v2502 = vrot.slane %v2500, 5
        %v2503 = vor.u32 %v2499, %v2502
        %v2504 = vrot.slane %v2503, 4
        %v2506 = vshll.u32 %v2433, 16
        %v2508 = vrot.slane %v2506, 5
        %v2509 = vsel %vm394, %v2504, %v2508
        %v2511 = vshrl.u32 %v2434, 16
        %v2513 = vrot.slane %v2511, 4
        %v2514 = vshll.u32 %v2434, 16
        %v2516 = vrot.slane %v2514, 5
        %v2517 = vor.u32 %v2513, %v2516
        %v2518 = vrot.slane %v2517, 4
        %v2520 = vshll.u32 %v2435, 16
        %v2522 = vrot.slane %v2520, 5
        %v2523 = vsel %vm394, %v2518, %v2522
        %v2525 = vshrl.u32 %v2436, 16
        %v2527 = vrot.slane %v2525, 4
        %v2528 = vshll.u32 %v2436, 16
        %v2530 = vrot.slane %v2528, 5
        %v2531 = vor.u32 %v2527, %v2530
        %v2532 = vrot.slane %v2531, 4
        %v2534 = vshll.u32 %v2437, 16
        %v2536 = vrot.slane %v2534, 5
        %v2537 = vsel %vm394, %v2532, %v2536
        %v2539 = vshrl.u32 %v2438, 16
        %v2541 = vrot.slane %v2539, 4
        %v2542 = vshll.u32 %v2438, 16
        %v2544 = vrot.slane %v2542, 5
        %v2545 = vor.u32 %v2541, %v2544
        %v2546 = vrot.slane %v2545, 4
        %v2548 = vshll.u32 %v2439, 16
        %v2550 = vrot.slane %v2548, 5
        %v2551 = vsel %vm394, %v2546, %v2550
        %v2552 = vunpack.c.l.b16 %v2453
        %v2553 = vunpack.c.l.b16 %v2467
        %v2554 = vunpack.c.l.b16 %v2481
        %v2555 = vunpack.c.l.b16 %v2495
        %v2556 = vunpack.c.l.b16 %v2509
        %v2557 = vunpack.c.l.b16 %v2523
        %v2558 = vunpack.c.l.b16 %v2537
        %v2559 = vunpack.c.l.b16 %v2551
        %v2560 = vpack.c.b16 %v2553, %v2552
        %v2561 = vpack.c.b16 %v2555, %v2554
        %v2562 = vpack.c.b16 %v2557, %v2556
        %v2563 = vpack.c.b16 %v2559, %v2558
        %2564 = vrot.lane.b32.xlu0 %v2560, 32
        %v2565 = vpop.permute.xlu0 %2564
        %2566 = vrot.lane.b32.xlu0 %v2561, 32
        %v2567 = vpop.permute.xlu0 %2566
        %2568 = vrot.lane.b32.xlu0 %v2562, 32
        %v2569 = vpop.permute.xlu0 %2568
        %2570 = vrot.lane.b32.xlu0 %v2563, 32
        %v2571 = vpop.permute.xlu0 %2570
        %2576 = vst.msk [vmem:[#allocation2 + $0x40] sm:$0xff] %vm830, %v2565
        %2577 = vst.msk [vmem:[#allocation2 + $0x48] sm:$0xff] %vm830, %v2567
        %2578 = vst.msk [vmem:[#allocation2 + $0x50] sm:$0xff] %vm830, %v2569
        %2579 = vst.msk [vmem:[#allocation2 + $0x58] sm:$0xff] %vm830, %v2571
        %v2580 = vld [vmem:[%s2379] sm:$0xe]
        %v2581 = vld [vmem:[%s2379 + $0x4] sm:$0x1]
        %v2582 = vld [vmem:[%s2379 + $0x8] sm:$0xe]
        %v2583 = vld [vmem:[%s2379 + $0xc] sm:$0x1]
        %v2584 = vld [vmem:[%s2379 + $0x10] sm:$0xe]
        %v2585 = vld [vmem:[%s2379 + $0x14] sm:$0x1]
        %v2586 = vld [vmem:[%s2379 + $0x18] sm:$0xe]
        %v2587 = vld [vmem:[%s2379 + $0x1c] sm:$0x1]
        %v2588 = vld [vmem:[%s2379 + $0x20] sm:$0xe]
        %v2589 = vld [vmem:[%s2379 + $0x24] sm:$0x1]
        %v2590 = vld [vmem:[%s2379 + $0x28] sm:$0xe]
        %v2591 = vld [vmem:[%s2379 + $0x2c] sm:$0x1]
        %v2592 = vld [vmem:[%s2379 + $0x30] sm:$0xe]
        %v2593 = vld [vmem:[%s2379 + $0x34] sm:$0x1]
        %v2594 = vld [vmem:[%s2379 + $0x38] sm:$0xe]
        %v2595 = vld [vmem:[%s2379 + $0x3c] sm:$0x1]
        %v2612 = vrot.slane %v2580, 5
        %v2613 = vrot.slane %v2612, 4
        %v2614 = vrot.slane %v2581, 5
        %v2615 = vsel %vm570, %v2613, %v2614
        %v2616 = vrot.slane %v2582, 5
        %v2617 = vrot.slane %v2616, 4
        %v2618 = vrot.slane %v2583, 5
        %v2619 = vsel %vm570, %v2617, %v2618
        %v2620 = vrot.slane %v2584, 5
        %v2621 = vrot.slane %v2620, 4
        %v2622 = vrot.slane %v2585, 5
        %v2623 = vsel %vm570, %v2621, %v2622
        %v2624 = vrot.slane %v2586, 5
        %v2625 = vrot.slane %v2624, 4
        %v2626 = vrot.slane %v2587, 5
        %v2627 = vsel %vm570, %v2625, %v2626
        %v2628 = vrot.slane %v2588, 5
        %v2629 = vrot.slane %v2628, 4
        %v2630 = vrot.slane %v2589, 5
        %v2631 = vsel %vm570, %v2629, %v2630
        %v2632 = vrot.slane %v2590, 5
        %v2633 = vrot.slane %v2632, 4
        %v2634 = vrot.slane %v2591, 5
        %v2635 = vsel %vm570, %v2633, %v2634
        %v2636 = vrot.slane %v2592, 5
        %v2637 = vrot.slane %v2636, 4
        %v2638 = vrot.slane %v2593, 5
        %v2639 = vsel %vm570, %v2637, %v2638
        %v2640 = vrot.slane %v2594, 5
        %v2641 = vrot.slane %v2640, 4
        %v2642 = vrot.slane %v2595, 5
        %v2643 = vsel %vm570, %v2641, %v2642
        %v2644 = vunpack.c.l.b16 %v2615
        %v2645 = vunpack.c.l.b16 %v2619
        %v2646 = vunpack.c.l.b16 %v2623
        %v2647 = vunpack.c.l.b16 %v2627
        %v2648 = vunpack.c.l.b16 %v2631
        %v2649 = vunpack.c.l.b16 %v2635
        %v2650 = vunpack.c.l.b16 %v2639
        %v2651 = vunpack.c.l.b16 %v2643
        %v2652 = vpack.c.b16 %v2645, %v2644
        %v2653 = vpack.c.b16 %v2647, %v2646
        %v2654 = vpack.c.b16 %v2649, %v2648
        %v2655 = vpack.c.b16 %v2651, %v2650
        %2656 = vrot.lane.b32.xlu0 %v2652, 40
        %v2657 = vpop.permute.xlu0 %2656
        %2658 = vrot.lane.b32.xlu0 %v2653, 40
        %v2659 = vpop.permute.xlu0 %2658
        %2660 = vrot.lane.b32.xlu0 %v2654, 40
        %v2661 = vpop.permute.xlu0 %2660
        %2662 = vrot.lane.b32.xlu0 %v2655, 40
        %v2663 = vpop.permute.xlu0 %2662
        %2668 = vst.msk [vmem:[#allocation2 + $0x40] sm:$0xff] %vm923, %v2657
        %2669 = vst.msk [vmem:[#allocation2 + $0x48] sm:$0xff] %vm923, %v2659
        %2670 = vst.msk [vmem:[#allocation2 + $0x50] sm:$0xff] %vm923, %v2661
        %2671 = vst.msk [vmem:[#allocation2 + $0x58] sm:$0xff] %vm923, %v2663
        %s2672 = scalar_lea.vmem %s272, 16 [#allocation7]
        %v2673 = vld [vmem:[%s2672] sm:$0xf]
        %v2674 = vld [vmem:[%s2672 + $0x8] sm:$0xf]
        %v2675 = vld [vmem:[%s2672 + $0x10] sm:$0xf]
        %v2676 = vld [vmem:[%s2672 + $0x18] sm:$0xf]
        %v2677 = vld [vmem:[%s2672 + $0x20] sm:$0xf]
        %v2678 = vld [vmem:[%s2672 + $0x28] sm:$0xf]
        %v2679 = vld [vmem:[%s2672 + $0x30] sm:$0xf]
        %v2680 = vld [vmem:[%s2672 + $0x38] sm:$0xf]
        %v2689 = vunpack.c.l.b16 %v2673
        %v2690 = vunpack.c.l.b16 %v2674
        %v2691 = vunpack.c.l.b16 %v2675
        %v2692 = vunpack.c.l.b16 %v2676
        %v2693 = vunpack.c.l.b16 %v2677
        %v2694 = vunpack.c.l.b16 %v2678
        %v2695 = vunpack.c.l.b16 %v2679
        %v2696 = vunpack.c.l.b16 %v2680
        %v2697 = vpack.c.b16 %v2690, %v2689
        %v2698 = vpack.c.b16 %v2692, %v2691
        %v2699 = vpack.c.b16 %v2694, %v2693
        %v2700 = vpack.c.b16 %v2696, %v2695
        %2701 = vrot.lane.b32.xlu0 %v2697, 48
        %v2702 = vpop.permute.xlu0 %2701
        %2703 = vrot.lane.b32.xlu0 %v2698, 48
        %v2704 = vpop.permute.xlu0 %2703
        %2705 = vrot.lane.b32.xlu0 %v2699, 48
        %v2706 = vpop.permute.xlu0 %2705
        %2707 = vrot.lane.b32.xlu0 %v2700, 48
        %v2708 = vpop.permute.xlu0 %2707
        %2713 = vst.msk [vmem:[#allocation2 + $0x40] sm:$0xff] %vm969, %v2702
        %2714 = vst.msk [vmem:[#allocation2 + $0x48] sm:$0xff] %vm969, %v2704
        %2715 = vst.msk [vmem:[#allocation2 + $0x50] sm:$0xff] %vm969, %v2706
        %2716 = vst.msk [vmem:[#allocation2 + $0x58] sm:$0xff] %vm969, %v2708
        %v2717 = vld [vmem:[%s2672] sm:$0xf]
        %v2718 = vld [vmem:[%s2672 + $0x4] sm:$0x1]
        %v2719 = vld [vmem:[%s2672 + $0x8] sm:$0xf]
        %v2720 = vld [vmem:[%s2672 + $0xc] sm:$0x1]
        %v2721 = vld [vmem:[%s2672 + $0x10] sm:$0xf]
        %v2722 = vld [vmem:[%s2672 + $0x14] sm:$0x1]
        %v2723 = vld [vmem:[%s2672 + $0x18] sm:$0xf]
        %v2724 = vld [vmem:[%s2672 + $0x1c] sm:$0x1]
        %v2725 = vld [vmem:[%s2672 + $0x20] sm:$0xf]
        %v2726 = vld [vmem:[%s2672 + $0x24] sm:$0x1]
        %v2727 = vld [vmem:[%s2672 + $0x28] sm:$0xf]
        %v2728 = vld [vmem:[%s2672 + $0x2c] sm:$0x1]
        %v2729 = vld [vmem:[%s2672 + $0x30] sm:$0xf]
        %v2730 = vld [vmem:[%s2672 + $0x34] sm:$0x1]
        %v2731 = vld [vmem:[%s2672 + $0x38] sm:$0xf]
        %v2732 = vld [vmem:[%s2672 + $0x3c] sm:$0x1]
        %v2734 = vshrl.u32 %v2717, 16
        %v2736 = vrot.slane %v2734, 4
        %v2737 = vshll.u32 %v2717, 16
        %v2739 = vrot.slane %v2737, 5
        %v2740 = vor.u32 %v2736, %v2739
        %v2741 = vrot.slane %v2740, 4
        %v2743 = vshll.u32 %v2718, 16
        %v2745 = vrot.slane %v2743, 5
        %v2746 = vsel %vm394, %v2741, %v2745
        %v2748 = vshrl.u32 %v2719, 16
        %v2750 = vrot.slane %v2748, 4
        %v2751 = vshll.u32 %v2719, 16
        %v2753 = vrot.slane %v2751, 5
        %v2754 = vor.u32 %v2750, %v2753
        %v2755 = vrot.slane %v2754, 4
        %v2757 = vshll.u32 %v2720, 16
        %v2759 = vrot.slane %v2757, 5
        %v2760 = vsel %vm394, %v2755, %v2759
        %v2762 = vshrl.u32 %v2721, 16
        %v2764 = vrot.slane %v2762, 4
        %v2765 = vshll.u32 %v2721, 16
        %v2767 = vrot.slane %v2765, 5
        %v2768 = vor.u32 %v2764, %v2767
        %v2769 = vrot.slane %v2768, 4
        %v2771 = vshll.u32 %v2722, 16
        %v2773 = vrot.slane %v2771, 5
        %v2774 = vsel %vm394, %v2769, %v2773
        %v2776 = vshrl.u32 %v2723, 16
        %v2778 = vrot.slane %v2776, 4
        %v2779 = vshll.u32 %v2723, 16
        %v2781 = vrot.slane %v2779, 5
        %v2782 = vor.u32 %v2778, %v2781
        %v2783 = vrot.slane %v2782, 4
        %v2785 = vshll.u32 %v2724, 16
        %v2787 = vrot.slane %v2785, 5
        %v2788 = vsel %vm394, %v2783, %v2787
        %v2790 = vshrl.u32 %v2725, 16
        %v2792 = vrot.slane %v2790, 4
        %v2793 = vshll.u32 %v2725, 16
        %v2795 = vrot.slane %v2793, 5
        %v2796 = vor.u32 %v2792, %v2795
        %v2797 = vrot.slane %v2796, 4
        %v2799 = vshll.u32 %v2726, 16
        %v2801 = vrot.slane %v2799, 5
        %v2802 = vsel %vm394, %v2797, %v2801
        %v2804 = vshrl.u32 %v2727, 16
        %v2806 = vrot.slane %v2804, 4
        %v2807 = vshll.u32 %v2727, 16
        %v2809 = vrot.slane %v2807, 5
        %v2810 = vor.u32 %v2806, %v2809
        %v2811 = vrot.slane %v2810, 4
        %v2813 = vshll.u32 %v2728, 16
        %v2815 = vrot.slane %v2813, 5
        %v2816 = vsel %vm394, %v2811, %v2815
        %v2818 = vshrl.u32 %v2729, 16
        %v2820 = vrot.slane %v2818, 4
        %v2821 = vshll.u32 %v2729, 16
        %v2823 = vrot.slane %v2821, 5
        %v2824 = vor.u32 %v2820, %v2823
        %v2825 = vrot.slane %v2824, 4
        %v2827 = vshll.u32 %v2730, 16
        %v2829 = vrot.slane %v2827, 5
        %v2830 = vsel %vm394, %v2825, %v2829
        %v2832 = vshrl.u32 %v2731, 16
        %v2834 = vrot.slane %v2832, 4
        %v2835 = vshll.u32 %v2731, 16
        %v2837 = vrot.slane %v2835, 5
        %v2838 = vor.u32 %v2834, %v2837
        %v2839 = vrot.slane %v2838, 4
        %v2841 = vshll.u32 %v2732, 16
        %v2843 = vrot.slane %v2841, 5
        %v2844 = vsel %vm394, %v2839, %v2843
        %v2845 = vunpack.c.l.b16 %v2746
        %v2846 = vunpack.c.l.b16 %v2760
        %v2847 = vunpack.c.l.b16 %v2774
        %v2848 = vunpack.c.l.b16 %v2788
        %v2849 = vunpack.c.l.b16 %v2802
        %v2850 = vunpack.c.l.b16 %v2816
        %v2851 = vunpack.c.l.b16 %v2830
        %v2852 = vunpack.c.l.b16 %v2844
        %v2853 = vpack.c.b16 %v2846, %v2845
        %v2854 = vpack.c.b16 %v2848, %v2847
        %v2855 = vpack.c.b16 %v2850, %v2849
        %v2856 = vpack.c.b16 %v2852, %v2851
        %2857 = vrot.lane.b32.xlu0 %v2853, 56
        %v2858 = vpop.permute.xlu0 %2857
        %2859 = vrot.lane.b32.xlu0 %v2854, 56
        %v2860 = vpop.permute.xlu0 %2859
        %2861 = vrot.lane.b32.xlu0 %v2855, 56
        %v2862 = vpop.permute.xlu0 %2861
        %2863 = vrot.lane.b32.xlu0 %v2856, 56
        %v2864 = vpop.permute.xlu0 %2863
        %2869 = vst.msk [vmem:[#allocation2 + $0x40] sm:$0xff] %vm1126, %v2858
        %2870 = vst.msk [vmem:[#allocation2 + $0x48] sm:$0xff] %vm1126, %v2860
        %2871 = vst.msk [vmem:[#allocation2 + $0x50] sm:$0xff] %vm1126, %v2862
        %2872 = vst.msk [vmem:[#allocation2 + $0x58] sm:$0xff] %vm1126, %v2864
        %v2873 = vld [vmem:[%s2672] sm:$0xe]
        %v2874 = vld [vmem:[%s2672 + $0x4] sm:$0x1]
        %v2875 = vld [vmem:[%s2672 + $0x8] sm:$0xe]
        %v2876 = vld [vmem:[%s2672 + $0xc] sm:$0x1]
        %v2877 = vld [vmem:[%s2672 + $0x10] sm:$0xe]
        %v2878 = vld [vmem:[%s2672 + $0x14] sm:$0x1]
        %v2879 = vld [vmem:[%s2672 + $0x18] sm:$0xe]
        %v2880 = vld [vmem:[%s2672 + $0x1c] sm:$0x1]
        %v2881 = vld [vmem:[%s2672 + $0x20] sm:$0xe]
        %v2882 = vld [vmem:[%s2672 + $0x24] sm:$0x1]
        %v2883 = vld [vmem:[%s2672 + $0x28] sm:$0xe]
        %v2884 = vld [vmem:[%s2672 + $0x2c] sm:$0x1]
        %v2885 = vld [vmem:[%s2672 + $0x30] sm:$0xe]
        %v2886 = vld [vmem:[%s2672 + $0x34] sm:$0x1]
        %v2887 = vld [vmem:[%s2672 + $0x38] sm:$0xe]
        %v2888 = vld [vmem:[%s2672 + $0x3c] sm:$0x1]
        %v2905 = vrot.slane %v2873, 5
        %v2906 = vrot.slane %v2905, 4
        %v2907 = vrot.slane %v2874, 5
        %v2908 = vsel %vm570, %v2906, %v2907
        %v2909 = vrot.slane %v2875, 5
        %v2910 = vrot.slane %v2909, 4
        %v2911 = vrot.slane %v2876, 5
        %v2912 = vsel %vm570, %v2910, %v2911
        %v2913 = vrot.slane %v2877, 5
        %v2914 = vrot.slane %v2913, 4
        %v2915 = vrot.slane %v2878, 5
        %v2916 = vsel %vm570, %v2914, %v2915
        %v2917 = vrot.slane %v2879, 5
        %v2918 = vrot.slane %v2917, 4
        %v2919 = vrot.slane %v2880, 5
        %v2920 = vsel %vm570, %v2918, %v2919
        %v2921 = vrot.slane %v2881, 5
        %v2922 = vrot.slane %v2921, 4
        %v2923 = vrot.slane %v2882, 5
        %v2924 = vsel %vm570, %v2922, %v2923
        %v2925 = vrot.slane %v2883, 5
        %v2926 = vrot.slane %v2925, 4
        %v2927 = vrot.slane %v2884, 5
        %v2928 = vsel %vm570, %v2926, %v2927
        %v2929 = vrot.slane %v2885, 5
        %v2930 = vrot.slane %v2929, 4
        %v2931 = vrot.slane %v2886, 5
        %v2932 = vsel %vm570, %v2930, %v2931
        %v2933 = vrot.slane %v2887, 5
        %v2934 = vrot.slane %v2933, 4
        %v2935 = vrot.slane %v2888, 5
        %v2936 = vsel %vm570, %v2934, %v2935
        %v2937 = vunpack.c.l.b16 %v2908
        %v2938 = vunpack.c.l.b16 %v2912
        %v2939 = vunpack.c.l.b16 %v2916
        %v2940 = vunpack.c.l.b16 %v2920
        %v2941 = vunpack.c.l.b16 %v2924
        %v2942 = vunpack.c.l.b16 %v2928
        %v2943 = vunpack.c.l.b16 %v2932
        %v2944 = vunpack.c.l.b16 %v2936
        %v2945 = vpack.c.b16 %v2938, %v2937
        %v2946 = vpack.c.b16 %v2940, %v2939
        %v2947 = vpack.c.b16 %v2942, %v2941
        %v2948 = vpack.c.b16 %v2944, %v2943
        %2949 = vrot.lane.b32.xlu0 %v2945, 64
        %v2950 = vpop.permute.xlu0 %2949
        %2951 = vrot.lane.b32.xlu0 %v2946, 64
        %v2952 = vpop.permute.xlu0 %2951
        %2953 = vrot.lane.b32.xlu0 %v2947, 64
        %v2954 = vpop.permute.xlu0 %2953
        %2955 = vrot.lane.b32.xlu0 %v2948, 64
        %v2956 = vpop.permute.xlu0 %2955
        %2961 = vst.msk [vmem:[#allocation2 + $0x40] sm:$0xff] %vm1219, %v2950
        %2962 = vst.msk [vmem:[#allocation2 + $0x48] sm:$0xff] %vm1219, %v2952
        %2963 = vst.msk [vmem:[#allocation2 + $0x50] sm:$0xff] %vm1219, %v2954
        %2964 = vst.msk [vmem:[#allocation2 + $0x58] sm:$0xff] %vm1219, %v2956
        %s2965 = scalar_lea.vmem %s272, 80 [#allocation7]
        %v2966 = vld [vmem:[%s2965] sm:$0xf]
        %v2967 = vld [vmem:[%s2965 + $0x8] sm:$0xf]
        %v2968 = vld [vmem:[%s2965 + $0x10] sm:$0xf]
        %v2969 = vld [vmem:[%s2965 + $0x18] sm:$0xf]
        %v2970 = vld [vmem:[%s2965 + $0x20] sm:$0xf]
        %v2971 = vld [vmem:[%s2965 + $0x28] sm:$0xf]
        %v2972 = vld [vmem:[%s2965 + $0x30] sm:$0xf]
        %v2973 = vld [vmem:[%s2965 + $0x38] sm:$0xf]
        %v2982 = vunpack.c.l.b16 %v2966
        %v2983 = vunpack.c.l.b16 %v2967
        %v2984 = vunpack.c.l.b16 %v2968
        %v2985 = vunpack.c.l.b16 %v2969
        %v2986 = vunpack.c.l.b16 %v2970
        %v2987 = vunpack.c.l.b16 %v2971
        %v2988 = vunpack.c.l.b16 %v2972
        %v2989 = vunpack.c.l.b16 %v2973
        %v2990 = vpack.c.b16 %v2983, %v2982
        %v2991 = vpack.c.b16 %v2985, %v2984
        %v2992 = vpack.c.b16 %v2987, %v2986
        %v2993 = vpack.c.b16 %v2989, %v2988
        %2998 = vst.msk [vmem:[#allocation2 + $0x60] sm:$0xff] %vm371, %v2990
        %2999 = vst.msk [vmem:[#allocation2 + $0x68] sm:$0xff] %vm371, %v2991
        %3000 = vst.msk [vmem:[#allocation2 + $0x70] sm:$0xff] %vm371, %v2992
        %3001 = vst.msk [vmem:[#allocation2 + $0x78] sm:$0xff] %vm371, %v2993
        %v3002 = vld [vmem:[%s2965] sm:$0xf]
        %v3003 = vld [vmem:[%s2965 + $0x4] sm:$0x1]
        %v3004 = vld [vmem:[%s2965 + $0x8] sm:$0xf]
        %v3005 = vld [vmem:[%s2965 + $0xc] sm:$0x1]
        %v3006 = vld [vmem:[%s2965 + $0x10] sm:$0xf]
        %v3007 = vld [vmem:[%s2965 + $0x14] sm:$0x1]
        %v3008 = vld [vmem:[%s2965 + $0x18] sm:$0xf]
        %v3009 = vld [vmem:[%s2965 + $0x1c] sm:$0x1]
        %v3010 = vld [vmem:[%s2965 + $0x20] sm:$0xf]
        %v3011 = vld [vmem:[%s2965 + $0x24] sm:$0x1]
        %v3012 = vld [vmem:[%s2965 + $0x28] sm:$0xf]
        %v3013 = vld [vmem:[%s2965 + $0x2c] sm:$0x1]
        %v3014 = vld [vmem:[%s2965 + $0x30] sm:$0xf]
        %v3015 = vld [vmem:[%s2965 + $0x34] sm:$0x1]
        %v3016 = vld [vmem:[%s2965 + $0x38] sm:$0xf]
        %v3017 = vld [vmem:[%s2965 + $0x3c] sm:$0x1]
        %v3019 = vshrl.u32 %v3002, 16
        %v3021 = vrot.slane %v3019, 4
        %v3022 = vshll.u32 %v3002, 16
        %v3024 = vrot.slane %v3022, 5
        %v3025 = vor.u32 %v3021, %v3024
        %v3026 = vrot.slane %v3025, 4
        %v3028 = vshll.u32 %v3003, 16
        %v3030 = vrot.slane %v3028, 5
        %v3031 = vsel %vm394, %v3026, %v3030
        %v3033 = vshrl.u32 %v3004, 16
        %v3035 = vrot.slane %v3033, 4
        %v3036 = vshll.u32 %v3004, 16
        %v3038 = vrot.slane %v3036, 5
        %v3039 = vor.u32 %v3035, %v3038
        %v3040 = vrot.slane %v3039, 4
        %v3042 = vshll.u32 %v3005, 16
        %v3044 = vrot.slane %v3042, 5
        %v3045 = vsel %vm394, %v3040, %v3044
        %v3047 = vshrl.u32 %v3006, 16
        %v3049 = vrot.slane %v3047, 4
        %v3050 = vshll.u32 %v3006, 16
        %v3052 = vrot.slane %v3050, 5
        %v3053 = vor.u32 %v3049, %v3052
        %v3054 = vrot.slane %v3053, 4
        %v3056 = vshll.u32 %v3007, 16
        %v3058 = vrot.slane %v3056, 5
        %v3059 = vsel %vm394, %v3054, %v3058
        %v3061 = vshrl.u32 %v3008, 16
        %v3063 = vrot.slane %v3061, 4
        %v3064 = vshll.u32 %v3008, 16
        %v3066 = vrot.slane %v3064, 5
        %v3067 = vor.u32 %v3063, %v3066
        %v3068 = vrot.slane %v3067, 4
        %v3070 = vshll.u32 %v3009, 16
        %v3072 = vrot.slane %v3070, 5
        %v3073 = vsel %vm394, %v3068, %v3072
        %v3075 = vshrl.u32 %v3010, 16
        %v3077 = vrot.slane %v3075, 4
        %v3078 = vshll.u32 %v3010, 16
        %v3080 = vrot.slane %v3078, 5
        %v3081 = vor.u32 %v3077, %v3080
        %v3082 = vrot.slane %v3081, 4
        %v3084 = vshll.u32 %v3011, 16
        %v3086 = vrot.slane %v3084, 5
        %v3087 = vsel %vm394, %v3082, %v3086
        %v3089 = vshrl.u32 %v3012, 16
        %v3091 = vrot.slane %v3089, 4
        %v3092 = vshll.u32 %v3012, 16
        %v3094 = vrot.slane %v3092, 5
        %v3095 = vor.u32 %v3091, %v3094
        %v3096 = vrot.slane %v3095, 4
        %v3098 = vshll.u32 %v3013, 16
        %v3100 = vrot.slane %v3098, 5
        %v3101 = vsel %vm394, %v3096, %v3100
        %v3103 = vshrl.u32 %v3014, 16
        %v3105 = vrot.slane %v3103, 4
        %v3106 = vshll.u32 %v3014, 16
        %v3108 = vrot.slane %v3106, 5
        %v3109 = vor.u32 %v3105, %v3108
        %v3110 = vrot.slane %v3109, 4
        %v3112 = vshll.u32 %v3015, 16
        %v3114 = vrot.slane %v3112, 5
        %v3115 = vsel %vm394, %v3110, %v3114
        %v3117 = vshrl.u32 %v3016, 16
        %v3119 = vrot.slane %v3117, 4
        %v3120 = vshll.u32 %v3016, 16
        %v3122 = vrot.slane %v3120, 5
        %v3123 = vor.u32 %v3119, %v3122
        %v3124 = vrot.slane %v3123, 4
        %v3126 = vshll.u32 %v3017, 16
        %v3128 = vrot.slane %v3126, 5
        %v3129 = vsel %vm394, %v3124, %v3128
        %v3130 = vunpack.c.l.b16 %v3031
        %v3131 = vunpack.c.l.b16 %v3045
        %v3132 = vunpack.c.l.b16 %v3059
        %v3133 = vunpack.c.l.b16 %v3073
        %v3134 = vunpack.c.l.b16 %v3087
        %v3135 = vunpack.c.l.b16 %v3101
        %v3136 = vunpack.c.l.b16 %v3115
        %v3137 = vunpack.c.l.b16 %v3129
        %v3138 = vpack.c.b16 %v3131, %v3130
        %v3139 = vpack.c.b16 %v3133, %v3132
        %v3140 = vpack.c.b16 %v3135, %v3134
        %v3141 = vpack.c.b16 %v3137, %v3136
        %3142 = vrot.lane.b32.xlu0 %v3138, 8
        %v3143 = vpop.permute.xlu0 %3142
        %3144 = vrot.lane.b32.xlu0 %v3139, 8
        %v3145 = vpop.permute.xlu0 %3144
        %3146 = vrot.lane.b32.xlu0 %v3140, 8
        %v3147 = vpop.permute.xlu0 %3146
        %3148 = vrot.lane.b32.xlu0 %v3141, 8
        %v3149 = vpop.permute.xlu0 %3148
        %3154 = vst.msk [vmem:[#allocation2 + $0x60] sm:$0xff] %vm531, %v3143
        %3155 = vst.msk [vmem:[#allocation2 + $0x68] sm:$0xff] %vm531, %v3145
        %3156 = vst.msk [vmem:[#allocation2 + $0x70] sm:$0xff] %vm531, %v3147
        %3157 = vst.msk [vmem:[#allocation2 + $0x78] sm:$0xff] %vm531, %v3149
        %v3158 = vld [vmem:[%s2965] sm:$0xe]
        %v3159 = vld [vmem:[%s2965 + $0x4] sm:$0x1]
        %v3160 = vld [vmem:[%s2965 + $0x8] sm:$0xe]
        %v3161 = vld [vmem:[%s2965 + $0xc] sm:$0x1]
        %v3162 = vld [vmem:[%s2965 + $0x10] sm:$0xe]
        %v3163 = vld [vmem:[%s2965 + $0x14] sm:$0x1]
        %v3164 = vld [vmem:[%s2965 + $0x18] sm:$0xe]
        %v3165 = vld [vmem:[%s2965 + $0x1c] sm:$0x1]
        %v3166 = vld [vmem:[%s2965 + $0x20] sm:$0xe]
        %v3167 = vld [vmem:[%s2965 + $0x24] sm:$0x1]
        %v3168 = vld [vmem:[%s2965 + $0x28] sm:$0xe]
        %v3169 = vld [vmem:[%s2965 + $0x2c] sm:$0x1]
        %v3170 = vld [vmem:[%s2965 + $0x30] sm:$0xe]
        %v3171 = vld [vmem:[%s2965 + $0x34] sm:$0x1]
        %v3172 = vld [vmem:[%s2965 + $0x38] sm:$0xe]
        %v3173 = vld [vmem:[%s2965 + $0x3c] sm:$0x1]
        %v3190 = vrot.slane %v3158, 5
        %v3191 = vrot.slane %v3190, 4
        %v3192 = vrot.slane %v3159, 5
        %v3193 = vsel %vm570, %v3191, %v3192
        %v3194 = vrot.slane %v3160, 5
        %v3195 = vrot.slane %v3194, 4
        %v3196 = vrot.slane %v3161, 5
        %v3197 = vsel %vm570, %v3195, %v3196
        %v3198 = vrot.slane %v3162, 5
        %v3199 = vrot.slane %v3198, 4
        %v3200 = vrot.slane %v3163, 5
        %v3201 = vsel %vm570, %v3199, %v3200
        %v3202 = vrot.slane %v3164, 5
        %v3203 = vrot.slane %v3202, 4
        %v3204 = vrot.slane %v3165, 5
        %v3205 = vsel %vm570, %v3203, %v3204
        %v3206 = vrot.slane %v3166, 5
        %v3207 = vrot.slane %v3206, 4
        %v3208 = vrot.slane %v3167, 5
        %v3209 = vsel %vm570, %v3207, %v3208
        %v3210 = vrot.slane %v3168, 5
        %v3211 = vrot.slane %v3210, 4
        %v3212 = vrot.slane %v3169, 5
        %v3213 = vsel %vm570, %v3211, %v3212
        %v3214 = vrot.slane %v3170, 5
        %v3215 = vrot.slane %v3214, 4
        %v3216 = vrot.slane %v3171, 5
        %v3217 = vsel %vm570, %v3215, %v3216
        %v3218 = vrot.slane %v3172, 5
        %v3219 = vrot.slane %v3218, 4
        %v3220 = vrot.slane %v3173, 5
        %v3221 = vsel %vm570, %v3219, %v3220
        %v3222 = vunpack.c.l.b16 %v3193
        %v3223 = vunpack.c.l.b16 %v3197
        %v3224 = vunpack.c.l.b16 %v3201
        %v3225 = vunpack.c.l.b16 %v3205
        %v3226 = vunpack.c.l.b16 %v3209
        %v3227 = vunpack.c.l.b16 %v3213
        %v3228 = vunpack.c.l.b16 %v3217
        %v3229 = vunpack.c.l.b16 %v3221
        %v3230 = vpack.c.b16 %v3223, %v3222
        %v3231 = vpack.c.b16 %v3225, %v3224
        %v3232 = vpack.c.b16 %v3227, %v3226
        %v3233 = vpack.c.b16 %v3229, %v3228
        %3234 = vrot.lane.b32.xlu0 %v3230, 16
        %v3235 = vpop.permute.xlu0 %3234
        %3236 = vrot.lane.b32.xlu0 %v3231, 16
        %v3237 = vpop.permute.xlu0 %3236
        %3238 = vrot.lane.b32.xlu0 %v3232, 16
        %v3239 = vpop.permute.xlu0 %3238
        %3240 = vrot.lane.b32.xlu0 %v3233, 16
        %v3241 = vpop.permute.xlu0 %3240
        %3246 = vst.msk [vmem:[#allocation2 + $0x60] sm:$0xff] %vm627, %v3235
        %3247 = vst.msk [vmem:[#allocation2 + $0x68] sm:$0xff] %vm627, %v3237
        %3248 = vst.msk [vmem:[#allocation2 + $0x70] sm:$0xff] %vm627, %v3239
        %3249 = vst.msk [vmem:[#allocation2 + $0x78] sm:$0xff] %vm627, %v3241
        %s3250 = scalar_lea.vmem %s272, 88 [#allocation7]
        %v3251 = vld [vmem:[%s3250] sm:$0xf]
        %v3252 = vld [vmem:[%s3250 + $0x8] sm:$0xf]
        %v3253 = vld [vmem:[%s3250 + $0x10] sm:$0xf]
        %v3254 = vld [vmem:[%s3250 + $0x18] sm:$0xf]
        %v3255 = vld [vmem:[%s3250 + $0x20] sm:$0xf]
        %v3256 = vld [vmem:[%s3250 + $0x28] sm:$0xf]
        %v3257 = vld [vmem:[%s3250 + $0x30] sm:$0xf]
        %v3258 = vld [vmem:[%s3250 + $0x38] sm:$0xf]
        %v3267 = vunpack.c.l.b16 %v3251
        %v3268 = vunpack.c.l.b16 %v3252
        %v3269 = vunpack.c.l.b16 %v3253
        %v3270 = vunpack.c.l.b16 %v3254
        %v3271 = vunpack.c.l.b16 %v3255
        %v3272 = vunpack.c.l.b16 %v3256
        %v3273 = vunpack.c.l.b16 %v3257
        %v3274 = vunpack.c.l.b16 %v3258
        %v3275 = vpack.c.b16 %v3268, %v3267
        %v3276 = vpack.c.b16 %v3270, %v3269
        %v3277 = vpack.c.b16 %v3272, %v3271
        %v3278 = vpack.c.b16 %v3274, %v3273
        %3279 = vrot.lane.b32.xlu0 %v3275, 24
        %v3280 = vpop.permute.xlu0 %3279
        %3281 = vrot.lane.b32.xlu0 %v3276, 24
        %v3282 = vpop.permute.xlu0 %3281
        %3283 = vrot.lane.b32.xlu0 %v3277, 24
        %v3284 = vpop.permute.xlu0 %3283
        %3285 = vrot.lane.b32.xlu0 %v3278, 24
        %v3286 = vpop.permute.xlu0 %3285
        %3291 = vst.msk [vmem:[#allocation2 + $0x60] sm:$0xff] %vm673, %v3280
        %3292 = vst.msk [vmem:[#allocation2 + $0x68] sm:$0xff] %vm673, %v3282
        %3293 = vst.msk [vmem:[#allocation2 + $0x70] sm:$0xff] %vm673, %v3284
        %3294 = vst.msk [vmem:[#allocation2 + $0x78] sm:$0xff] %vm673, %v3286
        %v3295 = vld [vmem:[%s3250] sm:$0xf]
        %v3296 = vld [vmem:[%s3250 + $0x4] sm:$0x1]
        %v3297 = vld [vmem:[%s3250 + $0x8] sm:$0xf]
        %v3298 = vld [vmem:[%s3250 + $0xc] sm:$0x1]
        %v3299 = vld [vmem:[%s3250 + $0x10] sm:$0xf]
        %v3300 = vld [vmem:[%s3250 + $0x14] sm:$0x1]
        %v3301 = vld [vmem:[%s3250 + $0x18] sm:$0xf]
        %v3302 = vld [vmem:[%s3250 + $0x1c] sm:$0x1]
        %v3303 = vld [vmem:[%s3250 + $0x20] sm:$0xf]
        %v3304 = vld [vmem:[%s3250 + $0x24] sm:$0x1]
        %v3305 = vld [vmem:[%s3250 + $0x28] sm:$0xf]
        %v3306 = vld [vmem:[%s3250 + $0x2c] sm:$0x1]
        %v3307 = vld [vmem:[%s3250 + $0x30] sm:$0xf]
        %v3308 = vld [vmem:[%s3250 + $0x34] sm:$0x1]
        %v3309 = vld [vmem:[%s3250 + $0x38] sm:$0xf]
        %v3310 = vld [vmem:[%s3250 + $0x3c] sm:$0x1]
        %v3312 = vshrl.u32 %v3295, 16
        %v3314 = vrot.slane %v3312, 4
        %v3315 = vshll.u32 %v3295, 16
        %v3317 = vrot.slane %v3315, 5
        %v3318 = vor.u32 %v3314, %v3317
        %v3319 = vrot.slane %v3318, 4
        %v3321 = vshll.u32 %v3296, 16
        %v3323 = vrot.slane %v3321, 5
        %v3324 = vsel %vm394, %v3319, %v3323
        %v3326 = vshrl.u32 %v3297, 16
        %v3328 = vrot.slane %v3326, 4
        %v3329 = vshll.u32 %v3297, 16
        %v3331 = vrot.slane %v3329, 5
        %v3332 = vor.u32 %v3328, %v3331
        %v3333 = vrot.slane %v3332, 4
        %v3335 = vshll.u32 %v3298, 16
        %v3337 = vrot.slane %v3335, 5
        %v3338 = vsel %vm394, %v3333, %v3337
        %v3340 = vshrl.u32 %v3299, 16
        %v3342 = vrot.slane %v3340, 4
        %v3343 = vshll.u32 %v3299, 16
        %v3345 = vrot.slane %v3343, 5
        %v3346 = vor.u32 %v3342, %v3345
        %v3347 = vrot.slane %v3346, 4
        %v3349 = vshll.u32 %v3300, 16
        %v3351 = vrot.slane %v3349, 5
        %v3352 = vsel %vm394, %v3347, %v3351
        %v3354 = vshrl.u32 %v3301, 16
        %v3356 = vrot.slane %v3354, 4
        %v3357 = vshll.u32 %v3301, 16
        %v3359 = vrot.slane %v3357, 5
        %v3360 = vor.u32 %v3356, %v3359
        %v3361 = vrot.slane %v3360, 4
        %v3363 = vshll.u32 %v3302, 16
        %v3365 = vrot.slane %v3363, 5
        %v3366 = vsel %vm394, %v3361, %v3365
        %v3368 = vshrl.u32 %v3303, 16
        %v3370 = vrot.slane %v3368, 4
        %v3371 = vshll.u32 %v3303, 16
        %v3373 = vrot.slane %v3371, 5
        %v3374 = vor.u32 %v3370, %v3373
        %v3375 = vrot.slane %v3374, 4
        %v3377 = vshll.u32 %v3304, 16
        %v3379 = vrot.slane %v3377, 5
        %v3380 = vsel %vm394, %v3375, %v3379
        %v3382 = vshrl.u32 %v3305, 16
        %v3384 = vrot.slane %v3382, 4
        %v3385 = vshll.u32 %v3305, 16
        %v3387 = vrot.slane %v3385, 5
        %v3388 = vor.u32 %v3384, %v3387
        %v3389 = vrot.slane %v3388, 4
        %v3391 = vshll.u32 %v3306, 16
        %v3393 = vrot.slane %v3391, 5
        %v3394 = vsel %vm394, %v3389, %v3393
        %v3396 = vshrl.u32 %v3307, 16
        %v3398 = vrot.slane %v3396, 4
        %v3399 = vshll.u32 %v3307, 16
        %v3401 = vrot.slane %v3399, 5
        %v3402 = vor.u32 %v3398, %v3401
        %v3403 = vrot.slane %v3402, 4
        %v3405 = vshll.u32 %v3308, 16
        %v3407 = vrot.slane %v3405, 5
        %v3408 = vsel %vm394, %v3403, %v3407
        %v3410 = vshrl.u32 %v3309, 16
        %v3412 = vrot.slane %v3410, 4
        %v3413 = vshll.u32 %v3309, 16
        %v3415 = vrot.slane %v3413, 5
        %v3416 = vor.u32 %v3412, %v3415
        %v3417 = vrot.slane %v3416, 4
        %v3419 = vshll.u32 %v3310, 16
        %v3421 = vrot.slane %v3419, 5
        %v3422 = vsel %vm394, %v3417, %v3421
        %v3423 = vunpack.c.l.b16 %v3324
        %v3424 = vunpack.c.l.b16 %v3338
        %v3425 = vunpack.c.l.b16 %v3352
        %v3426 = vunpack.c.l.b16 %v3366
        %v3427 = vunpack.c.l.b16 %v3380
        %v3428 = vunpack.c.l.b16 %v3394
        %v3429 = vunpack.c.l.b16 %v3408
        %v3430 = vunpack.c.l.b16 %v3422
        %v3431 = vpack.c.b16 %v3424, %v3423
        %v3432 = vpack.c.b16 %v3426, %v3425
        %v3433 = vpack.c.b16 %v3428, %v3427
        %v3434 = vpack.c.b16 %v3430, %v3429
        %3435 = vrot.lane.b32.xlu0 %v3431, 32
        %v3436 = vpop.permute.xlu0 %3435
        %3437 = vrot.lane.b32.xlu0 %v3432, 32
        %v3438 = vpop.permute.xlu0 %3437
        %3439 = vrot.lane.b32.xlu0 %v3433, 32
        %v3440 = vpop.permute.xlu0 %3439
        %3441 = vrot.lane.b32.xlu0 %v3434, 32
        %v3442 = vpop.permute.xlu0 %3441
        %3447 = vst.msk [vmem:[#allocation2 + $0x60] sm:$0xff] %vm830, %v3436
        %3448 = vst.msk [vmem:[#allocation2 + $0x68] sm:$0xff] %vm830, %v3438
        %3449 = vst.msk [vmem:[#allocation2 + $0x70] sm:$0xff] %vm830, %v3440
        %3450 = vst.msk [vmem:[#allocation2 + $0x78] sm:$0xff] %vm830, %v3442
        %v3451 = vld [vmem:[%s3250] sm:$0xe]
        %v3452 = vld [vmem:[%s3250 + $0x4] sm:$0x1]
        %v3453 = vld [vmem:[%s3250 + $0x8] sm:$0xe]
        %v3454 = vld [vmem:[%s3250 + $0xc] sm:$0x1]
        %v3455 = vld [vmem:[%s3250 + $0x10] sm:$0xe]
        %v3456 = vld [vmem:[%s3250 + $0x14] sm:$0x1]
        %v3457 = vld [vmem:[%s3250 + $0x18] sm:$0xe]
        %v3458 = vld [vmem:[%s3250 + $0x1c] sm:$0x1]
        %v3459 = vld [vmem:[%s3250 + $0x20] sm:$0xe]
        %v3460 = vld [vmem:[%s3250 + $0x24] sm:$0x1]
        %v3461 = vld [vmem:[%s3250 + $0x28] sm:$0xe]
        %v3462 = vld [vmem:[%s3250 + $0x2c] sm:$0x1]
        %v3463 = vld [vmem:[%s3250 + $0x30] sm:$0xe]
        %v3464 = vld [vmem:[%s3250 + $0x34] sm:$0x1]
        %v3465 = vld [vmem:[%s3250 + $0x38] sm:$0xe]
        %v3466 = vld [vmem:[%s3250 + $0x3c] sm:$0x1]
        %v3483 = vrot.slane %v3451, 5
        %v3484 = vrot.slane %v3483, 4
        %v3485 = vrot.slane %v3452, 5
        %v3486 = vsel %vm570, %v3484, %v3485
        %v3487 = vrot.slane %v3453, 5
        %v3488 = vrot.slane %v3487, 4
        %v3489 = vrot.slane %v3454, 5
        %v3490 = vsel %vm570, %v3488, %v3489
        %v3491 = vrot.slane %v3455, 5
        %v3492 = vrot.slane %v3491, 4
        %v3493 = vrot.slane %v3456, 5
        %v3494 = vsel %vm570, %v3492, %v3493
        %v3495 = vrot.slane %v3457, 5
        %v3496 = vrot.slane %v3495, 4
        %v3497 = vrot.slane %v3458, 5
        %v3498 = vsel %vm570, %v3496, %v3497
        %v3499 = vrot.slane %v3459, 5
        %v3500 = vrot.slane %v3499, 4
        %v3501 = vrot.slane %v3460, 5
        %v3502 = vsel %vm570, %v3500, %v3501
        %v3503 = vrot.slane %v3461, 5
        %v3504 = vrot.slane %v3503, 4
        %v3505 = vrot.slane %v3462, 5
        %v3506 = vsel %vm570, %v3504, %v3505
        %v3507 = vrot.slane %v3463, 5
        %v3508 = vrot.slane %v3507, 4
        %v3509 = vrot.slane %v3464, 5
        %v3510 = vsel %vm570, %v3508, %v3509
        %v3511 = vrot.slane %v3465, 5
        %v3512 = vrot.slane %v3511, 4
        %v3513 = vrot.slane %v3466, 5
        %v3514 = vsel %vm570, %v3512, %v3513
        %v3515 = vunpack.c.l.b16 %v3486
        %v3516 = vunpack.c.l.b16 %v3490
        %v3517 = vunpack.c.l.b16 %v3494
        %v3518 = vunpack.c.l.b16 %v3498
        %v3519 = vunpack.c.l.b16 %v3502
        %v3520 = vunpack.c.l.b16 %v3506
        %v3521 = vunpack.c.l.b16 %v3510
        %v3522 = vunpack.c.l.b16 %v3514
        %v3523 = vpack.c.b16 %v3516, %v3515
        %v3524 = vpack.c.b16 %v3518, %v3517
        %v3525 = vpack.c.b16 %v3520, %v3519
        %v3526 = vpack.c.b16 %v3522, %v3521
        %3527 = vrot.lane.b32.xlu0 %v3523, 40
        %v3528 = vpop.permute.xlu0 %3527
        %3529 = vrot.lane.b32.xlu0 %v3524, 40
        %v3530 = vpop.permute.xlu0 %3529
        %3531 = vrot.lane.b32.xlu0 %v3525, 40
        %v3532 = vpop.permute.xlu0 %3531
        %3533 = vrot.lane.b32.xlu0 %v3526, 40
        %v3534 = vpop.permute.xlu0 %3533
        %3539 = vst.msk [vmem:[#allocation2 + $0x60] sm:$0xff] %vm923, %v3528
        %3540 = vst.msk [vmem:[#allocation2 + $0x68] sm:$0xff] %vm923, %v3530
        %3541 = vst.msk [vmem:[#allocation2 + $0x70] sm:$0xff] %vm923, %v3532
        %3542 = vst.msk [vmem:[#allocation2 + $0x78] sm:$0xff] %vm923, %v3534
        %s3543 = scalar_lea.vmem %s272, 96 [#allocation7]
        %v3544 = vld [vmem:[%s3543] sm:$0xf]
        %v3545 = vld [vmem:[%s3543 + $0x8] sm:$0xf]
        %v3546 = vld [vmem:[%s3543 + $0x10] sm:$0xf]
        %v3547 = vld [vmem:[%s3543 + $0x18] sm:$0xf]
        %v3548 = vld [vmem:[%s3543 + $0x20] sm:$0xf]
        %v3549 = vld [vmem:[%s3543 + $0x28] sm:$0xf]
        %v3550 = vld [vmem:[%s3543 + $0x30] sm:$0xf]
        %v3551 = vld [vmem:[%s3543 + $0x38] sm:$0xf]
        %v3560 = vunpack.c.l.b16 %v3544
        %v3561 = vunpack.c.l.b16 %v3545
        %v3562 = vunpack.c.l.b16 %v3546
        %v3563 = vunpack.c.l.b16 %v3547
        %v3564 = vunpack.c.l.b16 %v3548
        %v3565 = vunpack.c.l.b16 %v3549
        %v3566 = vunpack.c.l.b16 %v3550
        %v3567 = vunpack.c.l.b16 %v3551
        %v3568 = vpack.c.b16 %v3561, %v3560
        %v3569 = vpack.c.b16 %v3563, %v3562
        %v3570 = vpack.c.b16 %v3565, %v3564
        %v3571 = vpack.c.b16 %v3567, %v3566
        %3572 = vrot.lane.b32.xlu0 %v3568, 48
        %v3573 = vpop.permute.xlu0 %3572
        %3574 = vrot.lane.b32.xlu0 %v3569, 48
        %v3575 = vpop.permute.xlu0 %3574
        %3576 = vrot.lane.b32.xlu0 %v3570, 48
        %v3577 = vpop.permute.xlu0 %3576
        %3578 = vrot.lane.b32.xlu0 %v3571, 48
        %v3579 = vpop.permute.xlu0 %3578
        %3584 = vst.msk [vmem:[#allocation2 + $0x60] sm:$0xff] %vm969, %v3573
        %3585 = vst.msk [vmem:[#allocation2 + $0x68] sm:$0xff] %vm969, %v3575
        %3586 = vst.msk [vmem:[#allocation2 + $0x70] sm:$0xff] %vm969, %v3577
        %3587 = vst.msk [vmem:[#allocation2 + $0x78] sm:$0xff] %vm969, %v3579
        %v3588 = vld [vmem:[%s3543] sm:$0xf]
        %v3589 = vld [vmem:[%s3543 + $0x4] sm:$0x1]
        %v3590 = vld [vmem:[%s3543 + $0x8] sm:$0xf]
        %v3591 = vld [vmem:[%s3543 + $0xc] sm:$0x1]
        %v3592 = vld [vmem:[%s3543 + $0x10] sm:$0xf]
        %v3593 = vld [vmem:[%s3543 + $0x14] sm:$0x1]
        %v3594 = vld [vmem:[%s3543 + $0x18] sm:$0xf]
        %v3595 = vld [vmem:[%s3543 + $0x1c] sm:$0x1]
        %v3596 = vld [vmem:[%s3543 + $0x20] sm:$0xf]
        %v3597 = vld [vmem:[%s3543 + $0x24] sm:$0x1]
        %v3598 = vld [vmem:[%s3543 + $0x28] sm:$0xf]
        %v3599 = vld [vmem:[%s3543 + $0x2c] sm:$0x1]
        %v3600 = vld [vmem:[%s3543 + $0x30] sm:$0xf]
        %v3601 = vld [vmem:[%s3543 + $0x34] sm:$0x1]
        %v3602 = vld [vmem:[%s3543 + $0x38] sm:$0xf]
        %v3603 = vld [vmem:[%s3543 + $0x3c] sm:$0x1]
        %v3605 = vshrl.u32 %v3588, 16
        %v3607 = vrot.slane %v3605, 4
        %v3608 = vshll.u32 %v3588, 16
        %v3610 = vrot.slane %v3608, 5
        %v3611 = vor.u32 %v3607, %v3610
        %v3612 = vrot.slane %v3611, 4
        %v3614 = vshll.u32 %v3589, 16
        %v3616 = vrot.slane %v3614, 5
        %v3617 = vsel %vm394, %v3612, %v3616
        %v3619 = vshrl.u32 %v3590, 16
        %v3621 = vrot.slane %v3619, 4
        %v3622 = vshll.u32 %v3590, 16
        %v3624 = vrot.slane %v3622, 5
        %v3625 = vor.u32 %v3621, %v3624
        %v3626 = vrot.slane %v3625, 4
        %v3628 = vshll.u32 %v3591, 16
        %v3630 = vrot.slane %v3628, 5
        %v3631 = vsel %vm394, %v3626, %v3630
        %v3633 = vshrl.u32 %v3592, 16
        %v3635 = vrot.slane %v3633, 4
        %v3636 = vshll.u32 %v3592, 16
        %v3638 = vrot.slane %v3636, 5
        %v3639 = vor.u32 %v3635, %v3638
        %v3640 = vrot.slane %v3639, 4
        %v3642 = vshll.u32 %v3593, 16
        %v3644 = vrot.slane %v3642, 5
        %v3645 = vsel %vm394, %v3640, %v3644
        %v3647 = vshrl.u32 %v3594, 16
        %v3649 = vrot.slane %v3647, 4
        %v3650 = vshll.u32 %v3594, 16
        %v3652 = vrot.slane %v3650, 5
        %v3653 = vor.u32 %v3649, %v3652
        %v3654 = vrot.slane %v3653, 4
        %v3656 = vshll.u32 %v3595, 16
        %v3658 = vrot.slane %v3656, 5
        %v3659 = vsel %vm394, %v3654, %v3658
        %v3661 = vshrl.u32 %v3596, 16
        %v3663 = vrot.slane %v3661, 4
        %v3664 = vshll.u32 %v3596, 16
        %v3666 = vrot.slane %v3664, 5
        %v3667 = vor.u32 %v3663, %v3666
        %v3668 = vrot.slane %v3667, 4
        %v3670 = vshll.u32 %v3597, 16
        %v3672 = vrot.slane %v3670, 5
        %v3673 = vsel %vm394, %v3668, %v3672
        %v3675 = vshrl.u32 %v3598, 16
        %v3677 = vrot.slane %v3675, 4
        %v3678 = vshll.u32 %v3598, 16
        %v3680 = vrot.slane %v3678, 5
        %v3681 = vor.u32 %v3677, %v3680
        %v3682 = vrot.slane %v3681, 4
        %v3684 = vshll.u32 %v3599, 16
        %v3686 = vrot.slane %v3684, 5
        %v3687 = vsel %vm394, %v3682, %v3686
        %v3689 = vshrl.u32 %v3600, 16
        %v3691 = vrot.slane %v3689, 4
        %v3692 = vshll.u32 %v3600, 16
        %v3694 = vrot.slane %v3692, 5
        %v3695 = vor.u32 %v3691, %v3694
        %v3696 = vrot.slane %v3695, 4
        %v3698 = vshll.u32 %v3601, 16
        %v3700 = vrot.slane %v3698, 5
        %v3701 = vsel %vm394, %v3696, %v3700
        %v3703 = vshrl.u32 %v3602, 16
        %v3705 = vrot.slane %v3703, 4
        %v3706 = vshll.u32 %v3602, 16
        %v3708 = vrot.slane %v3706, 5
        %v3709 = vor.u32 %v3705, %v3708
        %v3710 = vrot.slane %v3709, 4
        %v3712 = vshll.u32 %v3603, 16
        %v3714 = vrot.slane %v3712, 5
        %v3715 = vsel %vm394, %v3710, %v3714
        %v3716 = vunpack.c.l.b16 %v3617
        %v3717 = vunpack.c.l.b16 %v3631
        %v3718 = vunpack.c.l.b16 %v3645
        %v3719 = vunpack.c.l.b16 %v3659
        %v3720 = vunpack.c.l.b16 %v3673
        %v3721 = vunpack.c.l.b16 %v3687
        %v3722 = vunpack.c.l.b16 %v3701
        %v3723 = vunpack.c.l.b16 %v3715
        %v3724 = vpack.c.b16 %v3717, %v3716
        %v3725 = vpack.c.b16 %v3719, %v3718
        %v3726 = vpack.c.b16 %v3721, %v3720
        %v3727 = vpack.c.b16 %v3723, %v3722
        %3728 = vrot.lane.b32.xlu0 %v3724, 56
        %v3729 = vpop.permute.xlu0 %3728
        %3730 = vrot.lane.b32.xlu0 %v3725, 56
        %v3731 = vpop.permute.xlu0 %3730
        %3732 = vrot.lane.b32.xlu0 %v3726, 56
        %v3733 = vpop.permute.xlu0 %3732
        %3734 = vrot.lane.b32.xlu0 %v3727, 56
        %v3735 = vpop.permute.xlu0 %3734
        %3740 = vst.msk [vmem:[#allocation2 + $0x60] sm:$0xff] %vm1126, %v3729
        %3741 = vst.msk [vmem:[#allocation2 + $0x68] sm:$0xff] %vm1126, %v3731
        %3742 = vst.msk [vmem:[#allocation2 + $0x70] sm:$0xff] %vm1126, %v3733
        %3743 = vst.msk [vmem:[#allocation2 + $0x78] sm:$0xff] %vm1126, %v3735
        %v3744 = vld [vmem:[%s3543] sm:$0xe]
        %v3745 = vld [vmem:[%s3543 + $0x4] sm:$0x1]
        %v3746 = vld [vmem:[%s3543 + $0x8] sm:$0xe]
        %v3747 = vld [vmem:[%s3543 + $0xc] sm:$0x1]
        %v3748 = vld [vmem:[%s3543 + $0x10] sm:$0xe]
        %v3749 = vld [vmem:[%s3543 + $0x14] sm:$0x1]
        %v3750 = vld [vmem:[%s3543 + $0x18] sm:$0xe]
        %v3751 = vld [vmem:[%s3543 + $0x1c] sm:$0x1]
        %v3752 = vld [vmem:[%s3543 + $0x20] sm:$0xe]
        %v3753 = vld [vmem:[%s3543 + $0x24] sm:$0x1]
        %v3754 = vld [vmem:[%s3543 + $0x28] sm:$0xe]
        %v3755 = vld [vmem:[%s3543 + $0x2c] sm:$0x1]
        %v3756 = vld [vmem:[%s3543 + $0x30] sm:$0xe]
        %v3757 = vld [vmem:[%s3543 + $0x34] sm:$0x1]
        %v3758 = vld [vmem:[%s3543 + $0x38] sm:$0xe]
        %v3759 = vld [vmem:[%s3543 + $0x3c] sm:$0x1]
        %v3776 = vrot.slane %v3744, 5
        %v3777 = vrot.slane %v3776, 4
        %v3778 = vrot.slane %v3745, 5
        %v3779 = vsel %vm570, %v3777, %v3778
        %v3780 = vrot.slane %v3746, 5
        %v3781 = vrot.slane %v3780, 4
        %v3782 = vrot.slane %v3747, 5
        %v3783 = vsel %vm570, %v3781, %v3782
        %v3784 = vrot.slane %v3748, 5
        %v3785 = vrot.slane %v3784, 4
        %v3786 = vrot.slane %v3749, 5
        %v3787 = vsel %vm570, %v3785, %v3786
        %v3788 = vrot.slane %v3750, 5
        %v3789 = vrot.slane %v3788, 4
        %v3790 = vrot.slane %v3751, 5
        %v3791 = vsel %vm570, %v3789, %v3790
        %v3792 = vrot.slane %v3752, 5
        %v3793 = vrot.slane %v3792, 4
        %v3794 = vrot.slane %v3753, 5
        %v3795 = vsel %vm570, %v3793, %v3794
        %v3796 = vrot.slane %v3754, 5
        %v3797 = vrot.slane %v3796, 4
        %v3798 = vrot.slane %v3755, 5
        %v3799 = vsel %vm570, %v3797, %v3798
        %v3800 = vrot.slane %v3756, 5
        %v3801 = vrot.slane %v3800, 4
        %v3802 = vrot.slane %v3757, 5
        %v3803 = vsel %vm570, %v3801, %v3802
        %v3804 = vrot.slane %v3758, 5
        %v3805 = vrot.slane %v3804, 4
        %v3806 = vrot.slane %v3759, 5
        %v3807 = vsel %vm570, %v3805, %v3806
        %v3808 = vunpack.c.l.b16 %v3779
        %v3809 = vunpack.c.l.b16 %v3783
        %v3810 = vunpack.c.l.b16 %v3787
        %v3811 = vunpack.c.l.b16 %v3791
        %v3812 = vunpack.c.l.b16 %v3795
        %v3813 = vunpack.c.l.b16 %v3799
        %v3814 = vunpack.c.l.b16 %v3803
        %v3815 = vunpack.c.l.b16 %v3807
        %v3816 = vpack.c.b16 %v3809, %v3808
        %v3817 = vpack.c.b16 %v3811, %v3810
        %v3818 = vpack.c.b16 %v3813, %v3812
        %v3819 = vpack.c.b16 %v3815, %v3814
        %3820 = vrot.lane.b32.xlu0 %v3816, 64
        %v3821 = vpop.permute.xlu0 %3820
        %3822 = vrot.lane.b32.xlu0 %v3817, 64
        %v3823 = vpop.permute.xlu0 %3822
        %3824 = vrot.lane.b32.xlu0 %v3818, 64
        %v3825 = vpop.permute.xlu0 %3824
        %3826 = vrot.lane.b32.xlu0 %v3819, 64
        %v3827 = vpop.permute.xlu0 %3826
        %3832 = vst.msk [vmem:[#allocation2 + $0x60] sm:$0xff] %vm1219, %v3821
        %3833 = vst.msk [vmem:[#allocation2 + $0x68] sm:$0xff] %vm1219, %v3823
        %3834 = vst.msk [vmem:[#allocation2 + $0x70] sm:$0xff] %vm1219, %v3825
        %3835 = vst.msk [vmem:[#allocation2 + $0x78] sm:$0xff] %vm1219, %v3827
        %v3836 = vld [vmem:[#allocation2] sm:$0xff]
        %v3837 = vld [vmem:[#allocation2 + $0x8] sm:$0xff]
        %v3838 = vld [vmem:[#allocation2 + $0x10] sm:$0xff]
        %v3839 = vld [vmem:[#allocation2 + $0x18] sm:$0xff]
        %v3840 = vld [vmem:[#allocation2 + $0x20] sm:$0xff]
        %v3841 = vld [vmem:[#allocation2 + $0x28] sm:$0xff]
        %v3842 = vld [vmem:[#allocation2 + $0x30] sm:$0xff]
        %v3843 = vld [vmem:[#allocation2 + $0x38] sm:$0xff]
        %v3844 = vld [vmem:[#allocation3] sm:$0xff]
        %v3845 = vld [vmem:[#allocation3 + $0x8] sm:$0xff]
        %v3846 = vld [vmem:[#allocation3 + $0x10] sm:$0xff]
        %v3847 = vld [vmem:[#allocation3 + $0x18] sm:$0xff]
        %v3848 = vld [vmem:[#allocation3 + $0x20] sm:$0xff]
        %v3849 = vld [vmem:[#allocation3 + $0x28] sm:$0xff]
        %v3850 = vld [vmem:[#allocation3 + $0x30] sm:$0xff]
        %v3851 = vld [vmem:[#allocation3 + $0x38] sm:$0xff]
        %v3852 = vld [vmem:[#allocation3 + $0x40] sm:$0xff]
        %v3853 = vld [vmem:[#allocation3 + $0x48] sm:$0xff]
        %v3854 = vld [vmem:[#allocation3 + $0x50] sm:$0xff]
        %v3855 = vld [vmem:[#allocation3 + $0x58] sm:$0xff]
        %v3856 = vld [vmem:[#allocation3 + $0x60] sm:$0xff]
        %v3857 = vld [vmem:[#allocation3 + $0x68] sm:$0xff]
        %v3858 = vld [vmem:[#allocation3 + $0x70] sm:$0xff]
        %v3859 = vld [vmem:[#allocation3 + $0x78] sm:$0xff]
        %v3860 = vld [vmem:[#allocation9] sm:$0xf]
        %v3861 = vld [vmem:[#allocation9 + $0x4] sm:$0xf]
        %v3862 = vld [vmem:[#allocation9 + $0x8] sm:$0xf]
        %v3863 = vld [vmem:[#allocation9 + $0xc] sm:$0xf]
        %v3864 = vld [vmem:[#allocation9 + $0x10] sm:$0xf]
        %v3865 = vld [vmem:[#allocation9 + $0x14] sm:$0xf]
        %v3866 = vld [vmem:[#allocation9 + $0x18] sm:$0xf]
        %v3867 = vld [vmem:[#allocation9 + $0x1c] sm:$0xf]
        %v3868 = vld [vmem:[#allocation9 + $0x20] sm:$0xf]
        %v3878 = vunpack.c.l.b16 %v3860
        %v3879 = vunpack.c.l.b16 %v3861
        %v3880 = vunpack.c.l.b16 %v3862
        %v3881 = vunpack.c.l.b16 %v3863
        %v3882 = vunpack.c.l.b16 %v3864
        %v3883 = vunpack.c.l.b16 %v3865
        %v3884 = vunpack.c.l.b16 %v3866
        %v3885 = vunpack.c.l.b16 %v3867
        %v3886 = vunpack.c.l.b16 %v3868
        %v3887 = vpack.c.b16 %v3879, %v3878
        %v3888 = vpack.c.b16 %v3881, %v3880
        %v3889 = vpack.c.b16 %v3883, %v3882
        %v3890 = vpack.c.b16 %v3885, %v3884
        %v3891 = vpack.c.b16 %v3886, %v3886
        %vm3896 = vcmask 588800
        %v3898 = vsel %vm3896, %v3836, 0
        %v3901 = vsel %vm3896, %v3837, 0
        %v3904 = vsel %vm3896, %v3838, 0
        %v3907 = vsel %vm3896, %v3839, 0
        %v3910 = vsel %vm3896, %v3840, 0
        %v3913 = vsel %vm3896, %v3841, 0
        %v3916 = vsel %vm3896, %v3842, 0
        %v3919 = vsel %vm3896, %v3843, 0
        %vm3921 = vcmask 1043456
        %v3923 = vsel %vm3921, %v3891, 0
        %3925 = vmatprep.subr.bf16.mxu0 0
        %3926 = vmatpush1.bf16.msra.mxu0 %v3887
        %3927 = vmatprep.subr.bf16.mxu0 0
        %3928 = vmatpush1.bf16.msra.mxu0 %v3888
        %3929 = vmatprep.subr.bf16.mxu0 0
        %3930 = vmatpush1.bf16.msra.mxu0 %v3889
        %3931 = vmatprep.subr.bf16.mxu0 0
        %3932 = vmatpush1.bf16.msra.mxu0 %v3890
        %3933 = vmatprep.subr.bf16.mxu0 0
        %3934 = vmatpush1.bf16.msra.mxu0 %v3923
        %3935 = vmatprep.subr.bf16.mxu0 0
        %3936 = vmatpush1.bf16.msra.mxu0 0
        %3937 = vmatprep.subr.bf16.mxu0 0
        %3938 = vmatpush1.bf16.msra.mxu0 0
        %3939 = vmatprep.subr.bf16.mxu0 0
        %3940 = vmatpush1.bf16.msra.mxu0 0
        %3941 = vmatprep.subr.bf16.mxu0 0
        %3942 = vmatpush1.bf16.msra.mxu0 0
        %3943 = vmatprep.subr.bf16.mxu0 0
        %3944 = vmatpush1.bf16.msra.mxu0 0
        %3945 = vmatprep.subr.bf16.mxu0 0
        %3946 = vmatpush1.bf16.msra.mxu0 0
        %3947 = vmatprep.subr.bf16.mxu0 0
        %3948 = vmatpush1.bf16.msra.mxu0 0
        %3949 = vmatprep.subr.bf16.mxu0 0
        %3950 = vmatpush1.bf16.msra.mxu0 0
        %3951 = vmatprep.subr.bf16.mxu0 0
        %3952 = vmatpush1.bf16.msra.mxu0 0
        %3953 = vmatprep.subr.bf16.mxu0 0
        %3954 = vmatpush1.bf16.msra.mxu0 0
        %3955 = vmatprep.subr.bf16.mxu0 0
        %3956 = vmatpush1.bf16.msra.mxu0 0
        %3957 = vmatprep.mubr.bf16.mxu0 0
        %3958 = vmatmul.mubr.bf16.gmra.mrb[0].mxu0 %v3898
        %v3959 = vpop.f32.mrb[0].mxu0
        %v3960 = vadd.f32 0.0, %v3959
        %v3961 = vpop.f32.mrb[0].mxu0
        %v3962 = vpop.f32.mrb[0].mxu0
        %v3963 = vadd.f32 0.0, %v3962
        %v3964 = vpop.f32.mrb[0].mxu0
        %3965 = vmatprep.mubr.bf16.mxu0 0
        %3966 = vmatmul.mubr.bf16.gmra.mrb[0].mxu0 %v3901
        %v3967 = vpop.f32.mrb[0].mxu0
        %v3968 = vadd.f32 0.0, %v3967
        %v3969 = vpop.f32.mrb[0].mxu0
        %v3970 = vpop.f32.mrb[0].mxu0
        %v3971 = vadd.f32 0.0, %v3970
        %v3972 = vpop.f32.mrb[0].mxu0
        %3973 = vmatprep.mubr.bf16.mxu0 0
        %3974 = vmatmul.mubr.bf16.gmra.mrb[0].mxu0 %v3904
        %v3975 = vpop.f32.mrb[0].mxu0
        %v3976 = vadd.f32 0.0, %v3975
        %v3977 = vpop.f32.mrb[0].mxu0
        %v3978 = vpop.f32.mrb[0].mxu0
        %v3979 = vadd.f32 0.0, %v3978
        %v3980 = vpop.f32.mrb[0].mxu0
        %3981 = vmatprep.mubr.bf16.mxu0 0
        %3982 = vmatmul.mubr.bf16.gmra.mrb[0].mxu0 %v3907
        %v3983 = vpop.f32.mrb[0].mxu0
        %v3984 = vadd.f32 0.0, %v3983
        %v3985 = vpop.f32.mrb[0].mxu0
        %v3986 = vpop.f32.mrb[0].mxu0
        %v3987 = vadd.f32 0.0, %v3986
        %v3988 = vpop.f32.mrb[0].mxu0
        %3989 = vmatprep.mubr.bf16.mxu0 0
        %3990 = vmatmul.mubr.bf16.gmra.mrb[0].mxu0 %v3910
        %v3991 = vpop.f32.mrb[0].mxu0
        %v3992 = vadd.f32 0.0, %v3991
        %v3993 = vpop.f32.mrb[0].mxu0
        %v3994 = vpop.f32.mrb[0].mxu0
        %v3995 = vadd.f32 0.0, %v3994
        %v3996 = vpop.f32.mrb[0].mxu0
        %3997 = vmatprep.mubr.bf16.mxu0 0
        %3998 = vmatmul.mubr.bf16.gmra.mrb[0].mxu0 %v3913
        %v3999 = vpop.f32.mrb[0].mxu0
        %v4000 = vadd.f32 0.0, %v3999
        %v4001 = vpop.f32.mrb[0].mxu0
        %v4002 = vpop.f32.mrb[0].mxu0
        %v4003 = vadd.f32 0.0, %v4002
        %v4004 = vpop.f32.mrb[0].mxu0
        %4005 = vmatprep.mubr.bf16.mxu0 0
        %4006 = vmatmul.mubr.bf16.gmra.mrb[0].mxu0 %v3916
        %v4007 = vpop.f32.mrb[0].mxu0
        %v4008 = vadd.f32 0.0, %v4007
        %v4009 = vpop.f32.mrb[0].mxu0
        %v4010 = vpop.f32.mrb[0].mxu0
        %v4011 = vadd.f32 0.0, %v4010
        %v4012 = vpop.f32.mrb[0].mxu0
        %4013 = vmatprep.mubr.bf16.mxu0 0
        %4014 = vmatmul.mubr.bf16.gmra.mrb[0].mxu0 %v3919
        %v4015 = vpop.f32.mrb[0].mxu0
        %v4016 = vadd.f32 0.0, %v4015
        %v4017 = vpop.f32.mrb[0].mxu0
        %v4018 = vpop.f32.mrb[0].mxu0
        %v4019 = vadd.f32 0.0, %v4018
        %v4020 = vpop.f32.mrb[0].mxu0
        %4021 = vdwg.mxu0
        %v4022 = vadd.f32 %v3844, %v3960
        %v4023 = vadd.f32 %v3845, %v3963
        %v4024 = vadd.f32 %v3846, %v3968
        %v4025 = vadd.f32 %v3847, %v3971
        %v4026 = vadd.f32 %v3848, %v3976
        %v4027 = vadd.f32 %v3849, %v3979
        %v4028 = vadd.f32 %v3850, %v3984
        %v4029 = vadd.f32 %v3851, %v3987
        %v4030 = vadd.f32 %v3852, %v3992
        %v4031 = vadd.f32 %v3853, %v3995
        %v4032 = vadd.f32 %v3854, %v4000
        %v4033 = vadd.f32 %v3855, %v4003
        %v4034 = vadd.f32 %v3856, %v4008
        %v4035 = vadd.f32 %v3857, %v4011
        %v4036 = vadd.f32 %v3858, %v4016
        %v4037 = vadd.f32 %v3859, %v4019
        %vm4038 = vcmask 130048
        %4039 = vst.msk [vmem:[#allocation3] sm:$0xff] %vm4038, %v4022
        %4040 = vst.msk [vmem:[#allocation3 + $0x8] sm:$0xff] %vm4038, %v4023
        %4041 = vst.msk [vmem:[#allocation3 + $0x10] sm:$0xff] %vm4038, %v4024
        %4042 = vst.msk [vmem:[#allocation3 + $0x18] sm:$0xff] %vm4038, %v4025
        %4043 = vst.msk [vmem:[#allocation3 + $0x20] sm:$0xff] %vm4038, %v4026
        %4044 = vst.msk [vmem:[#allocation3 + $0x28] sm:$0xff] %vm4038, %v4027
        %4045 = vst.msk [vmem:[#allocation3 + $0x30] sm:$0xff] %vm4038, %v4028
        %4046 = vst.msk [vmem:[#allocation3 + $0x38] sm:$0xff] %vm4038, %v4029
        %4047 = vst.msk [vmem:[#allocation3 + $0x40] sm:$0xff] %vm4038, %v4030
        %4048 = vst.msk [vmem:[#allocation3 + $0x48] sm:$0xff] %vm4038, %v4031
        %4049 = vst.msk [vmem:[#allocation3 + $0x50] sm:$0xff] %vm4038, %v4032
        %4050 = vst.msk [vmem:[#allocation3 + $0x58] sm:$0xff] %vm4038, %v4033
        %4051 = vst.msk [vmem:[#allocation3 + $0x60] sm:$0xff] %vm4038, %v4034
        %4052 = vst.msk [vmem:[#allocation3 + $0x68] sm:$0xff] %vm4038, %v4035
        %4053 = vst.msk [vmem:[#allocation3 + $0x70] sm:$0xff] %vm4038, %v4036
        %4054 = vst.msk [vmem:[#allocation3 + $0x78] sm:$0xff] %vm4038, %v4037
        %v4055 = vld [vmem:[#allocation2 + $0x20] sm:$0xff]
        %v4056 = vld [vmem:[#allocation2 + $0x28] sm:$0xff]
        %v4057 = vld [vmem:[#allocation2 + $0x30] sm:$0xff]
        %v4058 = vld [vmem:[#allocation2 + $0x38] sm:$0xff]
        %v4059 = vld [vmem:[#allocation2 + $0x40] sm:$0xff]
        %v4060 = vld [vmem:[#allocation2 + $0x48] sm:$0xff]
        %v4061 = vld [vmem:[#allocation2 + $0x50] sm:$0xff]
        %v4062 = vld [vmem:[#allocation2 + $0x58] sm:$0xff]
        %v4063 = vld [vmem:[#allocation3] sm:$0xff]
        %v4064 = vld [vmem:[#allocation3 + $0x8] sm:$0xff]
        %v4065 = vld [vmem:[#allocation3 + $0x10] sm:$0xff]
        %v4066 = vld [vmem:[#allocation3 + $0x18] sm:$0xff]
        %v4067 = vld [vmem:[#allocation3 + $0x20] sm:$0xff]
        %v4068 = vld [vmem:[#allocation3 + $0x28] sm:$0xff]
        %v4069 = vld [vmem:[#allocation3 + $0x30] sm:$0xff]
        %v4070 = vld [vmem:[#allocation3 + $0x38] sm:$0xff]
        %v4071 = vld [vmem:[#allocation3 + $0x40] sm:$0xff]
        %v4072 = vld [vmem:[#allocation3 + $0x48] sm:$0xff]
        %v4073 = vld [vmem:[#allocation3 + $0x50] sm:$0xff]
        %v4074 = vld [vmem:[#allocation3 + $0x58] sm:$0xff]
        %v4075 = vld [vmem:[#allocation3 + $0x60] sm:$0xff]
        %v4076 = vld [vmem:[#allocation3 + $0x68] sm:$0xff]
        %v4077 = vld [vmem:[#allocation3 + $0x70] sm:$0xff]
        %v4078 = vld [vmem:[#allocation3 + $0x78] sm:$0xff]
        %s4079 = scalar_lea.vmem [#allocation9], 36
        %v4080 = vld [vmem:[%s4079] sm:$0xf]
        %v4081 = vld [vmem:[%s4079 + $0x4] sm:$0xf]
        %v4082 = vld [vmem:[%s4079 + $0x8] sm:$0xf]
        %v4083 = vld [vmem:[%s4079 + $0xc] sm:$0xf]
        %v4084 = vld [vmem:[%s4079 + $0x10] sm:$0xf]
        %v4085 = vld [vmem:[%s4079 + $0x14] sm:$0xf]
        %v4086 = vld [vmem:[%s4079 + $0x18] sm:$0xf]
        %v4087 = vld [vmem:[%s4079 + $0x1c] sm:$0xf]
        %v4088 = vld [vmem:[%s4079 + $0x20] sm:$0xf]
        %v4098 = vunpack.c.l.b16 %v4080
        %v4099 = vunpack.c.l.b16 %v4081
        %v4100 = vunpack.c.l.b16 %v4082
        %v4101 = vunpack.c.l.b16 %v4083
        %v4102 = vunpack.c.l.b16 %v4084
        %v4103 = vunpack.c.l.b16 %v4085
        %v4104 = vunpack.c.l.b16 %v4086
        %v4105 = vunpack.c.l.b16 %v4087
        %v4106 = vunpack.c.l.b16 %v4088
        %v4107 = vpack.c.b16 %v4099, %v4098
        %v4108 = vpack.c.b16 %v4101, %v4100
        %v4109 = vpack.c.b16 %v4103, %v4102
        %v4110 = vpack.c.b16 %v4105, %v4104
        %v4111 = vpack.c.b16 %v4106, %v4106
        %v4117 = vsel %vm3896, %v4055, 0
        %v4120 = vsel %vm3896, %v4056, 0
        %v4123 = vsel %vm3896, %v4057, 0
        %v4126 = vsel %vm3896, %v4058, 0
        %v4129 = vsel %vm3896, %v4059, 0
        %v4132 = vsel %vm3896, %v4060, 0
        %v4135 = vsel %vm3896, %v4061, 0
        %v4138 = vsel %vm3896, %v4062, 0
        %v4141 = vsel %vm3921, %v4111, 0
        %4143 = vmatprep.subr.bf16.mxu0 0
        %4144 = vmatpush1.bf16.msra.mxu0 %v4107
        %4145 = vmatprep.subr.bf16.mxu0 0
        %4146 = vmatpush1.bf16.msra.mxu0 %v4108
        %4147 = vmatprep.subr.bf16.mxu0 0
        %4148 = vmatpush1.bf16.msra.mxu0 %v4109
        %4149 = vmatprep.subr.bf16.mxu0 0
        %4150 = vmatpush1.bf16.msra.mxu0 %v4110
        %4151 = vmatprep.subr.bf16.mxu0 0
        %4152 = vmatpush1.bf16.msra.mxu0 %v4141
        %4153 = vmatprep.subr.bf16.mxu0 0
        %4154 = vmatpush1.bf16.msra.mxu0 0
        %4155 = vmatprep.subr.bf16.mxu0 0
        %4156 = vmatpush1.bf16.msra.mxu0 0
        %4157 = vmatprep.subr.bf16.mxu0 0
        %4158 = vmatpush1.bf16.msra.mxu0 0
        %4159 = vmatprep.subr.bf16.mxu0 0
        %4160 = vmatpush1.bf16.msra.mxu0 0
        %4161 = vmatprep.subr.bf16.mxu0 0
        %4162 = vmatpush1.bf16.msra.mxu0 0
        %4163 = vmatprep.subr.bf16.mxu0 0
        %4164 = vmatpush1.bf16.msra.mxu0 0
        %4165 = vmatprep.subr.bf16.mxu0 0
        %4166 = vmatpush1.bf16.msra.mxu0 0
        %4167 = vmatprep.subr.bf16.mxu0 0
        %4168 = vmatpush1.bf16.msra.mxu0 0
        %4169 = vmatprep.subr.bf16.mxu0 0
        %4170 = vmatpush1.bf16.msra.mxu0 0
        %4171 = vmatprep.subr.bf16.mxu0 0
        %4172 = vmatpush1.bf16.msra.mxu0 0
        %4173 = vmatprep.subr.bf16.mxu0 0
        %4174 = vmatpush1.bf16.msra.mxu0 0
        %4175 = vmatprep.mubr.bf16.mxu0 0
        %4176 = vmatmul.mubr.bf16.gmra.mrb[0].mxu0 %v4117
        %v4177 = vpop.f32.mrb[0].mxu0
        %v4178 = vadd.f32 0.0, %v4177
        %v4179 = vpop.f32.mrb[0].mxu0
        %v4180 = vpop.f32.mrb[0].mxu0
        %v4181 = vadd.f32 0.0, %v4180
        %v4182 = vpop.f32.mrb[0].mxu0
        %4183 = vmatprep.mubr.bf16.mxu0 0
        %4184 = vmatmul.mubr.bf16.gmra.mrb[0].mxu0 %v4120
        %v4185 = vpop.f32.mrb[0].mxu0
        %v4186 = vadd.f32 0.0, %v4185
        %v4187 = vpop.f32.mrb[0].mxu0
        %v4188 = vpop.f32.mrb[0].mxu0
        %v4189 = vadd.f32 0.0, %v4188
        %v4190 = vpop.f32.mrb[0].mxu0
        %4191 = vmatprep.mubr.bf16.mxu0 0
        %4192 = vmatmul.mubr.bf16.gmra.mrb[0].mxu0 %v4123
        %v4193 = vpop.f32.mrb[0].mxu0
        %v4194 = vadd.f32 0.0, %v4193
        %v4195 = vpop.f32.mrb[0].mxu0
        %v4196 = vpop.f32.mrb[0].mxu0
        %v4197 = vadd.f32 0.0, %v4196
        %v4198 = vpop.f32.mrb[0].mxu0
        %4199 = vmatprep.mubr.bf16.mxu0 0
        %4200 = vmatmul.mubr.bf16.gmra.mrb[0].mxu0 %v4126
        %v4201 = vpop.f32.mrb[0].mxu0
        %v4202 = vadd.f32 0.0, %v4201
        %v4203 = vpop.f32.mrb[0].mxu0
        %v4204 = vpop.f32.mrb[0].mxu0
        %v4205 = vadd.f32 0.0, %v4204
        %v4206 = vpop.f32.mrb[0].mxu0
        %4207 = vmatprep.mubr.bf16.mxu0 0
        %4208 = vmatmul.mubr.bf16.gmra.mrb[0].mxu0 %v4129
        %v4209 = vpop.f32.mrb[0].mxu0
        %v4210 = vadd.f32 0.0, %v4209
        %v4211 = vpop.f32.mrb[0].mxu0
        %v4212 = vpop.f32.mrb[0].mxu0
        %v4213 = vadd.f32 0.0, %v4212
        %v4214 = vpop.f32.mrb[0].mxu0
        %4215 = vmatprep.mubr.bf16.mxu0 0
        %4216 = vmatmul.mubr.bf16.gmra.mrb[0].mxu0 %v4132
        %v4217 = vpop.f32.mrb[0].mxu0
        %v4218 = vadd.f32 0.0, %v4217
        %v4219 = vpop.f32.mrb[0].mxu0
        %v4220 = vpop.f32.mrb[0].mxu0
        %v4221 = vadd.f32 0.0, %v4220
        %v4222 = vpop.f32.mrb[0].mxu0
        %4223 = vmatprep.mubr.bf16.mxu0 0
        %4224 = vmatmul.mubr.bf16.gmra.mrb[0].mxu0 %v4135
        %v4225 = vpop.f32.mrb[0].mxu0
        %v4226 = vadd.f32 0.0, %v4225
        %v4227 = vpop.f32.mrb[0].mxu0
        %v4228 = vpop.f32.mrb[0].mxu0
        %v4229 = vadd.f32 0.0, %v4228
        %v4230 = vpop.f32.mrb[0].mxu0
        %4231 = vmatprep.mubr.bf16.mxu0 0
        %4232 = vmatmul.mubr.bf16.gmra.mrb[0].mxu0 %v4138
        %v4233 = vpop.f32.mrb[0].mxu0
        %v4234 = vadd.f32 0.0, %v4233
        %v4235 = vpop.f32.mrb[0].mxu0
        %v4236 = vpop.f32.mrb[0].mxu0
        %v4237 = vadd.f32 0.0, %v4236
        %v4238 = vpop.f32.mrb[0].mxu0
        %4239 = vdwg.mxu0
        %v4240 = vadd.f32 %v4063, %v4178
        %v4241 = vadd.f32 %v4064, %v4181
        %v4242 = vadd.f32 %v4065, %v4186
        %v4243 = vadd.f32 %v4066, %v4189
        %v4244 = vadd.f32 %v4067, %v4194
        %v4245 = vadd.f32 %v4068, %v4197
        %v4246 = vadd.f32 %v4069, %v4202
        %v4247 = vadd.f32 %v4070, %v4205
        %v4248 = vadd.f32 %v4071, %v4210
        %v4249 = vadd.f32 %v4072, %v4213
        %v4250 = vadd.f32 %v4073, %v4218
        %v4251 = vadd.f32 %v4074, %v4221
        %v4252 = vadd.f32 %v4075, %v4226
        %v4253 = vadd.f32 %v4076, %v4229
        %v4254 = vadd.f32 %v4077, %v4234
        %v4255 = vadd.f32 %v4078, %v4237
        %4256 = vst.msk [vmem:[#allocation3] sm:$0xff] %vm4038, %v4240
        %4257 = vst.msk [vmem:[#allocation3 + $0x8] sm:$0xff] %vm4038, %v4241
        %4258 = vst.msk [vmem:[#allocation3 + $0x10] sm:$0xff] %vm4038, %v4242
        %4259 = vst.msk [vmem:[#allocation3 + $0x18] sm:$0xff] %vm4038, %v4243
        %4260 = vst.msk [vmem:[#allocation3 + $0x20] sm:$0xff] %vm4038, %v4244
        %4261 = vst.msk [vmem:[#allocation3 + $0x28] sm:$0xff] %vm4038, %v4245
        %4262 = vst.msk [vmem:[#allocation3 + $0x30] sm:$0xff] %vm4038, %v4246
        %4263 = vst.msk [vmem:[#allocation3 + $0x38] sm:$0xff] %vm4038, %v4247
        %4264 = vst.msk [vmem:[#allocation3 + $0x40] sm:$0xff] %vm4038, %v4248
        %4265 = vst.msk [vmem:[#allocation3 + $0x48] sm:$0xff] %vm4038, %v4249
        %4266 = vst.msk [vmem:[#allocation3 + $0x50] sm:$0xff] %vm4038, %v4250
        %4267 = vst.msk [vmem:[#allocation3 + $0x58] sm:$0xff] %vm4038, %v4251
        %4268 = vst.msk [vmem:[#allocation3 + $0x60] sm:$0xff] %vm4038, %v4252
        %4269 = vst.msk [vmem:[#allocation3 + $0x68] sm:$0xff] %vm4038, %v4253
        %4270 = vst.msk [vmem:[#allocation3 + $0x70] sm:$0xff] %vm4038, %v4254
        %4271 = vst.msk [vmem:[#allocation3 + $0x78] sm:$0xff] %vm4038, %v4255
        %v4272 = vld [vmem:[#allocation3] sm:$0xff]
        %v4273 = vld [vmem:[#allocation3 + $0x8] sm:$0xff]
        %v4274 = vld [vmem:[#allocation3 + $0x10] sm:$0xff]
        %v4275 = vld [vmem:[#allocation3 + $0x18] sm:$0xff]
        %v4276 = vld [vmem:[#allocation3 + $0x20] sm:$0xff]
        %v4277 = vld [vmem:[#allocation3 + $0x28] sm:$0xff]
        %v4278 = vld [vmem:[#allocation3 + $0x30] sm:$0xff]
        %v4279 = vld [vmem:[#allocation3 + $0x38] sm:$0xff]
        %v4280 = vld [vmem:[#allocation3 + $0x40] sm:$0xff]
        %v4281 = vld [vmem:[#allocation3 + $0x48] sm:$0xff]
        %v4282 = vld [vmem:[#allocation3 + $0x50] sm:$0xff]
        %v4283 = vld [vmem:[#allocation3 + $0x58] sm:$0xff]
        %v4284 = vld [vmem:[#allocation3 + $0x60] sm:$0xff]
        %v4285 = vld [vmem:[#allocation3 + $0x68] sm:$0xff]
        %v4286 = vld [vmem:[#allocation3 + $0x70] sm:$0xff]
        %v4287 = vld [vmem:[#allocation3 + $0x78] sm:$0xff]
        %s4288 = scalar_lea.vmem [#allocation9], 72
        %v4289 = vld [vmem:[%s4288] sm:$0xf]
        %v4290 = vld [vmem:[%s4288 + $0x4] sm:$0xf]
        %v4291 = vld [vmem:[%s4288 + $0x8] sm:$0xf]
        %v4292 = vld [vmem:[%s4288 + $0xc] sm:$0xf]
        %v4293 = vld [vmem:[%s4288 + $0x10] sm:$0xf]
        %v4294 = vld [vmem:[%s4288 + $0x14] sm:$0xf]
        %v4295 = vld [vmem:[%s4288 + $0x18] sm:$0xf]
        %v4296 = vld [vmem:[%s4288 + $0x1c] sm:$0xf]
        %v4297 = vld [vmem:[%s4288 + $0x20] sm:$0xf]
        %v4307 = vunpack.c.l.b16 %v4289
        %v4308 = vunpack.c.l.b16 %v4290
        %v4309 = vunpack.c.l.b16 %v4291
        %v4310 = vunpack.c.l.b16 %v4292
        %v4311 = vunpack.c.l.b16 %v4293
        %v4312 = vunpack.c.l.b16 %v4294
        %v4313 = vunpack.c.l.b16 %v4295
        %v4314 = vunpack.c.l.b16 %v4296
        %v4315 = vunpack.c.l.b16 %v4297
        %v4316 = vpack.c.b16 %v4308, %v4307
        %v4317 = vpack.c.b16 %v4310, %v4309
        %v4318 = vpack.c.b16 %v4312, %v4311
        %v4319 = vpack.c.b16 %v4314, %v4313
        %v4320 = vpack.c.b16 %v4315, %v4315
        %v4326 = vsel %vm3921, %v4320, 0
        %4328 = vmatprep.subr.bf16.mxu0 0
        %4329 = vmatpush1.bf16.msra.mxu0 %v4316
        %4330 = vmatprep.subr.bf16.mxu0 0
        %4331 = vmatpush1.bf16.msra.mxu0 %v4317
        %4332 = vmatprep.subr.bf16.mxu0 0
        %4333 = vmatpush1.bf16.msra.mxu0 %v4318
        %4334 = vmatprep.subr.bf16.mxu0 0
        %4335 = vmatpush1.bf16.msra.mxu0 %v4319
        %4336 = vmatprep.subr.bf16.mxu0 0
        %4337 = vmatpush1.bf16.msra.mxu0 %v4326
        %4338 = vmatprep.subr.bf16.mxu0 0
        %4339 = vmatpush1.bf16.msra.mxu0 0
        %4340 = vmatprep.subr.bf16.mxu0 0
        %4341 = vmatpush1.bf16.msra.mxu0 0
        %4342 = vmatprep.subr.bf16.mxu0 0
        %4343 = vmatpush1.bf16.msra.mxu0 0
        %4344 = vmatprep.subr.bf16.mxu0 0
        %4345 = vmatpush1.bf16.msra.mxu0 0
        %4346 = vmatprep.subr.bf16.mxu0 0
        %4347 = vmatpush1.bf16.msra.mxu0 0
        %4348 = vmatprep.subr.bf16.mxu0 0
        %4349 = vmatpush1.bf16.msra.mxu0 0
        %4350 = vmatprep.subr.bf16.mxu0 0
        %4351 = vmatpush1.bf16.msra.mxu0 0
        %4352 = vmatprep.subr.bf16.mxu0 0
        %4353 = vmatpush1.bf16.msra.mxu0 0
        %4354 = vmatprep.subr.bf16.mxu0 0
        %4355 = vmatpush1.bf16.msra.mxu0 0
        %4356 = vmatprep.subr.bf16.mxu0 0
        %4357 = vmatpush1.bf16.msra.mxu0 0
        %4358 = vmatprep.subr.bf16.mxu0 0
        %4359 = vmatpush1.bf16.msra.mxu0 0
        %4360 = vmatprep.mubr.bf16.mxu0 0
        %4361 = vmatmul.mubr.bf16.gmra.mrb[0].mxu0 %v4117
        %v4362 = vpop.f32.mrb[0].mxu0
        %v4363 = vadd.f32 0.0, %v4362
        %v4364 = vpop.f32.mrb[0].mxu0
        %v4365 = vpop.f32.mrb[0].mxu0
        %v4366 = vadd.f32 0.0, %v4365
        %v4367 = vpop.f32.mrb[0].mxu0
        %4368 = vmatprep.mubr.bf16.mxu0 0
        %4369 = vmatmul.mubr.bf16.gmra.mrb[0].mxu0 %v4120
        %v4370 = vpop.f32.mrb[0].mxu0
        %v4371 = vadd.f32 0.0, %v4370
        %v4372 = vpop.f32.mrb[0].mxu0
        %v4373 = vpop.f32.mrb[0].mxu0
        %v4374 = vadd.f32 0.0, %v4373
        %v4375 = vpop.f32.mrb[0].mxu0
        %4376 = vmatprep.mubr.bf16.mxu0 0
        %4377 = vmatmul.mubr.bf16.gmra.mrb[0].mxu0 %v4123
        %v4378 = vpop.f32.mrb[0].mxu0
        %v4379 = vadd.f32 0.0, %v4378
        %v4380 = vpop.f32.mrb[0].mxu0
        %v4381 = vpop.f32.mrb[0].mxu0
        %v4382 = vadd.f32 0.0, %v4381
        %v4383 = vpop.f32.mrb[0].mxu0
        %4384 = vmatprep.mubr.bf16.mxu0 0
        %4385 = vmatmul.mubr.bf16.gmra.mrb[0].mxu0 %v4126
        %v4386 = vpop.f32.mrb[0].mxu0
        %v4387 = vadd.f32 0.0, %v4386
        %v4388 = vpop.f32.mrb[0].mxu0
        %v4389 = vpop.f32.mrb[0].mxu0
        %v4390 = vadd.f32 0.0, %v4389
        %v4391 = vpop.f32.mrb[0].mxu0
        %4392 = vmatprep.mubr.bf16.mxu0 0
        %4393 = vmatmul.mubr.bf16.gmra.mrb[0].mxu0 %v4129
        %v4394 = vpop.f32.mrb[0].mxu0
        %v4395 = vadd.f32 0.0, %v4394
        %v4396 = vpop.f32.mrb[0].mxu0
        %v4397 = vpop.f32.mrb[0].mxu0
        %v4398 = vadd.f32 0.0, %v4397
        %v4399 = vpop.f32.mrb[0].mxu0
        %4400 = vmatprep.mubr.bf16.mxu0 0
        %4401 = vmatmul.mubr.bf16.gmra.mrb[0].mxu0 %v4132
        %v4402 = vpop.f32.mrb[0].mxu0
        %v4403 = vadd.f32 0.0, %v4402
        %v4404 = vpop.f32.mrb[0].mxu0
        %v4405 = vpop.f32.mrb[0].mxu0
        %v4406 = vadd.f32 0.0, %v4405
        %v4407 = vpop.f32.mrb[0].mxu0
        %4408 = vmatprep.mubr.bf16.mxu0 0
        %4409 = vmatmul.mubr.bf16.gmra.mrb[0].mxu0 %v4135
        %v4410 = vpop.f32.mrb[0].mxu0
        %v4411 = vadd.f32 0.0, %v4410
        %v4412 = vpop.f32.mrb[0].mxu0
        %v4413 = vpop.f32.mrb[0].mxu0
        %v4414 = vadd.f32 0.0, %v4413
        %v4415 = vpop.f32.mrb[0].mxu0
        %4416 = vmatprep.mubr.bf16.mxu0 0
        %4417 = vmatmul.mubr.bf16.gmra.mrb[0].mxu0 %v4138
        %v4418 = vpop.f32.mrb[0].mxu0
        %v4419 = vadd.f32 0.0, %v4418
        %v4420 = vpop.f32.mrb[0].mxu0
        %v4421 = vpop.f32.mrb[0].mxu0
        %v4422 = vadd.f32 0.0, %v4421
        %v4423 = vpop.f32.mrb[0].mxu0
        %4424 = vdwg.mxu0
        %4441 = vrot.lane.b32.xlu0 %v4363, 16
        %v4442 = vpop.permute.xlu0 %4441
        %4443 = vrot.lane.b32.xlu0 %v4366, 16
        %v4444 = vpop.permute.xlu0 %4443
        %4445 = vrot.lane.b32.xlu0 %v4371, 16
        %v4446 = vpop.permute.xlu0 %4445
        %4447 = vrot.lane.b32.xlu0 %v4374, 16
        %v4448 = vpop.permute.xlu0 %4447
        %4449 = vrot.lane.b32.xlu0 %v4379, 16
        %v4450 = vpop.permute.xlu0 %4449
        %4451 = vrot.lane.b32.xlu0 %v4382, 16
        %v4452 = vpop.permute.xlu0 %4451
        %4453 = vrot.lane.b32.xlu0 %v4387, 16
        %v4454 = vpop.permute.xlu0 %4453
        %4455 = vrot.lane.b32.xlu0 %v4390, 16
        %v4456 = vpop.permute.xlu0 %4455
        %4457 = vrot.lane.b32.xlu0 %v4395, 16
        %v4458 = vpop.permute.xlu0 %4457
        %4459 = vrot.lane.b32.xlu0 %v4398, 16
        %v4460 = vpop.permute.xlu0 %4459
        %4461 = vrot.lane.b32.xlu0 %v4403, 16
        %v4462 = vpop.permute.xlu0 %4461
        %4463 = vrot.lane.b32.xlu0 %v4406, 16
        %v4464 = vpop.permute.xlu0 %4463
        %4465 = vrot.lane.b32.xlu0 %v4411, 16
        %v4466 = vpop.permute.xlu0 %4465
        %4467 = vrot.lane.b32.xlu0 %v4414, 16
        %v4468 = vpop.permute.xlu0 %4467
        %4469 = vrot.lane.b32.xlu0 %v4419, 16
        %v4470 = vpop.permute.xlu0 %4469
        %4471 = vrot.lane.b32.xlu0 %v4422, 16
        %v4472 = vpop.permute.xlu0 %4471
        %v4489 = vadd.f32 %v4272, %v4442
        %v4490 = vadd.f32 %v4273, %v4444
        %v4491 = vadd.f32 %v4274, %v4446
        %v4492 = vadd.f32 %v4275, %v4448
        %v4493 = vadd.f32 %v4276, %v4450
        %v4494 = vadd.f32 %v4277, %v4452
        %v4495 = vadd.f32 %v4278, %v4454
        %v4496 = vadd.f32 %v4279, %v4456
        %v4497 = vadd.f32 %v4280, %v4458
        %v4498 = vadd.f32 %v4281, %v4460
        %v4499 = vadd.f32 %v4282, %v4462
        %v4500 = vadd.f32 %v4283, %v4464
        %v4501 = vadd.f32 %v4284, %v4466
        %v4502 = vadd.f32 %v4285, %v4468
        %v4503 = vadd.f32 %v4286, %v4470
        %v4504 = vadd.f32 %v4287, %v4472
        %vm4505 = vcmask 261248
        %4506 = vst.msk [vmem:[#allocation3] sm:$0xff] %vm4505, %v4489
        %4507 = vst.msk [vmem:[#allocation3 + $0x8] sm:$0xff] %vm4505, %v4490
        %4508 = vst.msk [vmem:[#allocation3 + $0x10] sm:$0xff] %vm4505, %v4491
        %4509 = vst.msk [vmem:[#allocation3 + $0x18] sm:$0xff] %vm4505, %v4492
        %4510 = vst.msk [vmem:[#allocation3 + $0x20] sm:$0xff] %vm4505, %v4493
        %4511 = vst.msk [vmem:[#allocation3 + $0x28] sm:$0xff] %vm4505, %v4494
        %4512 = vst.msk [vmem:[#allocation3 + $0x30] sm:$0xff] %vm4505, %v4495
        %4513 = vst.msk [vmem:[#allocation3 + $0x38] sm:$0xff] %vm4505, %v4496
        %4514 = vst.msk [vmem:[#allocation3 + $0x40] sm:$0xff] %vm4505, %v4497
        %4515 = vst.msk [vmem:[#allocation3 + $0x48] sm:$0xff] %vm4505, %v4498
        %4516 = vst.msk [vmem:[#allocation3 + $0x50] sm:$0xff] %vm4505, %v4499
        %4517 = vst.msk [vmem:[#allocation3 + $0x58] sm:$0xff] %vm4505, %v4500
        %4518 = vst.msk [vmem:[#allocation3 + $0x60] sm:$0xff] %vm4505, %v4501
        %4519 = vst.msk [vmem:[#allocation3 + $0x68] sm:$0xff] %vm4505, %v4502
        %4520 = vst.msk [vmem:[#allocation3 + $0x70] sm:$0xff] %vm4505, %v4503
        %4521 = vst.msk [vmem:[#allocation3 + $0x78] sm:$0xff] %vm4505, %v4504
        %v4522 = vld [vmem:[#allocation2 + $0x40] sm:$0xff]
        %v4523 = vld [vmem:[#allocation2 + $0x48] sm:$0xff]
        %v4524 = vld [vmem:[#allocation2 + $0x50] sm:$0xff]
        %v4525 = vld [vmem:[#allocation2 + $0x58] sm:$0xff]
        %v4526 = vld [vmem:[#allocation2 + $0x60] sm:$0xff]
        %v4527 = vld [vmem:[#allocation2 + $0x68] sm:$0xff]
        %v4528 = vld [vmem:[#allocation2 + $0x70] sm:$0xff]
        %v4529 = vld [vmem:[#allocation2 + $0x78] sm:$0xff]
        %v4530 = vld [vmem:[#allocation3] sm:$0xff]
        %v4531 = vld [vmem:[#allocation3 + $0x8] sm:$0xff]
        %v4532 = vld [vmem:[#allocation3 + $0x10] sm:$0xff]
        %v4533 = vld [vmem:[#allocation3 + $0x18] sm:$0xff]
        %v4534 = vld [vmem:[#allocation3 + $0x20] sm:$0xff]
        %v4535 = vld [vmem:[#allocation3 + $0x28] sm:$0xff]
        %v4536 = vld [vmem:[#allocation3 + $0x30] sm:$0xff]
        %v4537 = vld [vmem:[#allocation3 + $0x38] sm:$0xff]
        %v4538 = vld [vmem:[#allocation3 + $0x40] sm:$0xff]
        %v4539 = vld [vmem:[#allocation3 + $0x48] sm:$0xff]
        %v4540 = vld [vmem:[#allocation3 + $0x50] sm:$0xff]
        %v4541 = vld [vmem:[#allocation3 + $0x58] sm:$0xff]
        %v4542 = vld [vmem:[#allocation3 + $0x60] sm:$0xff]
        %v4543 = vld [vmem:[#allocation3 + $0x68] sm:$0xff]
        %v4544 = vld [vmem:[#allocation3 + $0x70] sm:$0xff]
        %v4545 = vld [vmem:[#allocation3 + $0x78] sm:$0xff]
        %s4546 = scalar_lea.vmem [#allocation9], 108
        %v4547 = vld [vmem:[%s4546] sm:$0xf]
        %v4548 = vld [vmem:[%s4546 + $0x4] sm:$0xf]
        %v4549 = vld [vmem:[%s4546 + $0x8] sm:$0xf]
        %v4550 = vld [vmem:[%s4546 + $0xc] sm:$0xf]
        %v4551 = vld [vmem:[%s4546 + $0x10] sm:$0xf]
        %v4552 = vld [vmem:[%s4546 + $0x14] sm:$0xf]
        %v4553 = vld [vmem:[%s4546 + $0x18] sm:$0xf]
        %v4554 = vld [vmem:[%s4546 + $0x1c] sm:$0xf]
        %v4555 = vld [vmem:[%s4546 + $0x20] sm:$0xf]
        %v4565 = vunpack.c.l.b16 %v4547
        %v4566 = vunpack.c.l.b16 %v4548
        %v4567 = vunpack.c.l.b16 %v4549
        %v4568 = vunpack.c.l.b16 %v4550
        %v4569 = vunpack.c.l.b16 %v4551
        %v4570 = vunpack.c.l.b16 %v4552
        %v4571 = vunpack.c.l.b16 %v4553
        %v4572 = vunpack.c.l.b16 %v4554
        %v4573 = vunpack.c.l.b16 %v4555
        %v4574 = vpack.c.b16 %v4566, %v4565
        %v4575 = vpack.c.b16 %v4568, %v4567
        %v4576 = vpack.c.b16 %v4570, %v4569
        %v4577 = vpack.c.b16 %v4572, %v4571
        %v4578 = vpack.c.b16 %v4573, %v4573
        %v4584 = vsel %vm3896, %v4522, 0
        %v4587 = vsel %vm3896, %v4523, 0
        %v4590 = vsel %vm3896, %v4524, 0
        %v4593 = vsel %vm3896, %v4525, 0
        %v4596 = vsel %vm3896, %v4526, 0
        %v4599 = vsel %vm3896, %v4527, 0
        %v4602 = vsel %vm3896, %v4528, 0
        %v4605 = vsel %vm3896, %v4529, 0
        %v4608 = vsel %vm3921, %v4578, 0
        %4610 = vmatprep.subr.bf16.mxu0 0
        %4611 = vmatpush1.bf16.msra.mxu0 %v4574
        %4612 = vmatprep.subr.bf16.mxu0 0
        %4613 = vmatpush1.bf16.msra.mxu0 %v4575
        %4614 = vmatprep.subr.bf16.mxu0 0
        %4615 = vmatpush1.bf16.msra.mxu0 %v4576
        %4616 = vmatprep.subr.bf16.mxu0 0
        %4617 = vmatpush1.bf16.msra.mxu0 %v4577
        %4618 = vmatprep.subr.bf16.mxu0 0
        %4619 = vmatpush1.bf16.msra.mxu0 %v4608
        %4620 = vmatprep.subr.bf16.mxu0 0
        %4621 = vmatpush1.bf16.msra.mxu0 0
        %4622 = vmatprep.subr.bf16.mxu0 0
        %4623 = vmatpush1.bf16.msra.mxu0 0
        %4624 = vmatprep.subr.bf16.mxu0 0
        %4625 = vmatpush1.bf16.msra.mxu0 0
        %4626 = vmatprep.subr.bf16.mxu0 0
        %4627 = vmatpush1.bf16.msra.mxu0 0
        %4628 = vmatprep.subr.bf16.mxu0 0
        %4629 = vmatpush1.bf16.msra.mxu0 0
        %4630 = vmatprep.subr.bf16.mxu0 0
        %4631 = vmatpush1.bf16.msra.mxu0 0
        %4632 = vmatprep.subr.bf16.mxu0 0
        %4633 = vmatpush1.bf16.msra.mxu0 0
        %4634 = vmatprep.subr.bf16.mxu0 0
        %4635 = vmatpush1.bf16.msra.mxu0 0
        %4636 = vmatprep.subr.bf16.mxu0 0
        %4637 = vmatpush1.bf16.msra.mxu0 0
        %4638 = vmatprep.subr.bf16.mxu0 0
        %4639 = vmatpush1.bf16.msra.mxu0 0
        %4640 = vmatprep.subr.bf16.mxu0 0
        %4641 = vmatpush1.bf16.msra.mxu0 0
        %4642 = vmatprep.mubr.bf16.mxu0 0
        %4643 = vmatmul.mubr.bf16.gmra.mrb[0].mxu0 %v4584
        %v4644 = vpop.f32.mrb[0].mxu0
        %v4645 = vadd.f32 0.0, %v4644
        %v4646 = vpop.f32.mrb[0].mxu0
        %v4647 = vpop.f32.mrb[0].mxu0
        %v4648 = vadd.f32 0.0, %v4647
        %v4649 = vpop.f32.mrb[0].mxu0
        %4650 = vmatprep.mubr.bf16.mxu0 0
        %4651 = vmatmul.mubr.bf16.gmra.mrb[0].mxu0 %v4587
        %v4652 = vpop.f32.mrb[0].mxu0
        %v4653 = vadd.f32 0.0, %v4652
        %v4654 = vpop.f32.mrb[0].mxu0
        %v4655 = vpop.f32.mrb[0].mxu0
        %v4656 = vadd.f32 0.0, %v4655
        %v4657 = vpop.f32.mrb[0].mxu0
        %4658 = vmatprep.mubr.bf16.mxu0 0
        %4659 = vmatmul.mubr.bf16.gmra.mrb[0].mxu0 %v4590
        %v4660 = vpop.f32.mrb[0].mxu0
        %v4661 = vadd.f32 0.0, %v4660
        %v4662 = vpop.f32.mrb[0].mxu0
        %v4663 = vpop.f32.mrb[0].mxu0
        %v4664 = vadd.f32 0.0, %v4663
        %v4665 = vpop.f32.mrb[0].mxu0
        %4666 = vmatprep.mubr.bf16.mxu0 0
        %4667 = vmatmul.mubr.bf16.gmra.mrb[0].mxu0 %v4593
        %v4668 = vpop.f32.mrb[0].mxu0
        %v4669 = vadd.f32 0.0, %v4668
        %v4670 = vpop.f32.mrb[0].mxu0
        %v4671 = vpop.f32.mrb[0].mxu0
        %v4672 = vadd.f32 0.0, %v4671
        %v4673 = vpop.f32.mrb[0].mxu0
        %4674 = vmatprep.mubr.bf16.mxu0 0
        %4675 = vmatmul.mubr.bf16.gmra.mrb[0].mxu0 %v4596
        %v4676 = vpop.f32.mrb[0].mxu0
        %v4677 = vadd.f32 0.0, %v4676
        %v4678 = vpop.f32.mrb[0].mxu0
        %v4679 = vpop.f32.mrb[0].mxu0
        %v4680 = vadd.f32 0.0, %v4679
        %v4681 = vpop.f32.mrb[0].mxu0
        %4682 = vmatprep.mubr.bf16.mxu0 0
        %4683 = vmatmul.mubr.bf16.gmra.mrb[0].mxu0 %v4599
        %v4684 = vpop.f32.mrb[0].mxu0
        %v4685 = vadd.f32 0.0, %v4684
        %v4686 = vpop.f32.mrb[0].mxu0
        %v4687 = vpop.f32.mrb[0].mxu0
        %v4688 = vadd.f32 0.0, %v4687
        %v4689 = vpop.f32.mrb[0].mxu0
        %4690 = vmatprep.mubr.bf16.mxu0 0
        %4691 = vmatmul.mubr.bf16.gmra.mrb[0].mxu0 %v4602
        %v4692 = vpop.f32.mrb[0].mxu0
        %v4693 = vadd.f32 0.0, %v4692
        %v4694 = vpop.f32.mrb[0].mxu0
        %v4695 = vpop.f32.mrb[0].mxu0
        %v4696 = vadd.f32 0.0, %v4695
        %v4697 = vpop.f32.mrb[0].mxu0
        %4698 = vmatprep.mubr.bf16.mxu0 0
        %4699 = vmatmul.mubr.bf16.gmra.mrb[0].mxu0 %v4605
        %v4700 = vpop.f32.mrb[0].mxu0
        %v4701 = vadd.f32 0.0, %v4700
        %v4702 = vpop.f32.mrb[0].mxu0
        %v4703 = vpop.f32.mrb[0].mxu0
        %v4704 = vadd.f32 0.0, %v4703
        %v4705 = vpop.f32.mrb[0].mxu0
        %4706 = vdwg.mxu0
        %4723 = vrot.lane.b32.xlu0 %v4645, 16
        %v4724 = vpop.permute.xlu0 %4723
        %4725 = vrot.lane.b32.xlu0 %v4648, 16
        %v4726 = vpop.permute.xlu0 %4725
        %4727 = vrot.lane.b32.xlu0 %v4653, 16
        %v4728 = vpop.permute.xlu0 %4727
        %4729 = vrot.lane.b32.xlu0 %v4656, 16
        %v4730 = vpop.permute.xlu0 %4729
        %4731 = vrot.lane.b32.xlu0 %v4661, 16
        %v4732 = vpop.permute.xlu0 %4731
        %4733 = vrot.lane.b32.xlu0 %v4664, 16
        %v4734 = vpop.permute.xlu0 %4733
        %4735 = vrot.lane.b32.xlu0 %v4669, 16
        %v4736 = vpop.permute.xlu0 %4735
        %4737 = vrot.lane.b32.xlu0 %v4672, 16
        %v4738 = vpop.permute.xlu0 %4737
        %4739 = vrot.lane.b32.xlu0 %v4677, 16
        %v4740 = vpop.permute.xlu0 %4739
        %4741 = vrot.lane.b32.xlu0 %v4680, 16
        %v4742 = vpop.permute.xlu0 %4741
        %4743 = vrot.lane.b32.xlu0 %v4685, 16
        %v4744 = vpop.permute.xlu0 %4743
        %4745 = vrot.lane.b32.xlu0 %v4688, 16
        %v4746 = vpop.permute.xlu0 %4745
        %4747 = vrot.lane.b32.xlu0 %v4693, 16
        %v4748 = vpop.permute.xlu0 %4747
        %4749 = vrot.lane.b32.xlu0 %v4696, 16
        %v4750 = vpop.permute.xlu0 %4749
        %4751 = vrot.lane.b32.xlu0 %v4701, 16
        %v4752 = vpop.permute.xlu0 %4751
        %4753 = vrot.lane.b32.xlu0 %v4704, 16
        %v4754 = vpop.permute.xlu0 %4753
        %v4771 = vadd.f32 %v4530, %v4724
        %v4772 = vadd.f32 %v4531, %v4726
        %v4773 = vadd.f32 %v4532, %v4728
        %v4774 = vadd.f32 %v4533, %v4730
        %v4775 = vadd.f32 %v4534, %v4732
        %v4776 = vadd.f32 %v4535, %v4734
        %v4777 = vadd.f32 %v4536, %v4736
        %v4778 = vadd.f32 %v4537, %v4738
        %v4779 = vadd.f32 %v4538, %v4740
        %v4780 = vadd.f32 %v4539, %v4742
        %v4781 = vadd.f32 %v4540, %v4744
        %v4782 = vadd.f32 %v4541, %v4746
        %v4783 = vadd.f32 %v4542, %v4748
        %v4784 = vadd.f32 %v4543, %v4750
        %v4785 = vadd.f32 %v4544, %v4752
        %v4786 = vadd.f32 %v4545, %v4754
        %4787 = vst.msk [vmem:[#allocation3] sm:$0xff] %vm4505, %v4771
        %4788 = vst.msk [vmem:[#allocation3 + $0x8] sm:$0xff] %vm4505, %v4772
        %4789 = vst.msk [vmem:[#allocation3 + $0x10] sm:$0xff] %vm4505, %v4773
        %4790 = vst.msk [vmem:[#allocation3 + $0x18] sm:$0xff] %vm4505, %v4774
        %4791 = vst.msk [vmem:[#allocation3 + $0x20] sm:$0xff] %vm4505, %v4775
        %4792 = vst.msk [vmem:[#allocation3 + $0x28] sm:$0xff] %vm4505, %v4776
        %4793 = vst.msk [vmem:[#allocation3 + $0x30] sm:$0xff] %vm4505, %v4777
        %4794 = vst.msk [vmem:[#allocation3 + $0x38] sm:$0xff] %vm4505, %v4778
        %4795 = vst.msk [vmem:[#allocation3 + $0x40] sm:$0xff] %vm4505, %v4779
        %4796 = vst.msk [vmem:[#allocation3 + $0x48] sm:$0xff] %vm4505, %v4780
        %4797 = vst.msk [vmem:[#allocation3 + $0x50] sm:$0xff] %vm4505, %v4781
        %4798 = vst.msk [vmem:[#allocation3 + $0x58] sm:$0xff] %vm4505, %v4782
        %4799 = vst.msk [vmem:[#allocation3 + $0x60] sm:$0xff] %vm4505, %v4783
        %4800 = vst.msk [vmem:[#allocation3 + $0x68] sm:$0xff] %vm4505, %v4784
        %4801 = vst.msk [vmem:[#allocation3 + $0x70] sm:$0xff] %vm4505, %v4785
        %4802 = vst.msk [vmem:[#allocation3 + $0x78] sm:$0xff] %vm4505, %v4786
        %v4803 = vld [vmem:[#allocation3] sm:$0xff]
        %v4804 = vld [vmem:[#allocation3 + $0x8] sm:$0xff]
        %v4805 = vld [vmem:[#allocation3 + $0x10] sm:$0xff]
        %v4806 = vld [vmem:[#allocation3 + $0x18] sm:$0xff]
        %v4807 = vld [vmem:[#allocation3 + $0x20] sm:$0xff]
        %v4808 = vld [vmem:[#allocation3 + $0x28] sm:$0xff]
        %v4809 = vld [vmem:[#allocation3 + $0x30] sm:$0xff]
        %v4810 = vld [vmem:[#allocation3 + $0x38] sm:$0xff]
        %v4811 = vld [vmem:[#allocation3 + $0x40] sm:$0xff]
        %v4812 = vld [vmem:[#allocation3 + $0x48] sm:$0xff]
        %v4813 = vld [vmem:[#allocation3 + $0x50] sm:$0xff]
        %v4814 = vld [vmem:[#allocation3 + $0x58] sm:$0xff]
        %v4815 = vld [vmem:[#allocation3 + $0x60] sm:$0xff]
        %v4816 = vld [vmem:[#allocation3 + $0x68] sm:$0xff]
        %v4817 = vld [vmem:[#allocation3 + $0x70] sm:$0xff]
        %v4818 = vld [vmem:[#allocation3 + $0x78] sm:$0xff]
        %v4819 = vmul.f32 %v4803, 0.01
        %v4820 = vmul.f32 %v4804, 0.01
        %v4821 = vmul.f32 %v4805, 0.01
        %v4822 = vmul.f32 %v4806, 0.01
        %v4823 = vmul.f32 %v4807, 0.01
        %v4824 = vmul.f32 %v4808, 0.01
        %v4825 = vmul.f32 %v4809, 0.01
        %v4826 = vmul.f32 %v4810, 0.01
        %v4827 = vmul.f32 %v4811, 0.01
        %v4828 = vmul.f32 %v4812, 0.01
        %v4829 = vmul.f32 %v4813, 0.01
        %v4830 = vmul.f32 %v4814, 0.01
        %v4831 = vmul.f32 %v4815, 0.01
        %v4832 = vmul.f32 %v4816, 0.01
        %v4833 = vmul.f32 %v4817, 0.01
        %v4834 = vmul.f32 %v4818, 0.01
        %v4835 = vmax.f32 %v4803, %v4819
        %v4836 = vmax.f32 %v4804, %v4820
        %v4837 = vmax.f32 %v4805, %v4821
        %v4838 = vmax.f32 %v4806, %v4822
        %v4839 = vmax.f32 %v4807, %v4823
        %v4840 = vmax.f32 %v4808, %v4824
        %v4841 = vmax.f32 %v4809, %v4825
        %v4842 = vmax.f32 %v4810, %v4826
        %v4843 = vmax.f32 %v4811, %v4827
        %v4844 = vmax.f32 %v4812, %v4828
        %v4845 = vmax.f32 %v4813, %v4829
        %v4846 = vmax.f32 %v4814, %v4830
        %v4847 = vmax.f32 %v4815, %v4831
        %v4848 = vmax.f32 %v4816, %v4832
        %v4849 = vmax.f32 %v4817, %v4833
        %v4850 = vmax.f32 %v4818, %v4834
        %4851 = vst.msk [vmem:[%s309] sm:$0xff] %vm322, %v4835
        %4852 = vst.msk [vmem:[%s309 + $0x8] sm:$0xff] %vm322, %v4836
        %4853 = vst.msk [vmem:[%s309 + $0x10] sm:$0xff] %vm322, %v4837
        %4854 = vst.msk [vmem:[%s309 + $0x18] sm:$0xff] %vm322, %v4838
        %4855 = vst.msk [vmem:[%s309 + $0x20] sm:$0xff] %vm322, %v4839
        %4856 = vst.msk [vmem:[%s309 + $0x28] sm:$0xff] %vm322, %v4840
        %4857 = vst.msk [vmem:[%s309 + $0x30] sm:$0xff] %vm322, %v4841
        %4858 = vst.msk [vmem:[%s309 + $0x38] sm:$0xff] %vm322, %v4842
        %4859 = vst.msk [vmem:[%s309 + $0x40] sm:$0xff] %vm322, %v4843
        %4860 = vst.msk [vmem:[%s309 + $0x48] sm:$0xff] %vm322, %v4844
        %4861 = vst.msk [vmem:[%s309 + $0x50] sm:$0xff] %vm322, %v4845
        %4862 = vst.msk [vmem:[%s309 + $0x58] sm:$0xff] %vm322, %v4846
        %4863 = vst.msk [vmem:[%s309 + $0x60] sm:$0xff] %vm322, %v4847
        %4864 = vst.msk [vmem:[%s309 + $0x68] sm:$0xff] %vm322, %v4848
        %4865 = vst.msk [vmem:[%s309 + $0x70] sm:$0xff] %vm322, %v4849
        %4866 = vst.msk [vmem:[%s309 + $0x78] sm:$0xff] %vm322, %v4850
        %s4867 = sand.u32 %s147, 1
        %s4868 = scalar_lea.sflag [#allocation6], %s4867
        %s4869 = sand.u32 %s147, 1
        %s4870 = smul.addr %s4869, 128
        %s4871 = scalar_lea.vmem [#allocation12], %s4870
        // Predicated region
        $region53: #{deconv3d_block.1} parent=35 // pred_check
          %p4872 = pneg %p157
        $region54: #{deconv3d_block.1} parent=35 // pred_check_branch
          %4874 = sbr.rel (%p4872) target = $region56
        $region55: #{deconv3d_block.1} parent=35 // pred_region
          %s4875 = smul.u32 16, %s30
          %s4877 = ssub.s32 2048, 2048
          %4878 = vsyncadd %s4868, %s4877
          %s4879 = smul.addr %s29, 32
          %s4880 = sadd.s32 %s4875, %s4879
          %s4881 = smul.addr %s4880, 128
          %s4882 = scalar_lea.hbm %s4, %s4881
          %s4883 = sshll.u32 %s4871, 4
          %s4884 = int_to_ptr.vmem [resolvable:$true] %s4883
          %4889 = dma.vmem_to_hbm [thread:$0]  %s4884, 2048, %s4882, %s4868, 128, 128, 8
        $region56: #{deconv3d_block.1} parent=35 // pred_fallthru
          _
      $region36: #{deconv3d_block.1} parent=5 // pred_fallthru
        _
      %p4890 = scmp.le.s32.totalorder 2, %s20
      // Predicated region
      $region57: #{deconv3d_block.1} parent=5 // pred_check
        %p4891 = pneg %p4890
      $region58: #{deconv3d_block.1} parent=5 // pred_check_branch
        %4893 = sbr.rel (%p4891) target = $region60
      $region59: #{deconv3d_block.1} parent=5 // pred_region
        %s4894 = ssub.s32 %s20, 2
        // Predicated region
        $region61: #{deconv3d_block.1} parent=59 // pred_check
          %p4895 = pneg %p163
        $region62: #{deconv3d_block.1} parent=59 // pred_check_branch
          %4897 = sbr.rel (%p4895) target = $region64
        $region63: #{deconv3d_block.1} parent=59 // pred_region
          %s4898 = sand.u32 %s148, 1
          %s4899 = scalar_lea.sflag [#allocation6], %s4898
          %s4900 = sand.u32 %s148, 1
          %s4901 = smul.addr %s4900, 128
          %s4902 = scalar_lea.vmem [#allocation12], %s4901
          %4903 = dma.done %s4899, 2048
        $region64: #{deconv3d_block.1} parent=59 // pred_fallthru
          _
      $region60: #{deconv3d_block.1} parent=5 // pred_fallthru
        _
    $region6: #{deconv3d_block.1} parent=1 // loop_footer
      %s24 = sadd.s32 1, %s20
    $region7: #{deconv3d_block.1} parent=1 // loop_footer_branch
      %19 = sbr.rel target = $region3
    $region8: #{deconv3d_block.1} parent=1 // loop_exit
      _
    %4904 = vsyncpa [#allocation5], 1
    %s4905 = scalar_lea.sflag [#allocation5], 1
    %4906 = vsyncpa %s4905, 1
    %4907 = vsyncpa [#allocation8], 1
    %s4908 = scalar_lea.sflag [#allocation8], 1
    %4909 = vsyncpa %s4908, 1
    %4910 = vsyncpa [#allocation11], 1
    %4911 = vsyncpa [#allocation6], 1
    %s4912 = scalar_lea.sflag [#allocation6], 1
    %4913 = vsyncpa %s4912, 1

</llo_original>
